<compile_context>
chip_gen: v6e
topology: v6e:2x2x1
jax: 0.10.0
libtpu: 0.0.40
codegen_flags: <defaults>
</compile_context>

<pallas_src>
import functools

import jax
import jax.numpy as jnp
from jax.experimental import pallas as pl
from jax.experimental.pallas import tpu as pltpu


def seq2seq_attn_kernel(enc_emb_ref, dec_emb_ref,
                        w_ih_ref, w_hh_ref, b_ih_ref, b_hh_ref,
                        w_attn_t_ref, b_attn_ref, w_fc_ref, b_fc_ref,
                        dec_out_ref, attn_out_ref,
                        enc_scr, dh_scr):
    """Processes ONE batch block of BB sequences (grid axis = batch blocks)."""
    BB, S, E = enc_emb_ref.shape
    T = dec_emb_ref.shape[1]
    H = w_hh_ref.shape[1]
    H3 = w_hh_ref.shape[2]                       # 3H, columns ordered [r|z|n]
    V = b_fc_ref.shape[1]
    S_PAD = attn_out_ref.shape[2]
    f32 = jnp.float32
    bf16 = jnp.bfloat16

    # ----- load fused recurrent weights / split biases ONCE (hoisted) --------
    whh = [w_hh_ref[0], w_hh_ref[1]]                              # (H,3H) bf16
    bhh_rz = [b_hh_ref[0][:, :2 * H], b_hh_ref[1][:, :2 * H]]     # (1,2H) f32
    bhh_n = [b_hh_ref[0][:, 2 * H:], b_hh_ref[1][:, 2 * H:]]      # (1,H)  f32

    # ----- hoisted GRU input projections: one (rows,E)x(E,3H) matmul each ----
    def input_proj(x_ref, idx, steps):
        x = x_ref[...].reshape(BB * steps, E).astype(bf16)
        gi = (jnp.dot(x, w_ih_ref[idx], preferred_element_type=f32)
              + b_ih_ref[idx])                                    # (BB*steps,3H)
        return gi.reshape(BB, steps, H3)                          # f32

    gi_e = input_proj(enc_emb_ref, 0, S)
    gi_d = input_proj(dec_emb_ref, 1, T)

    def gru_step(h, gi_s, idx):
        # nn.GRU semantics, gate order (r, z, n); b_hn stays inside the r-gated
        # term.  One fused (BB,H)x(H,3H) h-matmul per step (1 MXU push, not 3).
        gh = jnp.dot(h.astype(bf16), whh[idx], preferred_element_type=f32)
        rz = jax.nn.sigmoid(gi_s[:, :2 * H] + gh[:, :2 * H] + bhh_rz[idx])
        r = rz[:, :H]
        z = rz[:, H:]
        n = jnp.tanh(gi_s[:, 2 * H:] + r * (gh[:, 2 * H:] + bhh_n[idx]))
        return (1.0 - z) * n + z * h

    # ------------------------ encoder GRU (unrolled over S) ------------------
    h = jnp.zeros((BB, H), f32)
    for s in range(S):
        h = gru_step(h, gi_e[:, s, :], 0)
        enc_scr[:, s, :] = h

    # Decoder initial hidden = mean over encoder layers of the final hidden;
    # single unidirectional layer -> it is just the final hidden state.
    dh = h

    # ------------------------ decoder GRU (unrolled over T) ------------------
    for t in range(T):
        dh = gru_step(dh, gi_d[:, t, :], 1)
        dh_scr[:, t, :] = dh

    # --------- attention / softmax / context, hoisted out of the loop --------
    enc_out = enc_scr[...]                                        # (BB,S,H) f32
    enc_out_bf = enc_out.astype(bf16)
    dh_all = dh_scr[...]                                          # (BB,T,H) f32
    dh_all_bf = dh_all.astype(bf16)

    # attention Linear(H,H) on ALL encoder outputs in one matmul
    attn_enc = (jnp.dot(enc_out.reshape(BB * S, H).astype(bf16),
                        w_attn_t_ref[...], preferred_element_type=f32)
                + b_attn_ref[...]).reshape(BB, S, H)

    # scores[b,t,s] = <attention(enc_out)[b,s,:], dh[b,t,:]>  (no transpose:
    # contract on H of both operands)
    scores = jnp.einsum('bth,bsh->bts', dh_all_bf, attn_enc.astype(bf16),
                        preferred_element_type=f32)               # (BB,T,S)
    scores = scores - jnp.max(scores, axis=-1, keepdims=True)
    ex = jnp.exp(scores)
    attn_w = ex / jnp.sum(ex, axis=-1, keepdims=True)             # exact f32

    # context = attn_w @ enc_out
    ctx = jnp.einsum('bts,bsh->bth', attn_w.astype(bf16), enc_out_bf,
                     preferred_element_type=f32)                  # (BB,T,H)

    # attention output: one dense slab write (+ one masked sub-slab when S<128)
    if S_PAD == S:
        attn_out_ref[...] = attn_w
    else:
        attn_out_ref[...] = jnp.zeros((BB, T, S_PAD), f32)
        attn_out_ref[:, :, :S] = attn_w

    # ----- deferred fc1: two (BB*T,H)x(H,V) matmuls + one lane-dense store ----
    # fc1 acts on cat([decoder_output, context]); splitting the weight is
    # mathematically identical to the concatenation.
    logits = (jnp.dot(dh_all.reshape(BB * T, H).astype(bf16), w_fc_ref[0],
                      preferred_element_type=f32)
              + jnp.dot(ctx.reshape(BB * T, H).astype(bf16), w_fc_ref[1],
                        preferred_element_type=f32)
              + b_fc_ref[...])                                    # (BB*T, V)
    dec_out_ref[...] = logits.reshape(BB, T, V)


@functools.partial(jax.jit, static_argnums=(3, 4, 5))
def seq2seq_attn_forward(params, x_tokens, y_tokens, max_seq_size, sos_token=128,
                         batch_block=None):
    B, S = x_tokens.shape
    T = int(max_seq_size)
    H = params["w_hh_e"].shape[1]
    E = params["emb_enc"].shape[1]
    V = params["w_fc"].shape[0]
    S_PAD = ((S + 127) // 128) * 128             # lane-dense attention output

    bf16 = jnp.bfloat16
    f32 = jnp.float32

    # Batch block: fill sublanes in the recurrence, but keep >= 2 grid steps
    # when possible so v7x's two TensorCores both get work on the "parallel"
    # batch axis.  (On 1-TC v5e/v6e a single full-batch block minimizes the
    # serial recurrence; pass batch_block=B explicitly if that is preferred.)
    if batch_block is None:
        batch_block = max(1, min(8, -(-B // 2)))
    BB = int(batch_block)
    num_blocks = -(-B // BB)
    B_pad = num_blocks * BB

    if B_pad != B:
        padb = B_pad - B
        x_tokens = jnp.concatenate(
            [x_tokens, jnp.zeros((padb, S), x_tokens.dtype)], axis=0)
        y_tokens = jnp.concatenate(
            [y_tokens, jnp.zeros((padb, y_tokens.shape[1]), y_tokens.dtype)], axis=0)

    # Embedding lookups (glue, plain JAX). teacher_forcing = 1.0: decoder input
    # at step t is SOS for t=0, else y[:, t-1].
    enc_emb = jnp.take(params["emb_enc"], x_tokens, axis=0)              # (B,S,E)
    dec_tokens = jnp.concatenate(
        [jnp.full((B_pad, 1), sos_token, dtype=y_tokens.dtype), y_tokens[:, :T - 1]],
        axis=1)
    dec_emb = jnp.take(params["emb_dec"], dec_tokens, axis=0)            # (B,T,E)

    # Fused, pre-transposed weights; columns ordered [r|z|n] (PyTorch order).
    def fuse_rnn(w_ih, w_hh, b_ih, b_hh):
        return (w_ih.T.astype(bf16),                      # (E, 3H)
                w_hh.T.astype(bf16),                      # (H, 3H)
                b_ih.reshape(1, 3 * H).astype(f32),
                b_hh.reshape(1, 3 * H).astype(f32))

    wih_e, whh_e, bih_e, bhh_e = fuse_rnn(params["w_ih_e"], params["w_hh_e"],
                                          params["b_ih_e"], params["b_hh_e"])
    wih_d, whh_d, bih_d, bhh_d = fuse_rnn(params["w_ih_d"], params["w_hh_d"],
                                          params["b_ih_d"], params["b_hh_d"])
    # Consolidated operands (fewer DMAs / double-buffered VMEM allocations).
    w_ih = jnp.stack([wih_e, wih_d])                      # (2, E, 3H) bf16
    w_hh = jnp.stack([whh_e, whh_d])                      # (2, H, 3H) bf16
    b_ih = jnp.stack([bih_e, bih_d])                      # (2, 1, 3H) f32
    b_hh = jnp.stack([bhh_e, bhh_d])                      # (2, 1, 3H) f32
    w_attn_t = params["w_attn"].T.astype(bf16)            # (H, H)
    b_attn = params["b_attn"].reshape(1, H).astype(f32)
    # fc1 Linear(2H, V) split into decoder-hidden / context halves.
    w_fc = jnp.stack([params["w_fc"][:, :H].T,
                      params["w_fc"][:, H:].T]).astype(bf16)   # (2, H, V)
    b_fc = params["b_fc"].reshape(1, V).astype(f32)

    args = (enc_emb, dec_emb, w_ih, w_hh, b_ih, b_hh,
            w_attn_t, b_attn, w_fc, b_fc)

    def rep_spec(a):
        n = a.ndim
        return pl.BlockSpec(a.shape, lambda b, n=n: (0,) * n)

    in_specs = ([pl.BlockSpec((BB, S, E), lambda b: (b, 0, 0)),
                 pl.BlockSpec((BB, T, E), lambda b: (b, 0, 0))]
                + [rep_spec(a) for a in args[2:]])

    dec_out, attn_pad = pl.pallas_call(
        seq2seq_attn_kernel,
        out_shape=(jax.ShapeDtypeStruct((B_pad, T, V), f32),
                   jax.ShapeDtypeStruct((B_pad, T, S_PAD), f32)),
        grid_spec=pltpu.PrefetchScalarGridSpec(
            num_scalar_prefetch=0,
            grid=(num_blocks,),                  # one batch block per grid step
            in_specs=in_specs,
            out_specs=[pl.BlockSpec((BB, T, V), lambda b: (b, 0, 0)),
                       pl.BlockSpec((BB, T, S_PAD), lambda b: (b, 0, 0))],
            scratch_shapes=[pltpu.VMEM((BB, S, H), f32),   # encoder hiddens
                            pltpu.VMEM((BB, T, H), f32)],  # decoder hiddens
        ),
        compiler_params=pltpu.CompilerParams(
            dimension_semantics=("parallel",),   # shards batch over v7x's 2 TCs
            # At realistic V/H, tile the deferred fc1 over V (extra grid axis)
            # and re-derive this limit per generation (v7x VMEM is 64 MiB).
            vmem_limit_bytes=32 * 1024 * 1024),
    )(*args)

    # Drop batch padding and attention lane padding.
    return dec_out[:B], attn_pad[:B, :, :S]


def init_params(key, vocab, E, H):
    """Random params in PyTorch layouts (GRU (3H,*) weights, gate order r,z,n)."""
    ks = jax.random.split(key, 14)
    k_rnn = 1.0 / float(H) ** 0.5
    k_fc = 1.0 / float(2 * H) ** 0.5
    u = lambda k, shape, lim: jax.random.uniform(k, shape, jnp.float32, -lim, lim)
    return dict(
        emb_enc=jax.random.normal(ks[0], (vocab, E), jnp.float32),
        emb_dec=jax.random.normal(ks[1], (vocab, E), jnp.float32),
        # encoder GRU (input E -> hidden H)
        w_ih_e=u(ks[2], (3 * H, E), k_rnn), w_hh_e=u(ks[3], (3 * H, H), k_rnn),
        b_ih_e=u(ks[4], (3 * H,), k_rnn), b_hh_e=u(ks[5], (3 * H,), k_rnn),
        # decoder GRU
        w_ih_d=u(ks[6], (3 * H, E), k_rnn), w_hh_d=u(ks[7], (3 * H, H), k_rnn),
        b_ih_d=u(ks[8], (3 * H,), k_rnn), b_hh_d=u(ks[9], (3 * H,), k_rnn),
        # attention Linear(H, H)
        w_attn=u(ks[10], (H, H), k_rnn), b_attn=u(ks[11], (H,), k_rnn),
        # fc1 Linear(2H, V)
        w_fc=u(ks[12], (vocab, 2 * H), k_fc), b_fc=u(ks[13], (vocab,), k_fc),
    )


if __name__ == "__main__":
    VOCAB, EMB, HID = 256, 32, 32       # vocab must cover SOS_TOKEN = 128
    B, S, T = 4, 8, 8                   # batch, source seq len, max_seq_size
                                        # -> BB=2 per block, grid=(2,) "parallel"

    key = jax.random.PRNGKey(0)
    kp, kx, ky = jax.random.split(key, 3)
    params = init_params(kp, VOCAB, EMB, HID)

    x = jax.random.randint(kx, (B, S), 0, VOCAB, dtype=jnp.int32)
    y = jax.random.randint(ky, (B, T), 0, VOCAB, dtype=jnp.int32)

    dec_out, attn_w = seq2seq_attn_forward(params, x, y, T)
    dec_out, attn_w = jax.block_until_ready((dec_out, attn_w))

    assert dec_out.shape == (B, T, VOCAB) and dec_out.dtype == jnp.float32
    assert attn_w.shape == (B, T, S) and attn_w.dtype == jnp.float32
    # attention rows are softmaxes -> sum to 1 (exact f32 divide, so 1e-4 holds)
    assert bool(jnp.all(jnp.abs(jnp.sum(attn_w, axis=-1) - 1.0) < 1e-4))

    # TODO(synk): nn.Dropout is a no-op here (dropout=0.0 and it only fires when
    # num_layers_decoder > 1); the `random.random()` teacher-forcing branch is
    # fixed to always-teacher-force (prob=1.0); LSTM/RNN cells, bidirectional
    # and multi-layer variants of the module are not implemented.
    print("KERNEL_OK")
</pallas_src>

<mosaic_0001>
module attributes {stable_mosaic.version = 11 : i64} {
  func.func @seq2seq_attn_kernel(%arg0: i32, %arg1: memref<2x8x32xf32, #tpu.memory_space<vmem>>, %arg2: memref<2x8x32xf32, #tpu.memory_space<vmem>>, %arg3: memref<2x32x96xbf16, #tpu.memory_space<vmem>>, %arg4: memref<2x32x96xbf16, #tpu.memory_space<vmem>>, %arg5: memref<2x1x96xf32, #tpu.memory_space<vmem>>, %arg6: memref<2x1x96xf32, #tpu.memory_space<vmem>>, %arg7: memref<32x32xbf16, #tpu.memory_space<vmem>>, %arg8: memref<1x32xf32, #tpu.memory_space<vmem>>, %arg9: memref<2x32x256xbf16, #tpu.memory_space<vmem>>, %arg10: memref<1x256xf32, #tpu.memory_space<vmem>>, %arg11: memref<2x8x256xf32, #tpu.memory_space<vmem>>, %arg12: memref<2x8x128xf32, #tpu.memory_space<vmem>>, %arg13: memref<2x8x32xf32, #tpu.memory_space<vmem>>, %arg14: memref<2x8x32xf32, #tpu.memory_space<vmem>>) attributes {dimension_semantics = [#tpu.dimension_semantics<parallel>], iteration_bounds = array<i64: 2>, scalar_prefetch = 0 : i64, scratch_operands = 2 : i64, tpu.core_type = #tpu.core_type<tc>, window_params = [{transform_indices = @transform_0, window_bounds = array<i64: 2, 8, 32>}, {transform_indices = @transform_1, window_bounds = array<i64: 2, 8, 32>}, {pipeline_mode = #tpu.pipeline_mode<synchronous>, transform_indices = @transform_2, window_bounds = array<i64: 2, 32, 96>}, {pipeline_mode = #tpu.pipeline_mode<synchronous>, transform_indices = @transform_3, window_bounds = array<i64: 2, 32, 96>}, {pipeline_mode = #tpu.pipeline_mode<synchronous>, transform_indices = @transform_4, window_bounds = array<i64: 2, 1, 96>}, {pipeline_mode = #tpu.pipeline_mode<synchronous>, transform_indices = @transform_5, window_bounds = array<i64: 2, 1, 96>}, {pipeline_mode = #tpu.pipeline_mode<synchronous>, transform_indices = @transform_6, window_bounds = array<i64: 32, 32>}, {pipeline_mode = #tpu.pipeline_mode<synchronous>, transform_indices = @transform_7, window_bounds = array<i64: 1, 32>}, {pipeline_mode = #tpu.pipeline_mode<synchronous>, transform_indices = @transform_8, window_bounds = array<i64: 2, 32, 256>}, {pipeline_mode = #tpu.pipeline_mode<synchronous>, transform_indices = @transform_9, window_bounds = array<i64: 1, 256>}, {transform_indices = @transform_10, window_bounds = array<i64: 2, 8, 256>}, {transform_indices = @transform_11, window_bounds = array<i64: 2, 8, 128>}]} {
    %c0 = arith.constant 0 : index
    %c0_0 = arith.constant 0 : index
    %c0_1 = arith.constant 0 : index
    %0 = vector.load %arg4[%c0, %c0_0, %c0_1] : memref<2x32x96xbf16, #tpu.memory_space<vmem>>, vector<1x32x96xbf16>
    %1 = vector.shape_cast %0 : vector<1x32x96xbf16> to vector<32x96xbf16>
    %c1 = arith.constant 1 : index
    %c0_2 = arith.constant 0 : index
    %c0_3 = arith.constant 0 : index
    %2 = vector.load %arg4[%c1, %c0_2, %c0_3] : memref<2x32x96xbf16, #tpu.memory_space<vmem>>, vector<1x32x96xbf16>
    %3 = vector.shape_cast %2 : vector<1x32x96xbf16> to vector<32x96xbf16>
    %c0_4 = arith.constant 0 : index
    %c0_5 = arith.constant 0 : index
    %c0_6 = arith.constant 0 : index
    %4 = vector.load %arg6[%c0_4, %c0_5, %c0_6] : memref<2x1x96xf32, #tpu.memory_space<vmem>>, vector<1x1x96xf32>
    %5 = vector.shape_cast %4 : vector<1x1x96xf32> to vector<1x96xf32>
    %6 = vector.extract_strided_slice %5 {offsets = [0, 0], sizes = [1, 64], strides = [1, 1]} : vector<1x96xf32> to vector<1x64xf32>
    %c1_7 = arith.constant 1 : index
    %c0_8 = arith.constant 0 : index
    %c0_9 = arith.constant 0 : index
    %7 = vector.load %arg6[%c1_7, %c0_8, %c0_9] : memref<2x1x96xf32, #tpu.memory_space<vmem>>, vector<1x1x96xf32>
    %8 = vector.shape_cast %7 : vector<1x1x96xf32> to vector<1x96xf32>
    %9 = vector.extract_strided_slice %8 {offsets = [0, 0], sizes = [1, 64], strides = [1, 1]} : vector<1x96xf32> to vector<1x64xf32>
    %c0_10 = arith.constant 0 : index
    %c0_11 = arith.constant 0 : index
    %c0_12 = arith.constant 0 : index
    %10 = vector.load %arg6[%c0_10, %c0_11, %c0_12] : memref<2x1x96xf32, #tpu.memory_space<vmem>>, vector<1x1x96xf32>
    %11 = vector.shape_cast %10 : vector<1x1x96xf32> to vector<1x96xf32>
    %12 = vector.extract_strided_slice %11 {offsets = [0, 64], sizes = [1, 32], strides = [1, 1]} : vector<1x96xf32> to vector<1x32xf32>
    %c1_13 = arith.constant 1 : index
    %c0_14 = arith.constant 0 : index
    %c0_15 = arith.constant 0 : index
    %13 = vector.load %arg6[%c1_13, %c0_14, %c0_15] : memref<2x1x96xf32, #tpu.memory_space<vmem>>, vector<1x1x96xf32>
    %14 = vector.shape_cast %13 : vector<1x1x96xf32> to vector<1x96xf32>
    %15 = vector.extract_strided_slice %14 {offsets = [0, 64], sizes = [1, 32], strides = [1, 1]} : vector<1x96xf32> to vector<1x32xf32>
    %c0_16 = arith.constant 0 : index
    %c0_17 = arith.constant 0 : index
    %c0_18 = arith.constant 0 : index
    %16 = vector.load %arg1[%c0_16, %c0_17, %c0_18] : memref<2x8x32xf32, #tpu.memory_space<vmem>>, vector<2x8x32xf32>
    %17 = vector.shape_cast %16 : vector<2x8x32xf32> to vector<16x32xf32>
    %18 = arith.truncf %17 : vector<16x32xf32> to vector<16x32xbf16>
    %c0_19 = arith.constant 0 : index
    %c0_20 = arith.constant 0 : index
    %c0_21 = arith.constant 0 : index
    %19 = vector.load %arg3[%c0_19, %c0_20, %c0_21] : memref<2x32x96xbf16, #tpu.memory_space<vmem>>, vector<1x32x96xbf16>
    %20 = vector.shape_cast %19 : vector<1x32x96xbf16> to vector<32x96xbf16>
    %cst = arith.constant dense<0.000000e+00> : vector<16x96xf32>
    %21 = tpu.matmul %18, %20, %cst {dimension_numbers = #tpu.dot_dimension_numbers<[1], [0], [0], [1], [0, 0, 1, 1], [], []>} : vector<16x32xbf16>, vector<32x96xbf16>, vector<16x96xf32> -> vector<16x96xf32>
    %c0_22 = arith.constant 0 : index
    %c0_23 = arith.constant 0 : index
    %c0_24 = arith.constant 0 : index
    %22 = vector.load %arg5[%c0_22, %c0_23, %c0_24] : memref<2x1x96xf32, #tpu.memory_space<vmem>>, vector<1x1x96xf32>
    %23 = vector.shape_cast %22 : vector<1x1x96xf32> to vector<1x96xf32>
    %24 = vector.broadcast %23 : vector<1x96xf32> to vector<16x96xf32>
    %25 = arith.addf %21, %24 : vector<16x96xf32>
    %26 = vector.shape_cast %25 : vector<16x96xf32> to vector<2x8x96xf32>
    %c0_25 = arith.constant 0 : index
    %c0_26 = arith.constant 0 : index
    %c0_27 = arith.constant 0 : index
    %27 = vector.load %arg2[%c0_25, %c0_26, %c0_27] : memref<2x8x32xf32, #tpu.memory_space<vmem>>, vector<2x8x32xf32>
    %28 = vector.shape_cast %27 : vector<2x8x32xf32> to vector<16x32xf32>
    %29 = arith.truncf %28 : vector<16x32xf32> to vector<16x32xbf16>
    %c1_28 = arith.constant 1 : index
    %c0_29 = arith.constant 0 : index
    %c0_30 = arith.constant 0 : index
    %30 = vector.load %arg3[%c1_28, %c0_29, %c0_30] : memref<2x32x96xbf16, #tpu.memory_space<vmem>>, vector<1x32x96xbf16>
    %31 = vector.shape_cast %30 : vector<1x32x96xbf16> to vector<32x96xbf16>
    %cst_31 = arith.constant dense<0.000000e+00> : vector<16x96xf32>
    %32 = tpu.matmul %29, %31, %cst_31 {dimension_numbers = #tpu.dot_dimension_numbers<[1], [0], [0], [1], [0, 0, 1, 1], [], []>} : vector<16x32xbf16>, vector<32x96xbf16>, vector<16x96xf32> -> vector<16x96xf32>
    %c1_32 = arith.constant 1 : index
    %c0_33 = arith.constant 0 : index
    %c0_34 = arith.constant 0 : index
    %33 = vector.load %arg5[%c1_32, %c0_33, %c0_34] : memref<2x1x96xf32, #tpu.memory_space<vmem>>, vector<1x1x96xf32>
    %34 = vector.shape_cast %33 : vector<1x1x96xf32> to vector<1x96xf32>
    %35 = vector.broadcast %34 : vector<1x96xf32> to vector<16x96xf32>
    %36 = arith.addf %32, %35 : vector<16x96xf32>
    %37 = vector.shape_cast %36 : vector<16x96xf32> to vector<2x8x96xf32>
    %cst_35 = arith.constant 0.000000e+00 : f32
    %38 = vector.broadcast %cst_35 : f32 to vector<2x32xf32>
    %39 = vector.extract_strided_slice %26 {offsets = [0, 0, 0], sizes = [2, 1, 96], strides = [1, 1, 1]} : vector<2x8x96xf32> to vector<2x1x96xf32>
    %40 = vector.shape_cast %39 : vector<2x1x96xf32> to vector<2x96xf32>
    %41 = arith.truncf %38 : vector<2x32xf32> to vector<2x32xbf16>
    %cst_36 = arith.constant dense<0.000000e+00> : vector<2x96xf32>
    %42 = tpu.matmul %41, %1, %cst_36 {dimension_numbers = #tpu.dot_dimension_numbers<[1], [0], [0], [1], [0, 0, 1, 1], [], []>} : vector<2x32xbf16>, vector<32x96xbf16>, vector<2x96xf32> -> vector<2x96xf32>
    %43 = vector.extract_strided_slice %40 {offsets = [0, 0], sizes = [2, 64], strides = [1, 1]} : vector<2x96xf32> to vector<2x64xf32>
    %44 = vector.extract_strided_slice %42 {offsets = [0, 0], sizes = [2, 64], strides = [1, 1]} : vector<2x96xf32> to vector<2x64xf32>
    %45 = arith.addf %43, %44 : vector<2x64xf32>
    %46 = vector.broadcast %6 : vector<1x64xf32> to vector<2x64xf32>
    %47 = arith.addf %45, %46 : vector<2x64xf32>
    %48 = arith.negf %47 : vector<2x64xf32>
    %49 = math.exp %48 : vector<2x64xf32>
    %cst_37 = arith.constant 1.000000e+00 : f32
    %50 = vector.broadcast %cst_37 : f32 to vector<2x64xf32>
    %51 = arith.addf %50, %49 : vector<2x64xf32>
    %52 = arith.divf %50, %51 : vector<2x64xf32>
    %53 = vector.extract_strided_slice %52 {offsets = [0, 0], sizes = [2, 32], strides = [1, 1]} : vector<2x64xf32> to vector<2x32xf32>
    %54 = vector.extract_strided_slice %52 {offsets = [0, 32], sizes = [2, 32], strides = [1, 1]} : vector<2x64xf32> to vector<2x32xf32>
    %55 = vector.extract_strided_slice %40 {offsets = [0, 64], sizes = [2, 32], strides = [1, 1]} : vector<2x96xf32> to vector<2x32xf32>
    %56 = vector.extract_strided_slice %42 {offsets = [0, 64], sizes = [2, 32], strides = [1, 1]} : vector<2x96xf32> to vector<2x32xf32>
    %57 = vector.broadcast %12 : vector<1x32xf32> to vector<2x32xf32>
    %58 = arith.addf %56, %57 : vector<2x32xf32>
    %59 = arith.mulf %53, %58 : vector<2x32xf32>
    %60 = arith.addf %55, %59 : vector<2x32xf32>
    %61 = math.tanh %60 : vector<2x32xf32>
    %cst_38 = arith.constant 1.000000e+00 : f32
    %62 = vector.broadcast %cst_38 : f32 to vector<2x32xf32>
    %63 = arith.subf %62, %54 : vector<2x32xf32>
    %64 = arith.mulf %63, %61 : vector<2x32xf32>
    %65 = arith.mulf %54, %38 : vector<2x32xf32>
    %66 = arith.addf %64, %65 : vector<2x32xf32>
    %c0_39 = arith.constant 0 : index
    %c0_40 = arith.constant 0 : index
    %c0_41 = arith.constant 0 : index
    %67 = vector.load %arg13[%c0_39, %c0_40, %c0_41] : memref<2x8x32xf32, #tpu.memory_space<vmem>>, vector<2x1x32xf32>
    %68 = vector.shape_cast %67 : vector<2x1x32xf32> to vector<2x32xf32>
    %69 = vector.shape_cast %66 : vector<2x32xf32> to vector<2x1x32xf32>
    tpu.vector_store %arg13[%c0_39, %c0_40, %c0_41], %69 {strides = array<i32>} : memref<2x8x32xf32, #tpu.memory_space<vmem>>, vector<2x1x32xf32>,
    %70 = vector.extract_strided_slice %26 {offsets = [0, 1, 0], sizes = [2, 1, 96], strides = [1, 1, 1]} : vector<2x8x96xf32> to vector<2x1x96xf32>
    %71 = vector.shape_cast %70 : vector<2x1x96xf32> to vector<2x96xf32>
    %72 = arith.truncf %66 : vector<2x32xf32> to vector<2x32xbf16>
    %cst_42 = arith.constant dense<0.000000e+00> : vector<2x96xf32>
    %73 = tpu.matmul %72, %1, %cst_42 {dimension_numbers = #tpu.dot_dimension_numbers<[1], [0], [0], [1], [0, 0, 1, 1], [], []>} : vector<2x32xbf16>, vector<32x96xbf16>, vector<2x96xf32> -> vector<2x96xf32>
    %74 = vector.extract_strided_slice %71 {offsets = [0, 0], sizes = [2, 64], strides = [1, 1]} : vector<2x96xf32> to vector<2x64xf32>
    %75 = vector.extract_strided_slice %73 {offsets = [0, 0], sizes = [2, 64], strides = [1, 1]} : vector<2x96xf32> to vector<2x64xf32>
    %76 = arith.addf %74, %75 : vector<2x64xf32>
    %77 = vector.broadcast %6 : vector<1x64xf32> to vector<2x64xf32>
    %78 = arith.addf %76, %77 : vector<2x64xf32>
    %79 = arith.negf %78 : vector<2x64xf32>
    %80 = math.exp %79 : vector<2x64xf32>
    %cst_43 = arith.constant 1.000000e+00 : f32
    %81 = vector.broadcast %cst_43 : f32 to vector<2x64xf32>
    %82 = arith.addf %81, %80 : vector<2x64xf32>
    %83 = arith.divf %81, %82 : vector<2x64xf32>
    %84 = vector.extract_strided_slice %83 {offsets = [0, 0], sizes = [2, 32], strides = [1, 1]} : vector<2x64xf32> to vector<2x32xf32>
    %85 = vector.extract_strided_slice %83 {offsets = [0, 32], sizes = [2, 32], strides = [1, 1]} : vector<2x64xf32> to vector<2x32xf32>
    %86 = vector.extract_strided_slice %71 {offsets = [0, 64], sizes = [2, 32], strides = [1, 1]} : vector<2x96xf32> to vector<2x32xf32>
    %87 = vector.extract_strided_slice %73 {offsets = [0, 64], sizes = [2, 32], strides = [1, 1]} : vector<2x96xf32> to vector<2x32xf32>
    %88 = vector.broadcast %12 : vector<1x32xf32> to vector<2x32xf32>
    %89 = arith.addf %87, %88 : vector<2x32xf32>
    %90 = arith.mulf %84, %89 : vector<2x32xf32>
    %91 = arith.addf %86, %90 : vector<2x32xf32>
    %92 = math.tanh %91 : vector<2x32xf32>
    %cst_44 = arith.constant 1.000000e+00 : f32
    %93 = vector.broadcast %cst_44 : f32 to vector<2x32xf32>
    %94 = arith.subf %93, %85 : vector<2x32xf32>
    %95 = arith.mulf %94, %92 : vector<2x32xf32>
    %96 = arith.mulf %85, %66 : vector<2x32xf32>
    %97 = arith.addf %95, %96 : vector<2x32xf32>
    %c0_45 = arith.constant 0 : index
    %c1_46 = arith.constant 1 : index
    %c0_47 = arith.constant 0 : index
    %98 = vector.load %arg13[%c0_45, %c1_46, %c0_47] : memref<2x8x32xf32, #tpu.memory_space<vmem>>, vector<2x1x32xf32>
    %99 = vector.shape_cast %98 : vector<2x1x32xf32> to vector<2x32xf32>
    %100 = vector.shape_cast %97 : vector<2x32xf32> to vector<2x1x32xf32>
    tpu.vector_store %arg13[%c0_45, %c1_46, %c0_47], %100 {strides = array<i32>} : memref<2x8x32xf32, #tpu.memory_space<vmem>>, vector<2x1x32xf32>,
    %101 = vector.extract_strided_slice %26 {offsets = [0, 2, 0], sizes = [2, 1, 96], strides = [1, 1, 1]} : vector<2x8x96xf32> to vector<2x1x96xf32>
    %102 = vector.shape_cast %101 : vector<2x1x96xf32> to vector<2x96xf32>
    %103 = arith.truncf %97 : vector<2x32xf32> to vector<2x32xbf16>
    %cst_48 = arith.constant dense<0.000000e+00> : vector<2x96xf32>
    %104 = tpu.matmul %103, %1, %cst_48 {dimension_numbers = #tpu.dot_dimension_numbers<[1], [0], [0], [1], [0, 0, 1, 1], [], []>} : vector<2x32xbf16>, vector<32x96xbf16>, vector<2x96xf32> -> vector<2x96xf32>
    %105 = vector.extract_strided_slice %102 {offsets = [0, 0], sizes = [2, 64], strides = [1, 1]} : vector<2x96xf32> to vector<2x64xf32>
    %106 = vector.extract_strided_slice %104 {offsets = [0, 0], sizes = [2, 64], strides = [1, 1]} : vector<2x96xf32> to vector<2x64xf32>
    %107 = arith.addf %105, %106 : vector<2x64xf32>
    %108 = vector.broadcast %6 : vector<1x64xf32> to vector<2x64xf32>
    %109 = arith.addf %107, %108 : vector<2x64xf32>
    %110 = arith.negf %109 : vector<2x64xf32>
    %111 = math.exp %110 : vector<2x64xf32>
    %cst_49 = arith.constant 1.000000e+00 : f32
    %112 = vector.broadcast %cst_49 : f32 to vector<2x64xf32>
    %113 = arith.addf %112, %111 : vector<2x64xf32>
    %114 = arith.divf %112, %113 : vector<2x64xf32>
    %115 = vector.extract_strided_slice %114 {offsets = [0, 0], sizes = [2, 32], strides = [1, 1]} : vector<2x64xf32> to vector<2x32xf32>
    %116 = vector.extract_strided_slice %114 {offsets = [0, 32], sizes = [2, 32], strides = [1, 1]} : vector<2x64xf32> to vector<2x32xf32>
    %117 = vector.extract_strided_slice %102 {offsets = [0, 64], sizes = [2, 32], strides = [1, 1]} : vector<2x96xf32> to vector<2x32xf32>
    %118 = vector.extract_strided_slice %104 {offsets = [0, 64], sizes = [2, 32], strides = [1, 1]} : vector<2x96xf32> to vector<2x32xf32>
    %119 = vector.broadcast %12 : vector<1x32xf32> to vector<2x32xf32>
    %120 = arith.addf %118, %119 : vector<2x32xf32>
    %121 = arith.mulf %115, %120 : vector<2x32xf32>
    %122 = arith.addf %117, %121 : vector<2x32xf32>
    %123 = math.tanh %122 : vector<2x32xf32>
    %cst_50 = arith.constant 1.000000e+00 : f32
    %124 = vector.broadcast %cst_50 : f32 to vector<2x32xf32>
    %125 = arith.subf %124, %116 : vector<2x32xf32>
    %126 = arith.mulf %125, %123 : vector<2x32xf32>
    %127 = arith.mulf %116, %97 : vector<2x32xf32>
    %128 = arith.addf %126, %127 : vector<2x32xf32>
    %c0_51 = arith.constant 0 : index
    %c2 = arith.constant 2 : index
    %c0_52 = arith.constant 0 : index
    %129 = vector.load %arg13[%c0_51, %c2, %c0_52] : memref<2x8x32xf32, #tpu.memory_space<vmem>>, vector<2x1x32xf32>
    %130 = vector.shape_cast %129 : vector<2x1x32xf32> to vector<2x32xf32>
    %131 = vector.shape_cast %128 : vector<2x32xf32> to vector<2x1x32xf32>
    tpu.vector_store %arg13[%c0_51, %c2, %c0_52], %131 {strides = array<i32>} : memref<2x8x32xf32, #tpu.memory_space<vmem>>, vector<2x1x32xf32>,
    %132 = vector.extract_strided_slice %26 {offsets = [0, 3, 0], sizes = [2, 1, 96], strides = [1, 1, 1]} : vector<2x8x96xf32> to vector<2x1x96xf32>
    %133 = vector.shape_cast %132 : vector<2x1x96xf32> to vector<2x96xf32>
    %134 = arith.truncf %128 : vector<2x32xf32> to vector<2x32xbf16>
    %cst_53 = arith.constant dense<0.000000e+00> : vector<2x96xf32>
    %135 = tpu.matmul %134, %1, %cst_53 {dimension_numbers = #tpu.dot_dimension_numbers<[1], [0], [0], [1], [0, 0, 1, 1], [], []>} : vector<2x32xbf16>, vector<32x96xbf16>, vector<2x96xf32> -> vector<2x96xf32>
    %136 = vector.extract_strided_slice %133 {offsets = [0, 0], sizes = [2, 64], strides = [1, 1]} : vector<2x96xf32> to vector<2x64xf32>
    %137 = vector.extract_strided_slice %135 {offsets = [0, 0], sizes = [2, 64], strides = [1, 1]} : vector<2x96xf32> to vector<2x64xf32>
    %138 = arith.addf %136, %137 : vector<2x64xf32>
    %139 = vector.broadcast %6 : vector<1x64xf32> to vector<2x64xf32>
    %140 = arith.addf %138, %139 : vector<2x64xf32>
    %141 = arith.negf %140 : vector<2x64xf32>
    %142 = math.exp %141 : vector<2x64xf32>
    %cst_54 = arith.constant 1.000000e+00 : f32
    %143 = vector.broadcast %cst_54 : f32 to vector<2x64xf32>
    %144 = arith.addf %143, %142 : vector<2x64xf32>
    %145 = arith.divf %143, %144 : vector<2x64xf32>
    %146 = vector.extract_strided_slice %145 {offsets = [0, 0], sizes = [2, 32], strides = [1, 1]} : vector<2x64xf32> to vector<2x32xf32>
    %147 = vector.extract_strided_slice %145 {offsets = [0, 32], sizes = [2, 32], strides = [1, 1]} : vector<2x64xf32> to vector<2x32xf32>
    %148 = vector.extract_strided_slice %133 {offsets = [0, 64], sizes = [2, 32], strides = [1, 1]} : vector<2x96xf32> to vector<2x32xf32>
    %149 = vector.extract_strided_slice %135 {offsets = [0, 64], sizes = [2, 32], strides = [1, 1]} : vector<2x96xf32> to vector<2x32xf32>
    %150 = vector.broadcast %12 : vector<1x32xf32> to vector<2x32xf32>
    %151 = arith.addf %149, %150 : vector<2x32xf32>
    %152 = arith.mulf %146, %151 : vector<2x32xf32>
    %153 = arith.addf %148, %152 : vector<2x32xf32>
    %154 = math.tanh %153 : vector<2x32xf32>
    %cst_55 = arith.constant 1.000000e+00 : f32
    %155 = vector.broadcast %cst_55 : f32 to vector<2x32xf32>
    %156 = arith.subf %155, %147 : vector<2x32xf32>
    %157 = arith.mulf %156, %154 : vector<2x32xf32>
    %158 = arith.mulf %147, %128 : vector<2x32xf32>
    %159 = arith.addf %157, %158 : vector<2x32xf32>
    %c0_56 = arith.constant 0 : index
    %c3 = arith.constant 3 : index
    %c0_57 = arith.constant 0 : index
    %160 = vector.load %arg13[%c0_56, %c3, %c0_57] : memref<2x8x32xf32, #tpu.memory_space<vmem>>, vector<2x1x32xf32>
    %161 = vector.shape_cast %160 : vector<2x1x32xf32> to vector<2x32xf32>
    %162 = vector.shape_cast %159 : vector<2x32xf32> to vector<2x1x32xf32>
    tpu.vector_store %arg13[%c0_56, %c3, %c0_57], %162 {strides = array<i32>} : memref<2x8x32xf32, #tpu.memory_space<vmem>>, vector<2x1x32xf32>,
    %163 = vector.extract_strided_slice %26 {offsets = [0, 4, 0], sizes = [2, 1, 96], strides = [1, 1, 1]} : vector<2x8x96xf32> to vector<2x1x96xf32>
    %164 = vector.shape_cast %163 : vector<2x1x96xf32> to vector<2x96xf32>
    %165 = arith.truncf %159 : vector<2x32xf32> to vector<2x32xbf16>
    %cst_58 = arith.constant dense<0.000000e+00> : vector<2x96xf32>
    %166 = tpu.matmul %165, %1, %cst_58 {dimension_numbers = #tpu.dot_dimension_numbers<[1], [0], [0], [1], [0, 0, 1, 1], [], []>} : vector<2x32xbf16>, vector<32x96xbf16>, vector<2x96xf32> -> vector<2x96xf32>
    %167 = vector.extract_strided_slice %164 {offsets = [0, 0], sizes = [2, 64], strides = [1, 1]} : vector<2x96xf32> to vector<2x64xf32>
    %168 = vector.extract_strided_slice %166 {offsets = [0, 0], sizes = [2, 64], strides = [1, 1]} : vector<2x96xf32> to vector<2x64xf32>
    %169 = arith.addf %167, %168 : vector<2x64xf32>
    %170 = vector.broadcast %6 : vector<1x64xf32> to vector<2x64xf32>
    %171 = arith.addf %169, %170 : vector<2x64xf32>
    %172 = arith.negf %171 : vector<2x64xf32>
    %173 = math.exp %172 : vector<2x64xf32>
    %cst_59 = arith.constant 1.000000e+00 : f32
    %174 = vector.broadcast %cst_59 : f32 to vector<2x64xf32>
    %175 = arith.addf %174, %173 : vector<2x64xf32>
    %176 = arith.divf %174, %175 : vector<2x64xf32>
    %177 = vector.extract_strided_slice %176 {offsets = [0, 0], sizes = [2, 32], strides = [1, 1]} : vector<2x64xf32> to vector<2x32xf32>
    %178 = vector.extract_strided_slice %176 {offsets = [0, 32], sizes = [2, 32], strides = [1, 1]} : vector<2x64xf32> to vector<2x32xf32>
    %179 = vector.extract_strided_slice %164 {offsets = [0, 64], sizes = [2, 32], strides = [1, 1]} : vector<2x96xf32> to vector<2x32xf32>
    %180 = vector.extract_strided_slice %166 {offsets = [0, 64], sizes = [2, 32], strides = [1, 1]} : vector<2x96xf32> to vector<2x32xf32>
    %181 = vector.broadcast %12 : vector<1x32xf32> to vector<2x32xf32>
    %182 = arith.addf %180, %181 : vector<2x32xf32>
    %183 = arith.mulf %177, %182 : vector<2x32xf32>
    %184 = arith.addf %179, %183 : vector<2x32xf32>
    %185 = math.tanh %184 : vector<2x32xf32>
    %cst_60 = arith.constant 1.000000e+00 : f32
    %186 = vector.broadcast %cst_60 : f32 to vector<2x32xf32>
    %187 = arith.subf %186, %178 : vector<2x32xf32>
    %188 = arith.mulf %187, %185 : vector<2x32xf32>
    %189 = arith.mulf %178, %159 : vector<2x32xf32>
    %190 = arith.addf %188, %189 : vector<2x32xf32>
    %c0_61 = arith.constant 0 : index
    %c4 = arith.constant 4 : index
    %c0_62 = arith.constant 0 : index
    %191 = vector.load %arg13[%c0_61, %c4, %c0_62] : memref<2x8x32xf32, #tpu.memory_space<vmem>>, vector<2x1x32xf32>
    %192 = vector.shape_cast %191 : vector<2x1x32xf32> to vector<2x32xf32>
    %193 = vector.shape_cast %190 : vector<2x32xf32> to vector<2x1x32xf32>
    tpu.vector_store %arg13[%c0_61, %c4, %c0_62], %193 {strides = array<i32>} : memref<2x8x32xf32, #tpu.memory_space<vmem>>, vector<2x1x32xf32>,
    %194 = vector.extract_strided_slice %26 {offsets = [0, 5, 0], sizes = [2, 1, 96], strides = [1, 1, 1]} : vector<2x8x96xf32> to vector<2x1x96xf32>
    %195 = vector.shape_cast %194 : vector<2x1x96xf32> to vector<2x96xf32>
    %196 = arith.truncf %190 : vector<2x32xf32> to vector<2x32xbf16>
    %cst_63 = arith.constant dense<0.000000e+00> : vector<2x96xf32>
    %197 = tpu.matmul %196, %1, %cst_63 {dimension_numbers = #tpu.dot_dimension_numbers<[1], [0], [0], [1], [0, 0, 1, 1], [], []>} : vector<2x32xbf16>, vector<32x96xbf16>, vector<2x96xf32> -> vector<2x96xf32>
    %198 = vector.extract_strided_slice %195 {offsets = [0, 0], sizes = [2, 64], strides = [1, 1]} : vector<2x96xf32> to vector<2x64xf32>
    %199 = vector.extract_strided_slice %197 {offsets = [0, 0], sizes = [2, 64], strides = [1, 1]} : vector<2x96xf32> to vector<2x64xf32>
    %200 = arith.addf %198, %199 : vector<2x64xf32>
    %201 = vector.broadcast %6 : vector<1x64xf32> to vector<2x64xf32>
    %202 = arith.addf %200, %201 : vector<2x64xf32>
    %203 = arith.negf %202 : vector<2x64xf32>
    %204 = math.exp %203 : vector<2x64xf32>
    %cst_64 = arith.constant 1.000000e+00 : f32
    %205 = vector.broadcast %cst_64 : f32 to vector<2x64xf32>
    %206 = arith.addf %205, %204 : vector<2x64xf32>
    %207 = arith.divf %205, %206 : vector<2x64xf32>
    %208 = vector.extract_strided_slice %207 {offsets = [0, 0], sizes = [2, 32], strides = [1, 1]} : vector<2x64xf32> to vector<2x32xf32>
    %209 = vector.extract_strided_slice %207 {offsets = [0, 32], sizes = [2, 32], strides = [1, 1]} : vector<2x64xf32> to vector<2x32xf32>
    %210 = vector.extract_strided_slice %195 {offsets = [0, 64], sizes = [2, 32], strides = [1, 1]} : vector<2x96xf32> to vector<2x32xf32>
    %211 = vector.extract_strided_slice %197 {offsets = [0, 64], sizes = [2, 32], strides = [1, 1]} : vector<2x96xf32> to vector<2x32xf32>
    %212 = vector.broadcast %12 : vector<1x32xf32> to vector<2x32xf32>
    %213 = arith.addf %211, %212 : vector<2x32xf32>
    %214 = arith.mulf %208, %213 : vector<2x32xf32>
    %215 = arith.addf %210, %214 : vector<2x32xf32>
    %216 = math.tanh %215 : vector<2x32xf32>
    %cst_65 = arith.constant 1.000000e+00 : f32
    %217 = vector.broadcast %cst_65 : f32 to vector<2x32xf32>
    %218 = arith.subf %217, %209 : vector<2x32xf32>
    %219 = arith.mulf %218, %216 : vector<2x32xf32>
    %220 = arith.mulf %209, %190 : vector<2x32xf32>
    %221 = arith.addf %219, %220 : vector<2x32xf32>
    %c0_66 = arith.constant 0 : index
    %c5 = arith.constant 5 : index
    %c0_67 = arith.constant 0 : index
    %222 = vector.load %arg13[%c0_66, %c5, %c0_67] : memref<2x8x32xf32, #tpu.memory_space<vmem>>, vector<2x1x32xf32>
    %223 = vector.shape_cast %222 : vector<2x1x32xf32> to vector<2x32xf32>
    %224 = vector.shape_cast %221 : vector<2x32xf32> to vector<2x1x32xf32>
    tpu.vector_store %arg13[%c0_66, %c5, %c0_67], %224 {strides = array<i32>} : memref<2x8x32xf32, #tpu.memory_space<vmem>>, vector<2x1x32xf32>,
    %225 = vector.extract_strided_slice %26 {offsets = [0, 6, 0], sizes = [2, 1, 96], strides = [1, 1, 1]} : vector<2x8x96xf32> to vector<2x1x96xf32>
    %226 = vector.shape_cast %225 : vector<2x1x96xf32> to vector<2x96xf32>
    %227 = arith.truncf %221 : vector<2x32xf32> to vector<2x32xbf16>
    %cst_68 = arith.constant dense<0.000000e+00> : vector<2x96xf32>
    %228 = tpu.matmul %227, %1, %cst_68 {dimension_numbers = #tpu.dot_dimension_numbers<[1], [0], [0], [1], [0, 0, 1, 1], [], []>} : vector<2x32xbf16>, vector<32x96xbf16>, vector<2x96xf32> -> vector<2x96xf32>
    %229 = vector.extract_strided_slice %226 {offsets = [0, 0], sizes = [2, 64], strides = [1, 1]} : vector<2x96xf32> to vector<2x64xf32>
    %230 = vector.extract_strided_slice %228 {offsets = [0, 0], sizes = [2, 64], strides = [1, 1]} : vector<2x96xf32> to vector<2x64xf32>
    %231 = arith.addf %229, %230 : vector<2x64xf32>
    %232 = vector.broadcast %6 : vector<1x64xf32> to vector<2x64xf32>
    %233 = arith.addf %231, %232 : vector<2x64xf32>
    %234 = arith.negf %233 : vector<2x64xf32>
    %235 = math.exp %234 : vector<2x64xf32>
    %cst_69 = arith.constant 1.000000e+00 : f32
    %236 = vector.broadcast %cst_69 : f32 to vector<2x64xf32>
    %237 = arith.addf %236, %235 : vector<2x64xf32>
    %238 = arith.divf %236, %237 : vector<2x64xf32>
    %239 = vector.extract_strided_slice %238 {offsets = [0, 0], sizes = [2, 32], strides = [1, 1]} : vector<2x64xf32> to vector<2x32xf32>
    %240 = vector.extract_strided_slice %238 {offsets = [0, 32], sizes = [2, 32], strides = [1, 1]} : vector<2x64xf32> to vector<2x32xf32>
    %241 = vector.extract_strided_slice %226 {offsets = [0, 64], sizes = [2, 32], strides = [1, 1]} : vector<2x96xf32> to vector<2x32xf32>
    %242 = vector.extract_strided_slice %228 {offsets = [0, 64], sizes = [2, 32], strides = [1, 1]} : vector<2x96xf32> to vector<2x32xf32>
    %243 = vector.broadcast %12 : vector<1x32xf32> to vector<2x32xf32>
    %244 = arith.addf %242, %243 : vector<2x32xf32>
    %245 = arith.mulf %239, %244 : vector<2x32xf32>
    %246 = arith.addf %241, %245 : vector<2x32xf32>
    %247 = math.tanh %246 : vector<2x32xf32>
    %cst_70 = arith.constant 1.000000e+00 : f32
    %248 = vector.broadcast %cst_70 : f32 to vector<2x32xf32>
    %249 = arith.subf %248, %240 : vector<2x32xf32>
    %250 = arith.mulf %249, %247 : vector<2x32xf32>
    %251 = arith.mulf %240, %221 : vector<2x32xf32>
    %252 = arith.addf %250, %251 : vector<2x32xf32>
    %c0_71 = arith.constant 0 : index
    %c6 = arith.constant 6 : index
    %c0_72 = arith.constant 0 : index
    %253 = vector.load %arg13[%c0_71, %c6, %c0_72] : memref<2x8x32xf32, #tpu.memory_space<vmem>>, vector<2x1x32xf32>
    %254 = vector.shape_cast %253 : vector<2x1x32xf32> to vector<2x32xf32>
    %255 = vector.shape_cast %252 : vector<2x32xf32> to vector<2x1x32xf32>
    tpu.vector_store %arg13[%c0_71, %c6, %c0_72], %255 {strides = array<i32>} : memref<2x8x32xf32, #tpu.memory_space<vmem>>, vector<2x1x32xf32>,
    %256 = vector.extract_strided_slice %26 {offsets = [0, 7, 0], sizes = [2, 1, 96], strides = [1, 1, 1]} : vector<2x8x96xf32> to vector<2x1x96xf32>
    %257 = vector.shape_cast %256 : vector<2x1x96xf32> to vector<2x96xf32>
    %258 = arith.truncf %252 : vector<2x32xf32> to vector<2x32xbf16>
    %cst_73 = arith.constant dense<0.000000e+00> : vector<2x96xf32>
    %259 = tpu.matmul %258, %1, %cst_73 {dimension_numbers = #tpu.dot_dimension_numbers<[1], [0], [0], [1], [0, 0, 1, 1], [], []>} : vector<2x32xbf16>, vector<32x96xbf16>, vector<2x96xf32> -> vector<2x96xf32>
    %260 = vector.extract_strided_slice %257 {offsets = [0, 0], sizes = [2, 64], strides = [1, 1]} : vector<2x96xf32> to vector<2x64xf32>
    %261 = vector.extract_strided_slice %259 {offsets = [0, 0], sizes = [2, 64], strides = [1, 1]} : vector<2x96xf32> to vector<2x64xf32>
    %262 = arith.addf %260, %261 : vector<2x64xf32>
    %263 = vector.broadcast %6 : vector<1x64xf32> to vector<2x64xf32>
    %264 = arith.addf %262, %263 : vector<2x64xf32>
    %265 = arith.negf %264 : vector<2x64xf32>
    %266 = math.exp %265 : vector<2x64xf32>
    %cst_74 = arith.constant 1.000000e+00 : f32
    %267 = vector.broadcast %cst_74 : f32 to vector<2x64xf32>
    %268 = arith.addf %267, %266 : vector<2x64xf32>
    %269 = arith.divf %267, %268 : vector<2x64xf32>
    %270 = vector.extract_strided_slice %269 {offsets = [0, 0], sizes = [2, 32], strides = [1, 1]} : vector<2x64xf32> to vector<2x32xf32>
    %271 = vector.extract_strided_slice %269 {offsets = [0, 32], sizes = [2, 32], strides = [1, 1]} : vector<2x64xf32> to vector<2x32xf32>
    %272 = vector.extract_strided_slice %257 {offsets = [0, 64], sizes = [2, 32], strides = [1, 1]} : vector<2x96xf32> to vector<2x32xf32>
    %273 = vector.extract_strided_slice %259 {offsets = [0, 64], sizes = [2, 32], strides = [1, 1]} : vector<2x96xf32> to vector<2x32xf32>
    %274 = vector.broadcast %12 : vector<1x32xf32> to vector<2x32xf32>
    %275 = arith.addf %273, %274 : vector<2x32xf32>
    %276 = arith.mulf %270, %275 : vector<2x32xf32>
    %277 = arith.addf %272, %276 : vector<2x32xf32>
    %278 = math.tanh %277 : vector<2x32xf32>
    %cst_75 = arith.constant 1.000000e+00 : f32
    %279 = vector.broadcast %cst_75 : f32 to vector<2x32xf32>
    %280 = arith.subf %279, %271 : vector<2x32xf32>
    %281 = arith.mulf %280, %278 : vector<2x32xf32>
    %282 = arith.mulf %271, %252 : vector<2x32xf32>
    %283 = arith.addf %281, %282 : vector<2x32xf32>
    %c0_76 = arith.constant 0 : index
    %c7 = arith.constant 7 : index
    %c0_77 = arith.constant 0 : index
    %284 = vector.load %arg13[%c0_76, %c7, %c0_77] : memref<2x8x32xf32, #tpu.memory_space<vmem>>, vector<2x1x32xf32>
    %285 = vector.shape_cast %284 : vector<2x1x32xf32> to vector<2x32xf32>
    %286 = vector.shape_cast %283 : vector<2x32xf32> to vector<2x1x32xf32>
    tpu.vector_store %arg13[%c0_76, %c7, %c0_77], %286 {strides = array<i32>} : memref<2x8x32xf32, #tpu.memory_space<vmem>>, vector<2x1x32xf32>,
    %287 = vector.extract_strided_slice %37 {offsets = [0, 0, 0], sizes = [2, 1, 96], strides = [1, 1, 1]} : vector<2x8x96xf32> to vector<2x1x96xf32>
    %288 = vector.shape_cast %287 : vector<2x1x96xf32> to vector<2x96xf32>
    %289 = arith.truncf %283 : vector<2x32xf32> to vector<2x32xbf16>
    %cst_78 = arith.constant dense<0.000000e+00> : vector<2x96xf32>
    %290 = tpu.matmul %289, %3, %cst_78 {dimension_numbers = #tpu.dot_dimension_numbers<[1], [0], [0], [1], [0, 0, 1, 1], [], []>} : vector<2x32xbf16>, vector<32x96xbf16>, vector<2x96xf32> -> vector<2x96xf32>
    %291 = vector.extract_strided_slice %288 {offsets = [0, 0], sizes = [2, 64], strides = [1, 1]} : vector<2x96xf32> to vector<2x64xf32>
    %292 = vector.extract_strided_slice %290 {offsets = [0, 0], sizes = [2, 64], strides = [1, 1]} : vector<2x96xf32> to vector<2x64xf32>
    %293 = arith.addf %291, %292 : vector<2x64xf32>
    %294 = vector.broadcast %9 : vector<1x64xf32> to vector<2x64xf32>
    %295 = arith.addf %293, %294 : vector<2x64xf32>
    %296 = arith.negf %295 : vector<2x64xf32>
    %297 = math.exp %296 : vector<2x64xf32>
    %cst_79 = arith.constant 1.000000e+00 : f32
    %298 = vector.broadcast %cst_79 : f32 to vector<2x64xf32>
    %299 = arith.addf %298, %297 : vector<2x64xf32>
    %300 = arith.divf %298, %299 : vector<2x64xf32>
    %301 = vector.extract_strided_slice %300 {offsets = [0, 0], sizes = [2, 32], strides = [1, 1]} : vector<2x64xf32> to vector<2x32xf32>
    %302 = vector.extract_strided_slice %300 {offsets = [0, 32], sizes = [2, 32], strides = [1, 1]} : vector<2x64xf32> to vector<2x32xf32>
    %303 = vector.extract_strided_slice %288 {offsets = [0, 64], sizes = [2, 32], strides = [1, 1]} : vector<2x96xf32> to vector<2x32xf32>
    %304 = vector.extract_strided_slice %290 {offsets = [0, 64], sizes = [2, 32], strides = [1, 1]} : vector<2x96xf32> to vector<2x32xf32>
    %305 = vector.broadcast %15 : vector<1x32xf32> to vector<2x32xf32>
    %306 = arith.addf %304, %305 : vector<2x32xf32>
    %307 = arith.mulf %301, %306 : vector<2x32xf32>
    %308 = arith.addf %303, %307 : vector<2x32xf32>
    %309 = math.tanh %308 : vector<2x32xf32>
    %cst_80 = arith.constant 1.000000e+00 : f32
    %310 = vector.broadcast %cst_80 : f32 to vector<2x32xf32>
    %311 = arith.subf %310, %302 : vector<2x32xf32>
    %312 = arith.mulf %311, %309 : vector<2x32xf32>
    %313 = arith.mulf %302, %283 : vector<2x32xf32>
    %314 = arith.addf %312, %313 : vector<2x32xf32>
    %c0_81 = arith.constant 0 : index
    %c0_82 = arith.constant 0 : index
    %c0_83 = arith.constant 0 : index
    %315 = vector.load %arg14[%c0_81, %c0_82, %c0_83] : memref<2x8x32xf32, #tpu.memory_space<vmem>>, vector<2x1x32xf32>
    %316 = vector.shape_cast %315 : vector<2x1x32xf32> to vector<2x32xf32>
    %317 = vector.shape_cast %314 : vector<2x32xf32> to vector<2x1x32xf32>
    tpu.vector_store %arg14[%c0_81, %c0_82, %c0_83], %317 {strides = array<i32>} : memref<2x8x32xf32, #tpu.memory_space<vmem>>, vector<2x1x32xf32>,
    %318 = vector.extract_strided_slice %37 {offsets = [0, 1, 0], sizes = [2, 1, 96], strides = [1, 1, 1]} : vector<2x8x96xf32> to vector<2x1x96xf32>
    %319 = vector.shape_cast %318 : vector<2x1x96xf32> to vector<2x96xf32>
    %320 = arith.truncf %314 : vector<2x32xf32> to vector<2x32xbf16>
    %cst_84 = arith.constant dense<0.000000e+00> : vector<2x96xf32>
    %321 = tpu.matmul %320, %3, %cst_84 {dimension_numbers = #tpu.dot_dimension_numbers<[1], [0], [0], [1], [0, 0, 1, 1], [], []>} : vector<2x32xbf16>, vector<32x96xbf16>, vector<2x96xf32> -> vector<2x96xf32>
    %322 = vector.extract_strided_slice %319 {offsets = [0, 0], sizes = [2, 64], strides = [1, 1]} : vector<2x96xf32> to vector<2x64xf32>
    %323 = vector.extract_strided_slice %321 {offsets = [0, 0], sizes = [2, 64], strides = [1, 1]} : vector<2x96xf32> to vector<2x64xf32>
    %324 = arith.addf %322, %323 : vector<2x64xf32>
    %325 = vector.broadcast %9 : vector<1x64xf32> to vector<2x64xf32>
    %326 = arith.addf %324, %325 : vector<2x64xf32>
    %327 = arith.negf %326 : vector<2x64xf32>
    %328 = math.exp %327 : vector<2x64xf32>
    %cst_85 = arith.constant 1.000000e+00 : f32
    %329 = vector.broadcast %cst_85 : f32 to vector<2x64xf32>
    %330 = arith.addf %329, %328 : vector<2x64xf32>
    %331 = arith.divf %329, %330 : vector<2x64xf32>
    %332 = vector.extract_strided_slice %331 {offsets = [0, 0], sizes = [2, 32], strides = [1, 1]} : vector<2x64xf32> to vector<2x32xf32>
    %333 = vector.extract_strided_slice %331 {offsets = [0, 32], sizes = [2, 32], strides = [1, 1]} : vector<2x64xf32> to vector<2x32xf32>
    %334 = vector.extract_strided_slice %319 {offsets = [0, 64], sizes = [2, 32], strides = [1, 1]} : vector<2x96xf32> to vector<2x32xf32>
    %335 = vector.extract_strided_slice %321 {offsets = [0, 64], sizes = [2, 32], strides = [1, 1]} : vector<2x96xf32> to vector<2x32xf32>
    %336 = vector.broadcast %15 : vector<1x32xf32> to vector<2x32xf32>
    %337 = arith.addf %335, %336 : vector<2x32xf32>
    %338 = arith.mulf %332, %337 : vector<2x32xf32>
    %339 = arith.addf %334, %338 : vector<2x32xf32>
    %340 = math.tanh %339 : vector<2x32xf32>
    %cst_86 = arith.constant 1.000000e+00 : f32
    %341 = vector.broadcast %cst_86 : f32 to vector<2x32xf32>
    %342 = arith.subf %341, %333 : vector<2x32xf32>
    %343 = arith.mulf %342, %340 : vector<2x32xf32>
    %344 = arith.mulf %333, %314 : vector<2x32xf32>
    %345 = arith.addf %343, %344 : vector<2x32xf32>
    %c0_87 = arith.constant 0 : index
    %c1_88 = arith.constant 1 : index
    %c0_89 = arith.constant 0 : index
    %346 = vector.load %arg14[%c0_87, %c1_88, %c0_89] : memref<2x8x32xf32, #tpu.memory_space<vmem>>, vector<2x1x32xf32>
    %347 = vector.shape_cast %346 : vector<2x1x32xf32> to vector<2x32xf32>
    %348 = vector.shape_cast %345 : vector<2x32xf32> to vector<2x1x32xf32>
    tpu.vector_store %arg14[%c0_87, %c1_88, %c0_89], %348 {strides = array<i32>} : memref<2x8x32xf32, #tpu.memory_space<vmem>>, vector<2x1x32xf32>,
    %349 = vector.extract_strided_slice %37 {offsets = [0, 2, 0], sizes = [2, 1, 96], strides = [1, 1, 1]} : vector<2x8x96xf32> to vector<2x1x96xf32>
    %350 = vector.shape_cast %349 : vector<2x1x96xf32> to vector<2x96xf32>
    %351 = arith.truncf %345 : vector<2x32xf32> to vector<2x32xbf16>
    %cst_90 = arith.constant dense<0.000000e+00> : vector<2x96xf32>
    %352 = tpu.matmul %351, %3, %cst_90 {dimension_numbers = #tpu.dot_dimension_numbers<[1], [0], [0], [1], [0, 0, 1, 1], [], []>} : vector<2x32xbf16>, vector<32x96xbf16>, vector<2x96xf32> -> vector<2x96xf32>
    %353 = vector.extract_strided_slice %350 {offsets = [0, 0], sizes = [2, 64], strides = [1, 1]} : vector<2x96xf32> to vector<2x64xf32>
    %354 = vector.extract_strided_slice %352 {offsets = [0, 0], sizes = [2, 64], strides = [1, 1]} : vector<2x96xf32> to vector<2x64xf32>
    %355 = arith.addf %353, %354 : vector<2x64xf32>
    %356 = vector.broadcast %9 : vector<1x64xf32> to vector<2x64xf32>
    %357 = arith.addf %355, %356 : vector<2x64xf32>
    %358 = arith.negf %357 : vector<2x64xf32>
    %359 = math.exp %358 : vector<2x64xf32>
    %cst_91 = arith.constant 1.000000e+00 : f32
    %360 = vector.broadcast %cst_91 : f32 to vector<2x64xf32>
    %361 = arith.addf %360, %359 : vector<2x64xf32>
    %362 = arith.divf %360, %361 : vector<2x64xf32>
    %363 = vector.extract_strided_slice %362 {offsets = [0, 0], sizes = [2, 32], strides = [1, 1]} : vector<2x64xf32> to vector<2x32xf32>
    %364 = vector.extract_strided_slice %362 {offsets = [0, 32], sizes = [2, 32], strides = [1, 1]} : vector<2x64xf32> to vector<2x32xf32>
    %365 = vector.extract_strided_slice %350 {offsets = [0, 64], sizes = [2, 32], strides = [1, 1]} : vector<2x96xf32> to vector<2x32xf32>
    %366 = vector.extract_strided_slice %352 {offsets = [0, 64], sizes = [2, 32], strides = [1, 1]} : vector<2x96xf32> to vector<2x32xf32>
    %367 = vector.broadcast %15 : vector<1x32xf32> to vector<2x32xf32>
    %368 = arith.addf %366, %367 : vector<2x32xf32>
    %369 = arith.mulf %363, %368 : vector<2x32xf32>
    %370 = arith.addf %365, %369 : vector<2x32xf32>
    %371 = math.tanh %370 : vector<2x32xf32>
    %cst_92 = arith.constant 1.000000e+00 : f32
    %372 = vector.broadcast %cst_92 : f32 to vector<2x32xf32>
    %373 = arith.subf %372, %364 : vector<2x32xf32>
    %374 = arith.mulf %373, %371 : vector<2x32xf32>
    %375 = arith.mulf %364, %345 : vector<2x32xf32>
    %376 = arith.addf %374, %375 : vector<2x32xf32>
    %c0_93 = arith.constant 0 : index
    %c2_94 = arith.constant 2 : index
    %c0_95 = arith.constant 0 : index
    %377 = vector.load %arg14[%c0_93, %c2_94, %c0_95] : memref<2x8x32xf32, #tpu.memory_space<vmem>>, vector<2x1x32xf32>
    %378 = vector.shape_cast %377 : vector<2x1x32xf32> to vector<2x32xf32>
    %379 = vector.shape_cast %376 : vector<2x32xf32> to vector<2x1x32xf32>
    tpu.vector_store %arg14[%c0_93, %c2_94, %c0_95], %379 {strides = array<i32>} : memref<2x8x32xf32, #tpu.memory_space<vmem>>, vector<2x1x32xf32>,
    %380 = vector.extract_strided_slice %37 {offsets = [0, 3, 0], sizes = [2, 1, 96], strides = [1, 1, 1]} : vector<2x8x96xf32> to vector<2x1x96xf32>
    %381 = vector.shape_cast %380 : vector<2x1x96xf32> to vector<2x96xf32>
    %382 = arith.truncf %376 : vector<2x32xf32> to vector<2x32xbf16>
    %cst_96 = arith.constant dense<0.000000e+00> : vector<2x96xf32>
    %383 = tpu.matmul %382, %3, %cst_96 {dimension_numbers = #tpu.dot_dimension_numbers<[1], [0], [0], [1], [0, 0, 1, 1], [], []>} : vector<2x32xbf16>, vector<32x96xbf16>, vector<2x96xf32> -> vector<2x96xf32>
    %384 = vector.extract_strided_slice %381 {offsets = [0, 0], sizes = [2, 64], strides = [1, 1]} : vector<2x96xf32> to vector<2x64xf32>
    %385 = vector.extract_strided_slice %383 {offsets = [0, 0], sizes = [2, 64], strides = [1, 1]} : vector<2x96xf32> to vector<2x64xf32>
    %386 = arith.addf %384, %385 : vector<2x64xf32>
    %387 = vector.broadcast %9 : vector<1x64xf32> to vector<2x64xf32>
    %388 = arith.addf %386, %387 : vector<2x64xf32>
    %389 = arith.negf %388 : vector<2x64xf32>
    %390 = math.exp %389 : vector<2x64xf32>
    %cst_97 = arith.constant 1.000000e+00 : f32
    %391 = vector.broadcast %cst_97 : f32 to vector<2x64xf32>
    %392 = arith.addf %391, %390 : vector<2x64xf32>
    %393 = arith.divf %391, %392 : vector<2x64xf32>
    %394 = vector.extract_strided_slice %393 {offsets = [0, 0], sizes = [2, 32], strides = [1, 1]} : vector<2x64xf32> to vector<2x32xf32>
    %395 = vector.extract_strided_slice %393 {offsets = [0, 32], sizes = [2, 32], strides = [1, 1]} : vector<2x64xf32> to vector<2x32xf32>
    %396 = vector.extract_strided_slice %381 {offsets = [0, 64], sizes = [2, 32], strides = [1, 1]} : vector<2x96xf32> to vector<2x32xf32>
    %397 = vector.extract_strided_slice %383 {offsets = [0, 64], sizes = [2, 32], strides = [1, 1]} : vector<2x96xf32> to vector<2x32xf32>
    %398 = vector.broadcast %15 : vector<1x32xf32> to vector<2x32xf32>
    %399 = arith.addf %397, %398 : vector<2x32xf32>
    %400 = arith.mulf %394, %399 : vector<2x32xf32>
    %401 = arith.addf %396, %400 : vector<2x32xf32>
    %402 = math.tanh %401 : vector<2x32xf32>
    %cst_98 = arith.constant 1.000000e+00 : f32
    %403 = vector.broadcast %cst_98 : f32 to vector<2x32xf32>
    %404 = arith.subf %403, %395 : vector<2x32xf32>
    %405 = arith.mulf %404, %402 : vector<2x32xf32>
    %406 = arith.mulf %395, %376 : vector<2x32xf32>
    %407 = arith.addf %405, %406 : vector<2x32xf32>
    %c0_99 = arith.constant 0 : index
    %c3_100 = arith.constant 3 : index
    %c0_101 = arith.constant 0 : index
    %408 = vector.load %arg14[%c0_99, %c3_100, %c0_101] : memref<2x8x32xf32, #tpu.memory_space<vmem>>, vector<2x1x32xf32>
    %409 = vector.shape_cast %408 : vector<2x1x32xf32> to vector<2x32xf32>
    %410 = vector.shape_cast %407 : vector<2x32xf32> to vector<2x1x32xf32>
    tpu.vector_store %arg14[%c0_99, %c3_100, %c0_101], %410 {strides = array<i32>} : memref<2x8x32xf32, #tpu.memory_space<vmem>>, vector<2x1x32xf32>,
    %411 = vector.extract_strided_slice %37 {offsets = [0, 4, 0], sizes = [2, 1, 96], strides = [1, 1, 1]} : vector<2x8x96xf32> to vector<2x1x96xf32>
    %412 = vector.shape_cast %411 : vector<2x1x96xf32> to vector<2x96xf32>
    %413 = arith.truncf %407 : vector<2x32xf32> to vector<2x32xbf16>
    %cst_102 = arith.constant dense<0.000000e+00> : vector<2x96xf32>
    %414 = tpu.matmul %413, %3, %cst_102 {dimension_numbers = #tpu.dot_dimension_numbers<[1], [0], [0], [1], [0, 0, 1, 1], [], []>} : vector<2x32xbf16>, vector<32x96xbf16>, vector<2x96xf32> -> vector<2x96xf32>
    %415 = vector.extract_strided_slice %412 {offsets = [0, 0], sizes = [2, 64], strides = [1, 1]} : vector<2x96xf32> to vector<2x64xf32>
    %416 = vector.extract_strided_slice %414 {offsets = [0, 0], sizes = [2, 64], strides = [1, 1]} : vector<2x96xf32> to vector<2x64xf32>
    %417 = arith.addf %415, %416 : vector<2x64xf32>
    %418 = vector.broadcast %9 : vector<1x64xf32> to vector<2x64xf32>
    %419 = arith.addf %417, %418 : vector<2x64xf32>
    %420 = arith.negf %419 : vector<2x64xf32>
    %421 = math.exp %420 : vector<2x64xf32>
    %cst_103 = arith.constant 1.000000e+00 : f32
    %422 = vector.broadcast %cst_103 : f32 to vector<2x64xf32>
    %423 = arith.addf %422, %421 : vector<2x64xf32>
    %424 = arith.divf %422, %423 : vector<2x64xf32>
    %425 = vector.extract_strided_slice %424 {offsets = [0, 0], sizes = [2, 32], strides = [1, 1]} : vector<2x64xf32> to vector<2x32xf32>
    %426 = vector.extract_strided_slice %424 {offsets = [0, 32], sizes = [2, 32], strides = [1, 1]} : vector<2x64xf32> to vector<2x32xf32>
    %427 = vector.extract_strided_slice %412 {offsets = [0, 64], sizes = [2, 32], strides = [1, 1]} : vector<2x96xf32> to vector<2x32xf32>
    %428 = vector.extract_strided_slice %414 {offsets = [0, 64], sizes = [2, 32], strides = [1, 1]} : vector<2x96xf32> to vector<2x32xf32>
    %429 = vector.broadcast %15 : vector<1x32xf32> to vector<2x32xf32>
    %430 = arith.addf %428, %429 : vector<2x32xf32>
    %431 = arith.mulf %425, %430 : vector<2x32xf32>
    %432 = arith.addf %427, %431 : vector<2x32xf32>
    %433 = math.tanh %432 : vector<2x32xf32>
    %cst_104 = arith.constant 1.000000e+00 : f32
    %434 = vector.broadcast %cst_104 : f32 to vector<2x32xf32>
    %435 = arith.subf %434, %426 : vector<2x32xf32>
    %436 = arith.mulf %435, %433 : vector<2x32xf32>
    %437 = arith.mulf %426, %407 : vector<2x32xf32>
    %438 = arith.addf %436, %437 : vector<2x32xf32>
    %c0_105 = arith.constant 0 : index
    %c4_106 = arith.constant 4 : index
    %c0_107 = arith.constant 0 : index
    %439 = vector.load %arg14[%c0_105, %c4_106, %c0_107] : memref<2x8x32xf32, #tpu.memory_space<vmem>>, vector<2x1x32xf32>
    %440 = vector.shape_cast %439 : vector<2x1x32xf32> to vector<2x32xf32>
    %441 = vector.shape_cast %438 : vector<2x32xf32> to vector<2x1x32xf32>
    tpu.vector_store %arg14[%c0_105, %c4_106, %c0_107], %441 {strides = array<i32>} : memref<2x8x32xf32, #tpu.memory_space<vmem>>, vector<2x1x32xf32>,
    %442 = vector.extract_strided_slice %37 {offsets = [0, 5, 0], sizes = [2, 1, 96], strides = [1, 1, 1]} : vector<2x8x96xf32> to vector<2x1x96xf32>
    %443 = vector.shape_cast %442 : vector<2x1x96xf32> to vector<2x96xf32>
    %444 = arith.truncf %438 : vector<2x32xf32> to vector<2x32xbf16>
    %cst_108 = arith.constant dense<0.000000e+00> : vector<2x96xf32>
    %445 = tpu.matmul %444, %3, %cst_108 {dimension_numbers = #tpu.dot_dimension_numbers<[1], [0], [0], [1], [0, 0, 1, 1], [], []>} : vector<2x32xbf16>, vector<32x96xbf16>, vector<2x96xf32> -> vector<2x96xf32>
    %446 = vector.extract_strided_slice %443 {offsets = [0, 0], sizes = [2, 64], strides = [1, 1]} : vector<2x96xf32> to vector<2x64xf32>
    %447 = vector.extract_strided_slice %445 {offsets = [0, 0], sizes = [2, 64], strides = [1, 1]} : vector<2x96xf32> to vector<2x64xf32>
    %448 = arith.addf %446, %447 : vector<2x64xf32>
    %449 = vector.broadcast %9 : vector<1x64xf32> to vector<2x64xf32>
    %450 = arith.addf %448, %449 : vector<2x64xf32>
    %451 = arith.negf %450 : vector<2x64xf32>
    %452 = math.exp %451 : vector<2x64xf32>
    %cst_109 = arith.constant 1.000000e+00 : f32
    %453 = vector.broadcast %cst_109 : f32 to vector<2x64xf32>
    %454 = arith.addf %453, %452 : vector<2x64xf32>
    %455 = arith.divf %453, %454 : vector<2x64xf32>
    %456 = vector.extract_strided_slice %455 {offsets = [0, 0], sizes = [2, 32], strides = [1, 1]} : vector<2x64xf32> to vector<2x32xf32>
    %457 = vector.extract_strided_slice %455 {offsets = [0, 32], sizes = [2, 32], strides = [1, 1]} : vector<2x64xf32> to vector<2x32xf32>
    %458 = vector.extract_strided_slice %443 {offsets = [0, 64], sizes = [2, 32], strides = [1, 1]} : vector<2x96xf32> to vector<2x32xf32>
    %459 = vector.extract_strided_slice %445 {offsets = [0, 64], sizes = [2, 32], strides = [1, 1]} : vector<2x96xf32> to vector<2x32xf32>
    %460 = vector.broadcast %15 : vector<1x32xf32> to vector<2x32xf32>
    %461 = arith.addf %459, %460 : vector<2x32xf32>
    %462 = arith.mulf %456, %461 : vector<2x32xf32>
    %463 = arith.addf %458, %462 : vector<2x32xf32>
    %464 = math.tanh %463 : vector<2x32xf32>
    %cst_110 = arith.constant 1.000000e+00 : f32
    %465 = vector.broadcast %cst_110 : f32 to vector<2x32xf32>
    %466 = arith.subf %465, %457 : vector<2x32xf32>
    %467 = arith.mulf %466, %464 : vector<2x32xf32>
    %468 = arith.mulf %457, %438 : vector<2x32xf32>
    %469 = arith.addf %467, %468 : vector<2x32xf32>
    %c0_111 = arith.constant 0 : index
    %c5_112 = arith.constant 5 : index
    %c0_113 = arith.constant 0 : index
    %470 = vector.load %arg14[%c0_111, %c5_112, %c0_113] : memref<2x8x32xf32, #tpu.memory_space<vmem>>, vector<2x1x32xf32>
    %471 = vector.shape_cast %470 : vector<2x1x32xf32> to vector<2x32xf32>
    %472 = vector.shape_cast %469 : vector<2x32xf32> to vector<2x1x32xf32>
    tpu.vector_store %arg14[%c0_111, %c5_112, %c0_113], %472 {strides = array<i32>} : memref<2x8x32xf32, #tpu.memory_space<vmem>>, vector<2x1x32xf32>,
    %473 = vector.extract_strided_slice %37 {offsets = [0, 6, 0], sizes = [2, 1, 96], strides = [1, 1, 1]} : vector<2x8x96xf32> to vector<2x1x96xf32>
    %474 = vector.shape_cast %473 : vector<2x1x96xf32> to vector<2x96xf32>
    %475 = arith.truncf %469 : vector<2x32xf32> to vector<2x32xbf16>
    %cst_114 = arith.constant dense<0.000000e+00> : vector<2x96xf32>
    %476 = tpu.matmul %475, %3, %cst_114 {dimension_numbers = #tpu.dot_dimension_numbers<[1], [0], [0], [1], [0, 0, 1, 1], [], []>} : vector<2x32xbf16>, vector<32x96xbf16>, vector<2x96xf32> -> vector<2x96xf32>
    %477 = vector.extract_strided_slice %474 {offsets = [0, 0], sizes = [2, 64], strides = [1, 1]} : vector<2x96xf32> to vector<2x64xf32>
    %478 = vector.extract_strided_slice %476 {offsets = [0, 0], sizes = [2, 64], strides = [1, 1]} : vector<2x96xf32> to vector<2x64xf32>
    %479 = arith.addf %477, %478 : vector<2x64xf32>
    %480 = vector.broadcast %9 : vector<1x64xf32> to vector<2x64xf32>
    %481 = arith.addf %479, %480 : vector<2x64xf32>
    %482 = arith.negf %481 : vector<2x64xf32>
    %483 = math.exp %482 : vector<2x64xf32>
    %cst_115 = arith.constant 1.000000e+00 : f32
    %484 = vector.broadcast %cst_115 : f32 to vector<2x64xf32>
    %485 = arith.addf %484, %483 : vector<2x64xf32>
    %486 = arith.divf %484, %485 : vector<2x64xf32>
    %487 = vector.extract_strided_slice %486 {offsets = [0, 0], sizes = [2, 32], strides = [1, 1]} : vector<2x64xf32> to vector<2x32xf32>
    %488 = vector.extract_strided_slice %486 {offsets = [0, 32], sizes = [2, 32], strides = [1, 1]} : vector<2x64xf32> to vector<2x32xf32>
    %489 = vector.extract_strided_slice %474 {offsets = [0, 64], sizes = [2, 32], strides = [1, 1]} : vector<2x96xf32> to vector<2x32xf32>
    %490 = vector.extract_strided_slice %476 {offsets = [0, 64], sizes = [2, 32], strides = [1, 1]} : vector<2x96xf32> to vector<2x32xf32>
    %491 = vector.broadcast %15 : vector<1x32xf32> to vector<2x32xf32>
    %492 = arith.addf %490, %491 : vector<2x32xf32>
    %493 = arith.mulf %487, %492 : vector<2x32xf32>
    %494 = arith.addf %489, %493 : vector<2x32xf32>
    %495 = math.tanh %494 : vector<2x32xf32>
    %cst_116 = arith.constant 1.000000e+00 : f32
    %496 = vector.broadcast %cst_116 : f32 to vector<2x32xf32>
    %497 = arith.subf %496, %488 : vector<2x32xf32>
    %498 = arith.mulf %497, %495 : vector<2x32xf32>
    %499 = arith.mulf %488, %469 : vector<2x32xf32>
    %500 = arith.addf %498, %499 : vector<2x32xf32>
    %c0_117 = arith.constant 0 : index
    %c6_118 = arith.constant 6 : index
    %c0_119 = arith.constant 0 : index
    %501 = vector.load %arg14[%c0_117, %c6_118, %c0_119] : memref<2x8x32xf32, #tpu.memory_space<vmem>>, vector<2x1x32xf32>
    %502 = vector.shape_cast %501 : vector<2x1x32xf32> to vector<2x32xf32>
    %503 = vector.shape_cast %500 : vector<2x32xf32> to vector<2x1x32xf32>
    tpu.vector_store %arg14[%c0_117, %c6_118, %c0_119], %503 {strides = array<i32>} : memref<2x8x32xf32, #tpu.memory_space<vmem>>, vector<2x1x32xf32>,
    %504 = vector.extract_strided_slice %37 {offsets = [0, 7, 0], sizes = [2, 1, 96], strides = [1, 1, 1]} : vector<2x8x96xf32> to vector<2x1x96xf32>
    %505 = vector.shape_cast %504 : vector<2x1x96xf32> to vector<2x96xf32>
    %506 = arith.truncf %500 : vector<2x32xf32> to vector<2x32xbf16>
    %cst_120 = arith.constant dense<0.000000e+00> : vector<2x96xf32>
    %507 = tpu.matmul %506, %3, %cst_120 {dimension_numbers = #tpu.dot_dimension_numbers<[1], [0], [0], [1], [0, 0, 1, 1], [], []>} : vector<2x32xbf16>, vector<32x96xbf16>, vector<2x96xf32> -> vector<2x96xf32>
    %508 = vector.extract_strided_slice %505 {offsets = [0, 0], sizes = [2, 64], strides = [1, 1]} : vector<2x96xf32> to vector<2x64xf32>
    %509 = vector.extract_strided_slice %507 {offsets = [0, 0], sizes = [2, 64], strides = [1, 1]} : vector<2x96xf32> to vector<2x64xf32>
    %510 = arith.addf %508, %509 : vector<2x64xf32>
    %511 = vector.broadcast %9 : vector<1x64xf32> to vector<2x64xf32>
    %512 = arith.addf %510, %511 : vector<2x64xf32>
    %513 = arith.negf %512 : vector<2x64xf32>
    %514 = math.exp %513 : vector<2x64xf32>
    %cst_121 = arith.constant 1.000000e+00 : f32
    %515 = vector.broadcast %cst_121 : f32 to vector<2x64xf32>
    %516 = arith.addf %515, %514 : vector<2x64xf32>
    %517 = arith.divf %515, %516 : vector<2x64xf32>
    %518 = vector.extract_strided_slice %517 {offsets = [0, 0], sizes = [2, 32], strides = [1, 1]} : vector<2x64xf32> to vector<2x32xf32>
    %519 = vector.extract_strided_slice %517 {offsets = [0, 32], sizes = [2, 32], strides = [1, 1]} : vector<2x64xf32> to vector<2x32xf32>
    %520 = vector.extract_strided_slice %505 {offsets = [0, 64], sizes = [2, 32], strides = [1, 1]} : vector<2x96xf32> to vector<2x32xf32>
    %521 = vector.extract_strided_slice %507 {offsets = [0, 64], sizes = [2, 32], strides = [1, 1]} : vector<2x96xf32> to vector<2x32xf32>
    %522 = vector.broadcast %15 : vector<1x32xf32> to vector<2x32xf32>
    %523 = arith.addf %521, %522 : vector<2x32xf32>
    %524 = arith.mulf %518, %523 : vector<2x32xf32>
    %525 = arith.addf %520, %524 : vector<2x32xf32>
    %526 = math.tanh %525 : vector<2x32xf32>
    %cst_122 = arith.constant 1.000000e+00 : f32
    %527 = vector.broadcast %cst_122 : f32 to vector<2x32xf32>
    %528 = arith.subf %527, %519 : vector<2x32xf32>
    %529 = arith.mulf %528, %526 : vector<2x32xf32>
    %530 = arith.mulf %519, %500 : vector<2x32xf32>
    %531 = arith.addf %529, %530 : vector<2x32xf32>
    %c0_123 = arith.constant 0 : index
    %c7_124 = arith.constant 7 : index
    %c0_125 = arith.constant 0 : index
    %532 = vector.load %arg14[%c0_123, %c7_124, %c0_125] : memref<2x8x32xf32, #tpu.memory_space<vmem>>, vector<2x1x32xf32>
    %533 = vector.shape_cast %532 : vector<2x1x32xf32> to vector<2x32xf32>
    %534 = vector.shape_cast %531 : vector<2x32xf32> to vector<2x1x32xf32>
    tpu.vector_store %arg14[%c0_123, %c7_124, %c0_125], %534 {strides = array<i32>} : memref<2x8x32xf32, #tpu.memory_space<vmem>>, vector<2x1x32xf32>,
    %c0_126 = arith.constant 0 : index
    %c0_127 = arith.constant 0 : index
    %c0_128 = arith.constant 0 : index
    %535 = vector.load %arg13[%c0_126, %c0_127, %c0_128] : memref<2x8x32xf32, #tpu.memory_space<vmem>>, vector<2x8x32xf32>
    %536 = arith.truncf %535 : vector<2x8x32xf32> to vector<2x8x32xbf16>
    %c0_129 = arith.constant 0 : index
    %c0_130 = arith.constant 0 : index
    %c0_131 = arith.constant 0 : index
    %537 = vector.load %arg14[%c0_129, %c0_130, %c0_131] : memref<2x8x32xf32, #tpu.memory_space<vmem>>, vector<2x8x32xf32>
    %538 = arith.truncf %537 : vector<2x8x32xf32> to vector<2x8x32xbf16>
    %539 = vector.shape_cast %535 : vector<2x8x32xf32> to vector<16x32xf32>
    %540 = arith.truncf %539 : vector<16x32xf32> to vector<16x32xbf16>
    %c0_132 = arith.constant 0 : index
    %c0_133 = arith.constant 0 : index
    %541 = vector.load %arg7[%c0_132, %c0_133] : memref<32x32xbf16, #tpu.memory_space<vmem>>, vector<32x32xbf16>
    %cst_134 = arith.constant dense<0.000000e+00> : vector<16x32xf32>
    %542 = tpu.matmul %540, %541, %cst_134 {dimension_numbers = #tpu.dot_dimension_numbers<[1], [0], [0], [1], [0, 0, 1, 1], [], []>} : vector<16x32xbf16>, vector<32x32xbf16>, vector<16x32xf32> -> vector<16x32xf32>
    %c0_135 = arith.constant 0 : index
    %c0_136 = arith.constant 0 : index
    %543 = vector.load %arg8[%c0_135, %c0_136] : memref<1x32xf32, #tpu.memory_space<vmem>>, vector<1x32xf32>
    %544 = vector.broadcast %543 : vector<1x32xf32> to vector<16x32xf32>
    %545 = arith.addf %542, %544 : vector<16x32xf32>
    %546 = vector.shape_cast %545 : vector<16x32xf32> to vector<2x8x32xf32>
    %547 = arith.truncf %546 : vector<2x8x32xf32> to vector<2x8x32xbf16>
    "tpu.trace_start"() <{level = 10 : i32, message = "bth,bsh->bts"}> : () -> ()
    %cst_137 = arith.constant dense<0.000000e+00> : vector<2x8x8xf32>
    %548 = tpu.matmul %538, %547, %cst_137 {dimension_numbers = #tpu.dot_dimension_numbers<[2], [2], [1], [1], [0, 0, 0, 1, 1, 1], [0], [0]>} : vector<2x8x32xbf16>, vector<2x8x32xbf16>, vector<2x8x8xf32> -> vector<2x8x8xf32>
    "tpu.trace_stop"() : () -> ()
    %cst_138 = arith.constant dense<0xFF800000> : vector<2x8xf32>
    %549 = vector.multi_reduction <maximumf>, %548, %cst_138 [2] : vector<2x8x8xf32> to vector<2x8xf32>
    %550 = vector.shape_cast %549 : vector<2x8xf32> to vector<2x8x1xf32>
    %551 = vector.broadcast %550 : vector<2x8x1xf32> to vector<2x8x8xf32>
    %552 = arith.subf %548, %551 : vector<2x8x8xf32>
    %553 = math.exp %552 : vector<2x8x8xf32>
    %cst_139 = arith.constant dense<0.000000e+00> : vector<2x8xf32>
    %554 = vector.multi_reduction <add>, %553, %cst_139 [2] : vector<2x8x8xf32> to vector<2x8xf32>
    %555 = vector.shape_cast %554 : vector<2x8xf32> to vector<2x8x1xf32>
    %556 = vector.broadcast %555 : vector<2x8x1xf32> to vector<2x8x8xf32>
    %557 = arith.divf %553, %556 : vector<2x8x8xf32>
    %558 = arith.truncf %557 : vector<2x8x8xf32> to vector<2x8x8xbf16>
    "tpu.trace_start"() <{level = 10 : i32, message = "bts,bsh->bth"}> : () -> ()
    %cst_140 = arith.constant dense<0.000000e+00> : vector<2x8x32xf32>
    %559 = tpu.matmul %558, %536, %cst_140 {dimension_numbers = #tpu.dot_dimension_numbers<[2], [1], [1], [2], [0, 0, 0, 1, 1, 2], [0], [0]>} : vector<2x8x8xbf16>, vector<2x8x32xbf16>, vector<2x8x32xf32> -> vector<2x8x32xf32>
    %cst_141 = arith.constant 0.000000e+00 : f32
    "tpu.trace_stop"() : () -> ()
    %560 = vector.broadcast %cst_141 : f32 to vector<2x8x128xf32>
    %c0_142 = arith.constant 0 : index
    %c0_143 = arith.constant 0 : index
    %c0_144 = arith.constant 0 : index
    %561 = vector.load %arg12[%c0_142, %c0_143, %c0_144] : memref<2x8x128xf32, #tpu.memory_space<vmem>>, vector<2x8x128xf32>
    tpu.vector_store %arg12[%c0_142, %c0_143, %c0_144], %560 {strides = array<i32>} : memref<2x8x128xf32, #tpu.memory_space<vmem>>, vector<2x8x128xf32>,
    %c0_145 = arith.constant 0 : index
    %c0_146 = arith.constant 0 : index
    %c0_147 = arith.constant 0 : index
    %562 = vector.load %arg12[%c0_145, %c0_146, %c0_147] : memref<2x8x128xf32, #tpu.memory_space<vmem>>, vector<2x8x8xf32>
    tpu.vector_store %arg12[%c0_145, %c0_146, %c0_147], %557 {strides = array<i32>} : memref<2x8x128xf32, #tpu.memory_space<vmem>>, vector<2x8x8xf32>,
    %563 = vector.shape_cast %537 : vector<2x8x32xf32> to vector<16x32xf32>
    %564 = arith.truncf %563 : vector<16x32xf32> to vector<16x32xbf16>
    %c0_148 = arith.constant 0 : index
    %c0_149 = arith.constant 0 : index
    %c0_150 = arith.constant 0 : index
    %565 = vector.load %arg9[%c0_148, %c0_149, %c0_150] : memref<2x32x256xbf16, #tpu.memory_space<vmem>>, vector<1x32x256xbf16>
    %566 = vector.shape_cast %565 : vector<1x32x256xbf16> to vector<32x256xbf16>
    %cst_151 = arith.constant dense<0.000000e+00> : vector<16x256xf32>
    %567 = tpu.matmul %564, %566, %cst_151 {dimension_numbers = #tpu.dot_dimension_numbers<[1], [0], [0], [1], [0, 0, 1, 1], [], []>} : vector<16x32xbf16>, vector<32x256xbf16>, vector<16x256xf32> -> vector<16x256xf32>
    %568 = vector.shape_cast %559 : vector<2x8x32xf32> to vector<16x32xf32>
    %569 = arith.truncf %568 : vector<16x32xf32> to vector<16x32xbf16>
    %c1_152 = arith.constant 1 : index
    %c0_153 = arith.constant 0 : index
    %c0_154 = arith.constant 0 : index
    %570 = vector.load %arg9[%c1_152, %c0_153, %c0_154] : memref<2x32x256xbf16, #tpu.memory_space<vmem>>, vector<1x32x256xbf16>
    %571 = vector.shape_cast %570 : vector<1x32x256xbf16> to vector<32x256xbf16>
    %cst_155 = arith.constant dense<0.000000e+00> : vector<16x256xf32>
    %572 = tpu.matmul %569, %571, %cst_155 {dimension_numbers = #tpu.dot_dimension_numbers<[1], [0], [0], [1], [0, 0, 1, 1], [], []>} : vector<16x32xbf16>, vector<32x256xbf16>, vector<16x256xf32> -> vector<16x256xf32>
    %573 = arith.addf %567, %572 : vector<16x256xf32>
    %c0_156 = arith.constant 0 : index
    %c0_157 = arith.constant 0 : index
    %574 = vector.load %arg10[%c0_156, %c0_157] : memref<1x256xf32, #tpu.memory_space<vmem>>, vector<1x256xf32>
    %575 = vector.broadcast %574 : vector<1x256xf32> to vector<16x256xf32>
    %576 = arith.addf %573, %575 : vector<16x256xf32>
    %577 = vector.shape_cast %576 : vector<16x256xf32> to vector<2x8x256xf32>
    %c0_158 = arith.constant 0 : index
    %c0_159 = arith.constant 0 : index
    %c0_160 = arith.constant 0 : index
    %578 = vector.load %arg11[%c0_158, %c0_159, %c0_160] : memref<2x8x256xf32, #tpu.memory_space<vmem>>, vector<2x8x256xf32>
    tpu.vector_store %arg11[%c0_158, %c0_159, %c0_160], %577 {strides = array<i32>} : memref<2x8x256xf32, #tpu.memory_space<vmem>>, vector<2x8x256xf32>,
    return
  }
  func.func @transform_0(%arg0: i32) -> (i32, i32, i32) {
    %c0_i32 = arith.constant 0 : i32
    %c0_i32_0 = arith.constant 0 : i32
    %c0_i32_1 = arith.constant 0 : i32
    return %arg0, %c0_i32, %c0_i32_0 : i32, i32, i32
  }
  func.func @transform_1(%arg0: i32) -> (i32, i32, i32) {
    %c0_i32 = arith.constant 0 : i32
    %c0_i32_0 = arith.constant 0 : i32
    %c0_i32_1 = arith.constant 0 : i32
    return %arg0, %c0_i32, %c0_i32_0 : i32, i32, i32
  }
  func.func @transform_2(%arg0: i32) -> (i32, i32, i32) {
    %c0_i32 = arith.constant 0 : i32
    %c0_i32_0 = arith.constant 0 : i32
    %c0_i32_1 = arith.constant 0 : i32
    %c0_i32_2 = arith.constant 0 : i32
    return %c0_i32, %c0_i32_0, %c0_i32_1 : i32, i32, i32
  }
  func.func @transform_3(%arg0: i32) -> (i32, i32, i32) {
    %c0_i32 = arith.constant 0 : i32
    %c0_i32_0 = arith.constant 0 : i32
    %c0_i32_1 = arith.constant 0 : i32
    %c0_i32_2 = arith.constant 0 : i32
    return %c0_i32, %c0_i32_0, %c0_i32_1 : i32, i32, i32
  }
  func.func @transform_4(%arg0: i32) -> (i32, i32, i32) {
    %c0_i32 = arith.constant 0 : i32
    %c0_i32_0 = arith.constant 0 : i32
    %c0_i32_1 = arith.constant 0 : i32
    %c0_i32_2 = arith.constant 0 : i32
    return %c0_i32, %c0_i32_0, %c0_i32_1 : i32, i32, i32
  }
  func.func @transform_5(%arg0: i32) -> (i32, i32, i32) {
    %c0_i32 = arith.constant 0 : i32
    %c0_i32_0 = arith.constant 0 : i32
    %c0_i32_1 = arith.constant 0 : i32
    %c0_i32_2 = arith.constant 0 : i32
    return %c0_i32, %c0_i32_0, %c0_i32_1 : i32, i32, i32
  }
  func.func @transform_6(%arg0: i32) -> (i32, i32) {
    %c0_i32 = arith.constant 0 : i32
    %c0_i32_0 = arith.constant 0 : i32
    %c0_i32_1 = arith.constant 0 : i32
    return %c0_i32, %c0_i32_0 : i32, i32
  }
  func.func @transform_7(%arg0: i32) -> (i32, i32) {
    %c0_i32 = arith.constant 0 : i32
    %c0_i32_0 = arith.constant 0 : i32
    %c0_i32_1 = arith.constant 0 : i32
    return %c0_i32, %c0_i32_0 : i32, i32
  }
  func.func @transform_8(%arg0: i32) -> (i32, i32, i32) {
    %c0_i32 = arith.constant 0 : i32
    %c0_i32_0 = arith.constant 0 : i32
    %c0_i32_1 = arith.constant 0 : i32
    %c0_i32_2 = arith.constant 0 : i32
    return %c0_i32, %c0_i32_0, %c0_i32_1 : i32, i32, i32
  }
  func.func @transform_9(%arg0: i32) -> (i32, i32) {
    %c0_i32 = arith.constant 0 : i32
    %c0_i32_0 = arith.constant 0 : i32
    %c0_i32_1 = arith.constant 0 : i32
    return %c0_i32, %c0_i32_0 : i32, i32
  }
  func.func @transform_10(%arg0: i32) -> (i32, i32, i32) {
    %c0_i32 = arith.constant 0 : i32
    %c0_i32_0 = arith.constant 0 : i32
    %c0_i32_1 = arith.constant 0 : i32
    return %arg0, %c0_i32, %c0_i32_0 : i32, i32, i32
  }
  func.func @transform_11(%arg0: i32) -> (i32, i32, i32) {
    %c0_i32 = arith.constant 0 : i32
    %c0_i32_0 = arith.constant 0 : i32
    %c0_i32_1 = arith.constant 0 : i32
    return %arg0, %c0_i32, %c0_i32_0 : i32, i32, i32
  }
}

</mosaic_0001>

<llo_original>
// kernel: seq2seq_attn_forward.1
$region0: #{seq2seq_attn_forward.1}
  #allocation0 [shape = 'u32[]', space=smem, size = 0x4, offset = 0x4, fixed_abs, tag = 'smem constant byte address 0x4 - core index']
  #allocation1 [shape = 'u32[144,128]{1,0:T(1,128)}', space=vmem, size = 0x12000, scoped, tag = 'internal scratch']
  #allocation2 [shape = 'f32[2,8,32]{2,1,0:T(8,128)}', space=vmem, size = 0x2000, scoped, tag = 'scratch operand']
  #allocation3 [shape = 'f32[2,8,32]{2,1,0:T(8,128)}', space=vmem, size = 0x2000, scoped, tag = 'scratch operand']
  %s0 = inlined_call_operand.vmem [shape: f32[4,8,32], index: 0, kind: input, shape index: {}]
  %s1 = inlined_call_operand.vmem [shape: f32[4,8,32], index: 1, kind: input, shape index: {}]
  %s2 = inlined_call_operand.vmem [shape: bf16[2,32,96], index: 2, kind: input, shape index: {}]
  %s3 = inlined_call_operand.vmem [shape: bf16[2,32,96], index: 3, kind: input, shape index: {}]
  %s4 = inlined_call_operand.vmem [shape: f32[2,1,96], index: 4, kind: input, shape index: {}]
  %s5 = inlined_call_operand.vmem [shape: f32[2,1,96], index: 5, kind: input, shape index: {}]
  %s6 = inlined_call_operand.vmem [shape: bf16[32,32], index: 6, kind: input, shape index: {}]
  %s7 = inlined_call_operand.vmem [shape: f32[1,32], index: 7, kind: input, shape index: {}]
  %s8 = inlined_call_operand.vmem [shape: bf16[2,32,256], index: 8, kind: input, shape index: {}]
  %s9 = inlined_call_operand.vmem [shape: f32[1,256], index: 9, kind: input, shape index: {}]
  %s10 = inlined_call_operand.hbm [shape: f32[4,8,256], index: 10, kind: output, shape index: {0}]
  %s11 = inlined_call_operand.hbm [shape: f32[4,8,128], index: 11, kind: output, shape index: {1}]
  %12 = xla_tuple %s10, %s11
  %s13 = sld [smem:[#allocation0]]
  $region81: #{seq2seq_attn_forward.1} parent=0
    _
  %s15 = ssub.s32 1, %s13
  %s16 = scalar_select 0, %s15, %s13
  $region1: #{seq2seq_attn_forward.1} parent=0
    #allocation4 [shape = 'u8[32768]{0}', space=vmem, size = 0x8000, scoped, tag = 'output window, operand 0']
    #allocation5 [shape = 's32[2]{0}', space=sflag, size = 0x8, scoped, tag = 'scoped memory for seq2seq_attn_forward.1']
    #allocation6 [shape = 'u8[16384]{0}', space=vmem, size = 0x4000, scoped, tag = 'output window, operand 1']
    #allocation7 [shape = 's32[2]{0}', space=sflag, size = 0x8, scoped, tag = 'scoped memory for seq2seq_attn_forward.1']
    %17 = vsyncpa [#allocation5], 0
    %s18 = scalar_lea.sflag [#allocation5], 1
    %19 = vsyncpa %s18, 0
    %20 = vsyncpa [#allocation7], 0
    %s21 = scalar_lea.sflag [#allocation7], 1
    %22 = vsyncpa %s21, 0
    loop: start=0, step=1, limit=4
    $region2: #{seq2seq_attn_forward.1} parent=1 // loop_pre_header
      _
    $region3: #{seq2seq_attn_forward.1} parent=1 // loop_header
      %s24 = sphi 0, %s28
      %p25 = scmp.ge.s32.totalorder %s24, 4
      %s34 = sphi 0, %s36
      %s37 = sphi 0, %s34
      %s38 = sphi 0, %s37
      %s54 = sphi 0, %s38
      %s60 = sphi 0, %s62
      %s63 = sphi 0, %s60
      %s64 = sphi 0, %s63
      %s80 = sphi 0, %s64
      %s84 = sphi 0, %s84
      %s86 = sphi 0, %s84
      %s87 = sphi 0, %s86
      %s101 = sphi 0, %s87
      %s105 = sphi 0, %s105
      %s107 = sphi 0, %s105
      %s108 = sphi 0, %s107
      %s122 = sphi 0, %s108
      %s126 = sphi 0, %s126
      %s128 = sphi 0, %s126
      %s129 = sphi 0, %s128
      %s143 = sphi 0, %s129
      %s147 = sphi 0, %s147
      %s149 = sphi 0, %s147
      %s150 = sphi 0, %s149
      %s164 = sphi 0, %s150
      %s168 = sphi 0, %s168
      %s170 = sphi 0, %s168
      %s171 = sphi 0, %s170
      %s185 = sphi 0, %s171
      %s189 = sphi 0, %s189
      %s191 = sphi 0, %s189
      %s192 = sphi 0, %s191
      %s206 = sphi 0, %s192
      %s210 = sphi 0, %s210
      %s212 = sphi 0, %s210
      %s213 = sphi 0, %s212
      %s227 = sphi 0, %s213
      %s231 = sphi 0, %s231
      %s233 = sphi 0, %s231
      %s234 = sphi 0, %s233
      %s248 = sphi 0, %s234
      %s254 = sphi 0, %s256
      %s257 = sphi 0, %s254
      %s258 = sphi 0, %s257
      %s274 = sphi 0, %s258
      %s280 = sphi 0, %s282
      %s283 = sphi 0, %s280
      %s284 = sphi 0, %s283
      %s300 = sphi 0, %s284
    $region4: #{seq2seq_attn_forward.1} parent=1 // loop_header_branch
      %27 = sbr.rel (%p25) target = $region8
    $region5: #{seq2seq_attn_forward.1} parent=1 // loop_body
      %s29 = ssub.s32 %s24, 1
      %s30 = ssub.s32 %s24, 2
      %s31 = sadd.s32 %s24, 1
      %s32 = ssub.s32 %s24, %s31
      %p33 = scmp.eq.s32.totalorder %s32, 0
      %s35 = sadd.s32 %s34, 1
      %s36 = scalar_select %p33, %s34, %s35
      %p39 = pneg %p33
      %p40 = scmp.eq.s32.totalorder %s24, 1
      %p41 = por %p39, %p40
      %p42 = scmp.ne.s32.totalorder %s34, %s37
      %p43 = scmp.eq.s32.totalorder %s24, 0
      %p44 = por %p42, %p43
      %p45 = scmp.ne.s32.totalorder %s34, %s37
      %p46 = scmp.eq.s32.totalorder %s29, 1
      %p47 = por %p45, %p46
      %p48 = scmp.ne.s32.totalorder %s37, %s38
      %p49 = scmp.eq.s32.totalorder %s29, 0
      %p50 = por %p48, %p49
      %p51 = scmp.ne.s32.totalorder %s37, %s38
      %p52 = scmp.eq.s32.totalorder %s30, 1
      %p53 = por %p51, %p52
      %p55 = scmp.ne.s32.totalorder %s38, %s54
      %p56 = scmp.eq.s32.totalorder %s30, 0
      %p57 = por %p55, %p56
      %s58 = ssub.s32 %s24, %s31
      %p59 = scmp.eq.s32.totalorder %s58, 0
      %s61 = sadd.s32 %s60, 1
      %s62 = scalar_select %p59, %s60, %s61
      %p65 = pneg %p59
      %p66 = scmp.eq.s32.totalorder %s24, 1
      %p67 = por %p65, %p66
      %p68 = scmp.ne.s32.totalorder %s60, %s63
      %p69 = scmp.eq.s32.totalorder %s24, 0
      %p70 = por %p68, %p69
      %p71 = scmp.ne.s32.totalorder %s60, %s63
      %p72 = scmp.eq.s32.totalorder %s29, 1
      %p73 = por %p71, %p72
      %p74 = scmp.ne.s32.totalorder %s63, %s64
      %p75 = scmp.eq.s32.totalorder %s29, 0
      %p76 = por %p74, %p75
      %p77 = scmp.ne.s32.totalorder %s63, %s64
      %p78 = scmp.eq.s32.totalorder %s30, 1
      %p79 = por %p77, %p78
      %p81 = scmp.ne.s32.totalorder %s64, %s80
      %p82 = scmp.eq.s32.totalorder %s30, 0
      %p83 = por %p81, %p82
      %s85 = sadd.s32 %s84, 1
      %p88 = scmp.eq.s32.totalorder %s24, 1
      %p89 = scmp.ne.s32.totalorder %s84, %s86
      %p90 = scmp.eq.s32.totalorder %s24, 0
      %p91 = por %p89, %p90
      %p92 = scmp.ne.s32.totalorder %s84, %s86
      %p93 = scmp.eq.s32.totalorder %s29, 1
      %p94 = por %p92, %p93
      %p95 = scmp.ne.s32.totalorder %s86, %s87
      %p96 = scmp.eq.s32.totalorder %s29, 0
      %p97 = por %p95, %p96
      %p98 = scmp.ne.s32.totalorder %s86, %s87
      %p99 = scmp.eq.s32.totalorder %s30, 1
      %p100 = por %p98, %p99
      %p102 = scmp.ne.s32.totalorder %s87, %s101
      %p103 = scmp.eq.s32.totalorder %s30, 0
      %p104 = por %p102, %p103
      %s106 = sadd.s32 %s105, 1
      %p109 = scmp.eq.s32.totalorder %s24, 1
      %p110 = scmp.ne.s32.totalorder %s105, %s107
      %p111 = scmp.eq.s32.totalorder %s24, 0
      %p112 = por %p110, %p111
      %p113 = scmp.ne.s32.totalorder %s105, %s107
      %p114 = scmp.eq.s32.totalorder %s29, 1
      %p115 = por %p113, %p114
      %p116 = scmp.ne.s32.totalorder %s107, %s108
      %p117 = scmp.eq.s32.totalorder %s29, 0
      %p118 = por %p116, %p117
      %p119 = scmp.ne.s32.totalorder %s107, %s108
      %p120 = scmp.eq.s32.totalorder %s30, 1
      %p121 = por %p119, %p120
      %p123 = scmp.ne.s32.totalorder %s108, %s122
      %p124 = scmp.eq.s32.totalorder %s30, 0
      %p125 = por %p123, %p124
      %s127 = sadd.s32 %s126, 1
      %p130 = scmp.eq.s32.totalorder %s24, 1
      %p131 = scmp.ne.s32.totalorder %s126, %s128
      %p132 = scmp.eq.s32.totalorder %s24, 0
      %p133 = por %p131, %p132
      %p134 = scmp.ne.s32.totalorder %s126, %s128
      %p135 = scmp.eq.s32.totalorder %s29, 1
      %p136 = por %p134, %p135
      %p137 = scmp.ne.s32.totalorder %s128, %s129
      %p138 = scmp.eq.s32.totalorder %s29, 0
      %p139 = por %p137, %p138
      %p140 = scmp.ne.s32.totalorder %s128, %s129
      %p141 = scmp.eq.s32.totalorder %s30, 1
      %p142 = por %p140, %p141
      %p144 = scmp.ne.s32.totalorder %s129, %s143
      %p145 = scmp.eq.s32.totalorder %s30, 0
      %p146 = por %p144, %p145
      %s148 = sadd.s32 %s147, 1
      %p151 = scmp.eq.s32.totalorder %s24, 1
      %p152 = scmp.ne.s32.totalorder %s147, %s149
      %p153 = scmp.eq.s32.totalorder %s24, 0
      %p154 = por %p152, %p153
      %p155 = scmp.ne.s32.totalorder %s147, %s149
      %p156 = scmp.eq.s32.totalorder %s29, 1
      %p157 = por %p155, %p156
      %p158 = scmp.ne.s32.totalorder %s149, %s150
      %p159 = scmp.eq.s32.totalorder %s29, 0
      %p160 = por %p158, %p159
      %p161 = scmp.ne.s32.totalorder %s149, %s150
      %p162 = scmp.eq.s32.totalorder %s30, 1
      %p163 = por %p161, %p162
      %p165 = scmp.ne.s32.totalorder %s150, %s164
      %p166 = scmp.eq.s32.totalorder %s30, 0
      %p167 = por %p165, %p166
      %s169 = sadd.s32 %s168, 1
      %p172 = scmp.eq.s32.totalorder %s24, 1
      %p173 = scmp.ne.s32.totalorder %s168, %s170
      %p174 = scmp.eq.s32.totalorder %s24, 0
      %p175 = por %p173, %p174
      %p176 = scmp.ne.s32.totalorder %s168, %s170
      %p177 = scmp.eq.s32.totalorder %s29, 1
      %p178 = por %p176, %p177
      %p179 = scmp.ne.s32.totalorder %s170, %s171
      %p180 = scmp.eq.s32.totalorder %s29, 0
      %p181 = por %p179, %p180
      %p182 = scmp.ne.s32.totalorder %s170, %s171
      %p183 = scmp.eq.s32.totalorder %s30, 1
      %p184 = por %p182, %p183
      %p186 = scmp.ne.s32.totalorder %s171, %s185
      %p187 = scmp.eq.s32.totalorder %s30, 0
      %p188 = por %p186, %p187
      %s190 = sadd.s32 %s189, 1
      %p193 = scmp.eq.s32.totalorder %s24, 1
      %p194 = scmp.ne.s32.totalorder %s189, %s191
      %p195 = scmp.eq.s32.totalorder %s24, 0
      %p196 = por %p194, %p195
      %p197 = scmp.ne.s32.totalorder %s189, %s191
      %p198 = scmp.eq.s32.totalorder %s29, 1
      %p199 = por %p197, %p198
      %p200 = scmp.ne.s32.totalorder %s191, %s192
      %p201 = scmp.eq.s32.totalorder %s29, 0
      %p202 = por %p200, %p201
      %p203 = scmp.ne.s32.totalorder %s191, %s192
      %p204 = scmp.eq.s32.totalorder %s30, 1
      %p205 = por %p203, %p204
      %p207 = scmp.ne.s32.totalorder %s192, %s206
      %p208 = scmp.eq.s32.totalorder %s30, 0
      %p209 = por %p207, %p208
      %s211 = sadd.s32 %s210, 1
      %p214 = scmp.eq.s32.totalorder %s24, 1
      %p215 = scmp.ne.s32.totalorder %s210, %s212
      %p216 = scmp.eq.s32.totalorder %s24, 0
      %p217 = por %p215, %p216
      %p218 = scmp.ne.s32.totalorder %s210, %s212
      %p219 = scmp.eq.s32.totalorder %s29, 1
      %p220 = por %p218, %p219
      %p221 = scmp.ne.s32.totalorder %s212, %s213
      %p222 = scmp.eq.s32.totalorder %s29, 0
      %p223 = por %p221, %p222
      %p224 = scmp.ne.s32.totalorder %s212, %s213
      %p225 = scmp.eq.s32.totalorder %s30, 1
      %p226 = por %p224, %p225
      %p228 = scmp.ne.s32.totalorder %s213, %s227
      %p229 = scmp.eq.s32.totalorder %s30, 0
      %p230 = por %p228, %p229
      %s232 = sadd.s32 %s231, 1
      %p235 = scmp.eq.s32.totalorder %s24, 1
      %p236 = scmp.ne.s32.totalorder %s231, %s233
      %p237 = scmp.eq.s32.totalorder %s24, 0
      %p238 = por %p236, %p237
      %p239 = scmp.ne.s32.totalorder %s231, %s233
      %p240 = scmp.eq.s32.totalorder %s29, 1
      %p241 = por %p239, %p240
      %p242 = scmp.ne.s32.totalorder %s233, %s234
      %p243 = scmp.eq.s32.totalorder %s29, 0
      %p244 = por %p242, %p243
      %p245 = scmp.ne.s32.totalorder %s233, %s234
      %p246 = scmp.eq.s32.totalorder %s30, 1
      %p247 = por %p245, %p246
      %p249 = scmp.ne.s32.totalorder %s234, %s248
      %p250 = scmp.eq.s32.totalorder %s30, 0
      %p251 = por %p249, %p250
      %s252 = ssub.s32 %s24, %s31
      %p253 = scmp.eq.s32.totalorder %s252, 0
      %s255 = sadd.s32 %s254, 1
      %s256 = scalar_select %p253, %s254, %s255
      %p259 = pneg %p253
      %p260 = scmp.eq.s32.totalorder %s24, 1
      %p261 = por %p259, %p260
      %p262 = scmp.ne.s32.totalorder %s254, %s257
      %p263 = scmp.eq.s32.totalorder %s24, 0
      %p264 = por %p262, %p263
      %p265 = scmp.ne.s32.totalorder %s254, %s257
      %p266 = scmp.eq.s32.totalorder %s29, 1
      %p267 = por %p265, %p266
      %p268 = scmp.ne.s32.totalorder %s257, %s258
      %p269 = scmp.eq.s32.totalorder %s29, 0
      %p270 = por %p268, %p269
      %p271 = scmp.ne.s32.totalorder %s257, %s258
      %p272 = scmp.eq.s32.totalorder %s30, 1
      %p273 = por %p271, %p272
      %p275 = scmp.ne.s32.totalorder %s258, %s274
      %p276 = scmp.eq.s32.totalorder %s30, 0
      %p277 = por %p275, %p276
      %s278 = ssub.s32 %s24, %s31
      %p279 = scmp.eq.s32.totalorder %s278, 0
      %s281 = sadd.s32 %s280, 1
      %s282 = scalar_select %p279, %s280, %s281
      %p285 = pneg %p279
      %p286 = scmp.eq.s32.totalorder %s24, 1
      %p287 = por %p285, %p286
      %p288 = scmp.ne.s32.totalorder %s280, %s283
      %p289 = scmp.eq.s32.totalorder %s24, 0
      %p290 = por %p288, %p289
      %p291 = scmp.ne.s32.totalorder %s280, %s283
      %p292 = scmp.eq.s32.totalorder %s29, 1
      %p293 = por %p291, %p292
      %p294 = scmp.ne.s32.totalorder %s283, %s284
      %p295 = scmp.eq.s32.totalorder %s29, 0
      %p296 = por %p294, %p295
      %p297 = scmp.ne.s32.totalorder %s283, %s284
      %p298 = scmp.eq.s32.totalorder %s30, 1
      %p299 = por %p297, %p298
      %p301 = scmp.ne.s32.totalorder %s284, %s300
      %p302 = scmp.eq.s32.totalorder %s30, 0
      %p303 = por %p301, %p302
      %p304 = scmp.le.s32.totalorder 1, %s24
      %p305 = scmp.lt.s32.totalorder %s24, 3
      %p306 = pnand %p304, %p305
      %p307 = pneg %p306
      // Predicated region
      $region9: #{seq2seq_attn_forward.1} parent=5 // pred_check
        _
      $region10: #{seq2seq_attn_forward.1} parent=5 // pred_check_branch
        %309 = sbr.rel (%p306) target = $region12
      $region11: #{seq2seq_attn_forward.1} parent=5 // pred_region
        %s310 = ssub.s32 %s24, 1
        // Predicated region
        $region13: #{seq2seq_attn_forward.1} parent=11 // pred_check
          %p311 = pneg %p97
        $region14: #{seq2seq_attn_forward.1} parent=11 // pred_check_branch
          %313 = sbr.rel (%p311) target = $region16
        $region15: #{seq2seq_attn_forward.1} parent=11 // pred_region
          _
        $region16: #{seq2seq_attn_forward.1} parent=11 // pred_fallthru
          _
        // Predicated region
        $region17: #{seq2seq_attn_forward.1} parent=11 // pred_check
          %p314 = pneg %p118
        $region18: #{seq2seq_attn_forward.1} parent=11 // pred_check_branch
          %316 = sbr.rel (%p314) target = $region20
        $region19: #{seq2seq_attn_forward.1} parent=11 // pred_region
          _
        $region20: #{seq2seq_attn_forward.1} parent=11 // pred_fallthru
          _
        // Predicated region
        $region21: #{seq2seq_attn_forward.1} parent=11 // pred_check
          %p317 = pneg %p139
        $region22: #{seq2seq_attn_forward.1} parent=11 // pred_check_branch
          %319 = sbr.rel (%p317) target = $region24
        $region23: #{seq2seq_attn_forward.1} parent=11 // pred_region
          _
        $region24: #{seq2seq_attn_forward.1} parent=11 // pred_fallthru
          _
        // Predicated region
        $region25: #{seq2seq_attn_forward.1} parent=11 // pred_check
          %p320 = pneg %p160
        $region26: #{seq2seq_attn_forward.1} parent=11 // pred_check_branch
          %322 = sbr.rel (%p320) target = $region28
        $region27: #{seq2seq_attn_forward.1} parent=11 // pred_region
          _
        $region28: #{seq2seq_attn_forward.1} parent=11 // pred_fallthru
          _
        // Predicated region
        $region29: #{seq2seq_attn_forward.1} parent=11 // pred_check
          %p323 = pneg %p181
        $region30: #{seq2seq_attn_forward.1} parent=11 // pred_check_branch
          %325 = sbr.rel (%p323) target = $region32
        $region31: #{seq2seq_attn_forward.1} parent=11 // pred_region
          _
        $region32: #{seq2seq_attn_forward.1} parent=11 // pred_fallthru
          _
        // Predicated region
        $region33: #{seq2seq_attn_forward.1} parent=11 // pred_check
          %p326 = pneg %p202
        $region34: #{seq2seq_attn_forward.1} parent=11 // pred_check_branch
          %328 = sbr.rel (%p326) target = $region36
        $region35: #{seq2seq_attn_forward.1} parent=11 // pred_region
          _
        $region36: #{seq2seq_attn_forward.1} parent=11 // pred_fallthru
          _
        // Predicated region
        $region37: #{seq2seq_attn_forward.1} parent=11 // pred_check
          %p329 = pneg %p223
        $region38: #{seq2seq_attn_forward.1} parent=11 // pred_check_branch
          %331 = sbr.rel (%p329) target = $region40
        $region39: #{seq2seq_attn_forward.1} parent=11 // pred_region
          _
        $region40: #{seq2seq_attn_forward.1} parent=11 // pred_fallthru
          _
        // Predicated region
        $region41: #{seq2seq_attn_forward.1} parent=11 // pred_check
          %p332 = pneg %p244
        $region42: #{seq2seq_attn_forward.1} parent=11 // pred_check_branch
          %334 = sbr.rel (%p332) target = $region44
        $region43: #{seq2seq_attn_forward.1} parent=11 // pred_region
          _
        $region44: #{seq2seq_attn_forward.1} parent=11 // pred_fallthru
          _
      $region12: #{seq2seq_attn_forward.1} parent=5 // pred_fallthru
        _
      %p335 = scmp.lt.s32.totalorder %s24, 2
      // Predicated region
      $region45: #{seq2seq_attn_forward.1} parent=5 // pred_check
        %p336 = pneg %p335
      $region46: #{seq2seq_attn_forward.1} parent=5 // pred_check_branch
        %338 = sbr.rel (%p336) target = $region48
      $region47: #{seq2seq_attn_forward.1} parent=5 // pred_region
        // Predicated region
        $region49: #{seq2seq_attn_forward.1} parent=47 // pred_check
          %p339 = pneg %p44
        $region50: #{seq2seq_attn_forward.1} parent=47 // pred_check_branch
          %341 = sbr.rel (%p339) target = $region52
        $region51: #{seq2seq_attn_forward.1} parent=47 // pred_region
          %s342 = smul.u32 2, %s24
          %p343 = scmp.lt.s32.totalorder %s342, 3
          %s344 = scalar_select %p343, %s342, 3
          %s345 = smul.addr %s344, 8
          %s346 = scalar_lea.vmem %s0, %s345
          %s347 = smul.u32 2, %s24
        $region52: #{seq2seq_attn_forward.1} parent=47 // pred_fallthru
          _
        // Predicated region
        $region53: #{seq2seq_attn_forward.1} parent=47 // pred_check
          %p348 = pneg %p70
        $region54: #{seq2seq_attn_forward.1} parent=47 // pred_check_branch
          %350 = sbr.rel (%p348) target = $region56
        $region55: #{seq2seq_attn_forward.1} parent=47 // pred_region
          %s351 = smul.u32 2, %s24
          %p352 = scmp.lt.s32.totalorder %s351, 3
          %s353 = scalar_select %p352, %s351, 3
          %s354 = smul.addr %s353, 8
          %s355 = scalar_lea.vmem %s1, %s354
          %s356 = smul.u32 2, %s24
        $region56: #{seq2seq_attn_forward.1} parent=47 // pred_fallthru
          _
      $region48: #{seq2seq_attn_forward.1} parent=5 // pred_fallthru
        _
      %p357 = scmp.le.s32.totalorder 1, %s24
      %p358 = scmp.lt.s32.totalorder %s24, 3
      %p359 = pnand %p357, %p358
      %p360 = pneg %p359
      // Predicated region
      $region57: #{seq2seq_attn_forward.1} parent=5 // pred_check
        _
      $region58: #{seq2seq_attn_forward.1} parent=5 // pred_check_branch
        %362 = sbr.rel (%p359) target = $region60
      $region59: #{seq2seq_attn_forward.1} parent=5 // pred_region
        %s363 = ssub.s32 %s24, 1
        %s364 = smul.u32 2, %s29
        %p365 = scmp.lt.s32.totalorder %s364, 3
        %s366 = scalar_select %p365, %s364, 3
        %s367 = smul.addr %s366, 8
        %s368 = scalar_lea.vmem %s0, %s367
        %p369 = pneg %p50
        %p370 = pneg %p47
        %s371 = smul.u32 2, %s29
        %p372 = scmp.lt.s32.totalorder %s371, 3
        %s373 = scalar_select %p372, %s371, 3
        %s374 = smul.addr %s373, 8
        %s375 = scalar_lea.vmem %s1, %s374
        %p376 = pneg %p76
        %p377 = pneg %p73
        %p378 = pneg %p97
        %p379 = pneg %p94
        %p380 = pneg %p118
        %p381 = pneg %p115
        %p382 = pneg %p139
        %p383 = pneg %p136
        %p384 = pneg %p160
        %p385 = pneg %p157
        %p386 = pneg %p181
        %p387 = pneg %p178
        %p388 = pneg %p202
        %p389 = pneg %p199
        %p390 = pneg %p223
        %p391 = pneg %p220
        %p392 = pneg %p244
        %p393 = pneg %p241
        %p394 = pneg %p270
        %p395 = pneg %p267
        %s396 = sand.u32 %s257, 1
        %s397 = scalar_lea.sflag [#allocation5], %s396
        %s398 = sand.u32 %s257, 1
        %s399 = smul.addr %s398, 32
        %s400 = scalar_lea.vmem [#allocation4], %s399
        %p401 = pneg %p296
        %p402 = pneg %p293
        %s403 = sand.u32 %s283, 1
        %s404 = scalar_lea.sflag [#allocation7], %s403
        %s405 = sand.u32 %s283, 1
        %s406 = smul.addr %s405, 16
        %s407 = scalar_lea.vmem [#allocation6], %s406
        %s408 = smul.u32 2, %s29
        %p409 = scmp.lt.s32.totalorder %s408, 3
        %s410 = scalar_select %p409, %s408, 3
        %s411 = smul.addr %s410, 8
        %s412 = scalar_lea.vmem %s0, %s411
        %s413 = smul.u32 2, %s29
        %s414 = smul.u32 2, %s29
        %p415 = scmp.lt.s32.totalorder %s414, 3
        %s416 = scalar_select %p415, %s414, 3
        %s417 = smul.addr %s416, 8
        %s418 = scalar_lea.vmem %s1, %s417
        %s419 = smul.u32 2, %s29
        %s420 = smul.u32 2, %s29
        %s421 = smul.u32 2, %s29
        %v423 = vld [vmem:[%s3] sm:$0xf]
        %v424 = vld [vmem:[%s3 + $0x4] sm:$0xf]
        %v425 = vld [vmem:[%s3 + $0x8] sm:$0xf]
        %v426 = vld [vmem:[%s3 + $0xc] sm:$0xf]
        %s427 = scalar_lea.vmem %s3, 16
        %v428 = vld [vmem:[%s427] sm:$0xf]
        %v429 = vld [vmem:[%s427 + $0x4] sm:$0xf]
        %v430 = vld [vmem:[%s427 + $0x8] sm:$0xf]
        %v431 = vld [vmem:[%s427 + $0xc] sm:$0xf]
        %v432 = vld [vmem:[%s5] sm:$0x1]
        %s433 = scalar_lea.vmem %s5, 1
        %v434 = vld [vmem:[%s433] sm:$0x1]
        %v435 = vld [vmem:[%s412] sm:$0xff]
        %v436 = vld [vmem:[%s412 + $0x8] sm:$0xff]
        %v437 = vpack.c.bf16 %v436, %v435
        %v438 = vld [vmem:[%s2] sm:$0xf]
        %v439 = vld [vmem:[%s2 + $0x4] sm:$0xf]
        %v440 = vld [vmem:[%s2 + $0x8] sm:$0xf]
        %v441 = vld [vmem:[%s2 + $0xc] sm:$0xf]
        %v442 = vld [vmem:[%s4] sm:$0x1]
        %v444 = vlaneseq
        %v445 = vshrl.u32 %v444, 7
        %v446 = vsub.s32 0, %v445
        %v447 = vrot.slane %v442, %v446
        %v453 = vunpack.c.l.b16 %v438
        %v454 = vunpack.c.l.b16 %v439
        %v455 = vunpack.c.l.b16 %v440
        %v456 = vunpack.c.l.b16 %v441
        %v457 = vpack.c.b16 %v454, %v453
        %v458 = vpack.c.b16 %v456, %v455
        %vm461 = vcmask 261120
        %v463 = vsel %vm461, %v437, 0
        %465 = vmatprep.subr.bf16.mxu0 0
        %466 = vmatpush1.bf16.msra.mxu0 0
        %467 = vmatprep.subr.bf16.mxu0 0
        %468 = vmatpush1.bf16.msra.mxu0 0
        %469 = vmatprep.subr.bf16.mxu0 0
        %470 = vmatpush1.bf16.msra.mxu0 0
        %471 = vmatprep.subr.bf16.mxu0 0
        %472 = vmatpush1.bf16.msra.mxu0 0
        %473 = vmatprep.subr.bf16.mxu0 0
        %474 = vmatpush1.bf16.msra.mxu0 0
        %475 = vmatprep.subr.bf16.mxu0 0
        %476 = vmatpush1.bf16.msra.mxu0 0
        %477 = vmatprep.subr.bf16.mxu0 0
        %478 = vmatpush1.bf16.msra.mxu0 %v458
        %479 = vmatprep.subr.bf16.mxu0 0
        %480 = vmatpush1.bf16.msra.mxu0 %v457
        %481 = vmatprep.subr.bf16.mxu0 0
        %482 = vmatpush2.bf16.msra.mxu0 0
        %483 = vmatprep.subr.bf16.mxu0 0
        %484 = vmatpush2.bf16.msra.mxu0 0
        %485 = vmatprep.subr.bf16.mxu0 0
        %486 = vmatpush2.bf16.msra.mxu0 0
        %487 = vmatprep.subr.bf16.mxu0 0
        %488 = vmatpush2.bf16.msra.mxu0 0
        %489 = vmatprep.subr.bf16.mxu0 0
        %490 = vmatpush2.bf16.msra.mxu0 0
        %491 = vmatprep.subr.bf16.mxu0 0
        %492 = vmatpush2.bf16.msra.mxu0 0
        %493 = vmatprep.subr.bf16.mxu0 0
        %494 = vmatpush2.bf16.msra.mxu0 0
        %495 = vmatprep.subr.bf16.mxu0 0
        %496 = vmatpush2.bf16.msra.mxu0 0
        %497 = vmatprep.mubr.bf16.mxu0 0
        %498 = vmatmul.mubr.bf16.gmra.mxu0 %v463
        %v499 = vpop.f32.mrf.mxu0
        %v500 = vadd.f32 %v447, %v499
        %v501 = vpop.f32.mrf.mxu0
        %v502 = vpop.f32.mrf.mxu0
        %v503 = vadd.f32 %v447, %v502
        %v504 = vpop.f32.mrf.mxu0
        %505 = vdwg.mxu0
        %v506 = vld [vmem:[%s418] sm:$0xff]
        %v507 = vld [vmem:[%s418 + $0x8] sm:$0xff]
        %v508 = vpack.c.bf16 %v507, %v506
        %s509 = scalar_lea.vmem %s2, 16
        %v510 = vld [vmem:[%s509] sm:$0xf]
        %v511 = vld [vmem:[%s509 + $0x4] sm:$0xf]
        %v512 = vld [vmem:[%s509 + $0x8] sm:$0xf]
        %v513 = vld [vmem:[%s509 + $0xc] sm:$0xf]
        %s514 = scalar_lea.vmem %s4, 1
        %v515 = vld [vmem:[%s514] sm:$0x1]
        %v517 = vlaneseq
        %v518 = vshrl.u32 %v517, 7
        %v519 = vsub.s32 0, %v518
        %v520 = vrot.slane %v515, %v519
        %v526 = vunpack.c.l.b16 %v510
        %v527 = vunpack.c.l.b16 %v511
        %v528 = vunpack.c.l.b16 %v512
        %v529 = vunpack.c.l.b16 %v513
        %v530 = vpack.c.b16 %v527, %v526
        %v531 = vpack.c.b16 %v529, %v528
        %v535 = vsel %vm461, %v508, 0
        %537 = vmatprep.subr.bf16.mxu0 0
        %538 = vmatpush1.bf16.msra.mxu0 0
        %539 = vmatprep.subr.bf16.mxu0 0
        %540 = vmatpush1.bf16.msra.mxu0 0
        %541 = vmatprep.subr.bf16.mxu0 0
        %542 = vmatpush1.bf16.msra.mxu0 0
        %543 = vmatprep.subr.bf16.mxu0 0
        %544 = vmatpush1.bf16.msra.mxu0 0
        %545 = vmatprep.subr.bf16.mxu0 0
        %546 = vmatpush1.bf16.msra.mxu0 0
        %547 = vmatprep.subr.bf16.mxu0 0
        %548 = vmatpush1.bf16.msra.mxu0 0
        %549 = vmatprep.subr.bf16.mxu0 0
        %550 = vmatpush1.bf16.msra.mxu0 %v531
        %551 = vmatprep.subr.bf16.mxu0 0
        %552 = vmatpush1.bf16.msra.mxu0 %v530
        %553 = vmatprep.subr.bf16.mxu0 0
        %554 = vmatpush2.bf16.msra.mxu0 0
        %555 = vmatprep.subr.bf16.mxu0 0
        %556 = vmatpush2.bf16.msra.mxu0 0
        %557 = vmatprep.subr.bf16.mxu0 0
        %558 = vmatpush2.bf16.msra.mxu0 0
        %559 = vmatprep.subr.bf16.mxu0 0
        %560 = vmatpush2.bf16.msra.mxu0 0
        %561 = vmatprep.subr.bf16.mxu0 0
        %562 = vmatpush2.bf16.msra.mxu0 0
        %563 = vmatprep.subr.bf16.mxu0 0
        %564 = vmatpush2.bf16.msra.mxu0 0
        %565 = vmatprep.subr.bf16.mxu0 0
        %566 = vmatpush2.bf16.msra.mxu0 0
        %567 = vmatprep.subr.bf16.mxu0 0
        %568 = vmatpush2.bf16.msra.mxu0 0
        %569 = vmatprep.mubr.bf16.mxu0 0
        %570 = vmatmul.mubr.bf16.gmra.mxu0 %v535
        %v571 = vpop.f32.mrf.mxu0
        %v572 = vadd.f32 %v520, %v571
        %v573 = vpop.f32.mrf.mxu0
        %v574 = vpop.f32.mrf.mxu0
        %v575 = vadd.f32 %v520, %v574
        %v576 = vpop.f32.mrf.mxu0
        %577 = vdwg.mxu0
        %v582 = vunpack.c.l.b16 %v423
        %v583 = vunpack.c.l.b16 %v424
        %v584 = vunpack.c.l.b16 %v425
        %v585 = vunpack.c.l.b16 %v426
        %v586 = vpack.c.b16 %v583, %v582
        %v587 = vpack.c.b16 %v585, %v584
        %v591 = vsel %vm461, 0, 0
        %593 = vmatprep.subr.bf16.mxu0 0
        %594 = vmatpush1.bf16.msra.mxu0 0
        %595 = vmatprep.subr.bf16.mxu0 0
        %596 = vmatpush1.bf16.msra.mxu0 0
        %597 = vmatprep.subr.bf16.mxu0 0
        %598 = vmatpush1.bf16.msra.mxu0 0
        %599 = vmatprep.subr.bf16.mxu0 0
        %600 = vmatpush1.bf16.msra.mxu0 0
        %601 = vmatprep.subr.bf16.mxu0 0
        %602 = vmatpush1.bf16.msra.mxu0 0
        %603 = vmatprep.subr.bf16.mxu0 0
        %604 = vmatpush1.bf16.msra.mxu0 0
        %605 = vmatprep.subr.bf16.mxu0 0
        %606 = vmatpush1.bf16.msra.mxu0 %v587
        %607 = vmatprep.subr.bf16.mxu0 0
        %608 = vmatpush1.bf16.msra.mxu0 %v586
        %609 = vmatprep.subr.bf16.mxu0 0
        %610 = vmatpush2.bf16.msra.mxu0 0
        %611 = vmatprep.subr.bf16.mxu0 0
        %612 = vmatpush2.bf16.msra.mxu0 0
        %613 = vmatprep.subr.bf16.mxu0 0
        %614 = vmatpush2.bf16.msra.mxu0 0
        %615 = vmatprep.subr.bf16.mxu0 0
        %616 = vmatpush2.bf16.msra.mxu0 0
        %617 = vmatprep.subr.bf16.mxu0 0
        %618 = vmatpush2.bf16.msra.mxu0 0
        %619 = vmatprep.subr.bf16.mxu0 0
        %620 = vmatpush2.bf16.msra.mxu0 0
        %621 = vmatprep.subr.bf16.mxu0 0
        %622 = vmatpush2.bf16.msra.mxu0 0
        %623 = vmatprep.subr.bf16.mxu0 0
        %624 = vmatpush2.bf16.msra.mxu0 0
        %625 = vmatprep.mubr.bf16.mxu0 0
        %626 = vmatmul.mubr.bf16.gmra.mxu0 %v591
        %v627 = vpop.f32.mrf.mxu0
        %v628 = vadd.f32 0.0, %v627
        %v629 = vpop.f32.mrf.mxu0
        %v630 = vpop.f32.mrf.mxu0
        %v631 = vpop.f32.mrf.mxu0
        %632 = vdwg.mxu0
        %v634 = vrot.slane %v628, 1
        %v637 = vadd.f32 %v500, %v628
        %v638 = vadd.f32 %v503, %v634
        %v640 = vlaneseq
        %v641 = vshrl.u32 %v640, 7
        %v642 = vsub.s32 0, %v641
        %v643 = vrot.slane %v432, %v642
        %v645 = vadd.f32 %v637, %v643
        %v646 = vadd.f32 %v638, %v643
        %v647 = vxor.u32 %v645, 2147483648
        %v648 = vxor.u32 %v646, 2147483648
        %v649 = vmul.f32 %v647, 1.442695
        %v650 = vpow.pop %v649
        %v651 = vmul.f32 %v648, 1.442695
        %v652 = vpow.pop %v651
        %v653 = vadd.f32 %v650, 1.0
        %v654 = vadd.f32 %v652, 1.0
        %v655 = vrcp.pop %v653
        %v656 = vmul.f32 1.0, %v655
        %v657 = vrcp.pop %v654
        %v658 = vmul.f32 1.0, %v657
        %v659 = vadd.f32 %v628, %v643
        %v661 = vrot.slane %v659, 1
        %662 = vrot.lane.b32.xlu0 %v659, 64
        %v663 = vpop.permute.xlu0 %662
        %664 = vrot.lane.b32.xlu0 %v661, 64
        %v665 = vpop.permute.xlu0 %664
        %v668 = vmul.f32 %v656, %v663
        %v669 = vmul.f32 %v658, %v665
        %672 = vrot.lane.b32.xlu0 %v668, 64
        %v673 = vpop.permute.xlu0 %672
        %674 = vrot.lane.b32.xlu0 %v669, 64
        %v675 = vpop.permute.xlu0 %674
        %v678 = vadd.f32 %v500, %v673
        %v679 = vadd.f32 %v503, %v675
        %v680 = vtanh.pop %v678
        %v681 = vtanh.pop %v679
        %v682 = vsub.f32 1.0, %v656
        %v683 = vsub.f32 1.0, %v658
        %686 = vrot.lane.b32.xlu0 %v680, 96
        %v687 = vpop.permute.xlu0 %686
        %688 = vrot.lane.b32.xlu0 %v681, 96
        %v689 = vpop.permute.xlu0 %688
        %v692 = vmul.f32 %v682, %v687
        %v693 = vmul.f32 %v683, %v689
        %v694 = vmul.f32 %v656, 0.0
        %v695 = vmul.f32 %v658, 0.0
        %v696 = vadd.f32 %v692, %v694
        %v697 = vadd.f32 %v693, %v695
        %700 = vrot.lane.b32.xlu0 %v696, 96
        %v701 = vpop.permute.xlu0 %700
        %702 = vrot.lane.b32.xlu0 %v697, 96
        %v703 = vpop.permute.xlu0 %702
        %vm706 = vcmask 253952
        %707 = vst.msk [vmem:[#allocation2] sm:$0x1] %vm706, %v701
        %708 = vst.msk [vmem:[#allocation2 + $0x8] sm:$0x1] %vm706, %v703
        %v709 = vpack.c.bf16 %v696, %v696
        %v710 = vpack.c.bf16 %v697, %v697
        %v713 = vunpack.c.l.b16 %v709
        %v714 = vunpack.c.l.b16 %v710
        %v715 = vrot.slane %v714, 7
        %vm716 = vcmask 1041409
        %v717 = vsel %vm716, %v715, %v713
        %v718 = vpack.c.b16 %v717, %v717
        %719 = vrot.lane.b32.xlu0 %v718, 96
        %v720 = vpop.permute.xlu0 %719
        %v722 = vsel %vm461, %v720, 0
        %724 = vmatprep.subr.bf16.mxu0 0
        %725 = vmatpush1.bf16.msra.mxu0 0
        %726 = vmatprep.subr.bf16.mxu0 0
        %727 = vmatpush1.bf16.msra.mxu0 0
        %728 = vmatprep.subr.bf16.mxu0 0
        %729 = vmatpush1.bf16.msra.mxu0 0
        %730 = vmatprep.subr.bf16.mxu0 0
        %731 = vmatpush1.bf16.msra.mxu0 0
        %732 = vmatprep.subr.bf16.mxu0 0
        %733 = vmatpush1.bf16.msra.mxu0 0
        %734 = vmatprep.subr.bf16.mxu0 0
        %735 = vmatpush1.bf16.msra.mxu0 0
        %736 = vmatprep.subr.bf16.mxu0 0
        %737 = vmatpush1.bf16.msra.mxu0 %v587
        %738 = vmatprep.subr.bf16.mxu0 0
        %739 = vmatpush1.bf16.msra.mxu0 %v586
        %740 = vmatprep.subr.bf16.mxu0 0
        %741 = vmatpush2.bf16.msra.mxu0 0
        %742 = vmatprep.subr.bf16.mxu0 0
        %743 = vmatpush2.bf16.msra.mxu0 0
        %744 = vmatprep.subr.bf16.mxu0 0
        %745 = vmatpush2.bf16.msra.mxu0 0
        %746 = vmatprep.subr.bf16.mxu0 0
        %747 = vmatpush2.bf16.msra.mxu0 0
        %748 = vmatprep.subr.bf16.mxu0 0
        %749 = vmatpush2.bf16.msra.mxu0 0
        %750 = vmatprep.subr.bf16.mxu0 0
        %751 = vmatpush2.bf16.msra.mxu0 0
        %752 = vmatprep.subr.bf16.mxu0 0
        %753 = vmatpush2.bf16.msra.mxu0 0
        %754 = vmatprep.subr.bf16.mxu0 0
        %755 = vmatpush2.bf16.msra.mxu0 0
        %756 = vmatprep.mubr.bf16.mxu0 0
        %757 = vmatmul.mubr.bf16.gmra.mxu0 %v722
        %v758 = vpop.f32.mrf.mxu0
        %v759 = vadd.f32 0.0, %v758
        %v760 = vpop.f32.mrf.mxu0
        %v761 = vpop.f32.mrf.mxu0
        %v762 = vpop.f32.mrf.mxu0
        %763 = vdwg.mxu0
        %v765 = vrot.slane %v759, 7
        %v768 = vadd.f32 %v500, %v765
        %v769 = vadd.f32 %v503, %v759
        %v770 = vadd.f32 %v768, %v643
        %v771 = vadd.f32 %v769, %v643
        %v772 = vxor.u32 %v770, 2147483648
        %v773 = vxor.u32 %v771, 2147483648
        %v774 = vmul.f32 %v772, 1.442695
        %v775 = vpow.pop %v774
        %v776 = vmul.f32 %v773, 1.442695
        %v777 = vpow.pop %v776
        %v778 = vadd.f32 %v775, 1.0
        %v779 = vadd.f32 %v777, 1.0
        %v780 = vrcp.pop %v778
        %v781 = vmul.f32 1.0, %v780
        %v782 = vrcp.pop %v779
        %v783 = vmul.f32 1.0, %v782
        %v784 = vadd.f32 %v759, %v643
        %v786 = vrot.slane %v784, 7
        %787 = vrot.lane.b32.xlu0 %v786, 64
        %v788 = vpop.permute.xlu0 %787
        %789 = vrot.lane.b32.xlu0 %v784, 64
        %v790 = vpop.permute.xlu0 %789
        %v793 = vmul.f32 %v781, %v788
        %v794 = vmul.f32 %v783, %v790
        %797 = vrot.lane.b32.xlu0 %v793, 64
        %v798 = vpop.permute.xlu0 %797
        %799 = vrot.lane.b32.xlu0 %v794, 64
        %v800 = vpop.permute.xlu0 %799
        %v803 = vadd.f32 %v500, %v798
        %v804 = vadd.f32 %v503, %v800
        %v805 = vtanh.pop %v803
        %v806 = vtanh.pop %v804
        %v807 = vsub.f32 1.0, %v781
        %v808 = vsub.f32 1.0, %v783
        %811 = vrot.lane.b32.xlu0 %v805, 96
        %v812 = vpop.permute.xlu0 %811
        %813 = vrot.lane.b32.xlu0 %v806, 96
        %v814 = vpop.permute.xlu0 %813
        %v817 = vmul.f32 %v807, %v812
        %v818 = vmul.f32 %v808, %v814
        %v819 = vrot.slane %v696, 7
        %v820 = vrot.slane %v697, 7
        %v823 = vmul.f32 %v781, %v819
        %v824 = vmul.f32 %v783, %v820
        %v825 = vadd.f32 %v817, %v823
        %v826 = vadd.f32 %v818, %v824
        %829 = vrot.lane.b32.xlu0 %v825, 96
        %v830 = vpop.permute.xlu0 %829
        %831 = vrot.lane.b32.xlu0 %v826, 96
        %v832 = vpop.permute.xlu0 %831
        %vm835 = vcmask 254977
        %836 = vst.msk [vmem:[#allocation2] sm:$0x2] %vm835, %v830
        %837 = vst.msk [vmem:[#allocation2 + $0x8] sm:$0x2] %vm835, %v832
        %v838 = vpack.c.bf16 %v825, %v825
        %v839 = vpack.c.bf16 %v826, %v826
        %v842 = vunpack.c.l.b16 %v838
        %v843 = vunpack.c.l.b16 %v839
        %v844 = vrot.slane %v842, 1
        %v845 = vsel %vm716, %v843, %v844
        %v846 = vpack.c.b16 %v845, %v845
        %847 = vrot.lane.b32.xlu0 %v846, 96
        %v848 = vpop.permute.xlu0 %847
        %v850 = vsel %vm461, %v848, 0
        %852 = vmatprep.subr.bf16.mxu0 0
        %853 = vmatpush1.bf16.msra.mxu0 0
        %854 = vmatprep.subr.bf16.mxu0 0
        %855 = vmatpush1.bf16.msra.mxu0 0
        %856 = vmatprep.subr.bf16.mxu0 0
        %857 = vmatpush1.bf16.msra.mxu0 0
        %858 = vmatprep.subr.bf16.mxu0 0
        %859 = vmatpush1.bf16.msra.mxu0 0
        %860 = vmatprep.subr.bf16.mxu0 0
        %861 = vmatpush1.bf16.msra.mxu0 0
        %862 = vmatprep.subr.bf16.mxu0 0
        %863 = vmatpush1.bf16.msra.mxu0 0
        %864 = vmatprep.subr.bf16.mxu0 0
        %865 = vmatpush1.bf16.msra.mxu0 %v587
        %866 = vmatprep.subr.bf16.mxu0 0
        %867 = vmatpush1.bf16.msra.mxu0 %v586
        %868 = vmatprep.subr.bf16.mxu0 0
        %869 = vmatpush2.bf16.msra.mxu0 0
        %870 = vmatprep.subr.bf16.mxu0 0
        %871 = vmatpush2.bf16.msra.mxu0 0
        %872 = vmatprep.subr.bf16.mxu0 0
        %873 = vmatpush2.bf16.msra.mxu0 0
        %874 = vmatprep.subr.bf16.mxu0 0
        %875 = vmatpush2.bf16.msra.mxu0 0
        %876 = vmatprep.subr.bf16.mxu0 0
        %877 = vmatpush2.bf16.msra.mxu0 0
        %878 = vmatprep.subr.bf16.mxu0 0
        %879 = vmatpush2.bf16.msra.mxu0 0
        %880 = vmatprep.subr.bf16.mxu0 0
        %881 = vmatpush2.bf16.msra.mxu0 0
        %882 = vmatprep.subr.bf16.mxu0 0
        %883 = vmatpush2.bf16.msra.mxu0 0
        %884 = vmatprep.mubr.bf16.mxu0 0
        %885 = vmatmul.mubr.bf16.gmra.mxu0 %v850
        %v886 = vpop.f32.mrf.mxu0
        %v887 = vadd.f32 0.0, %v886
        %v888 = vpop.f32.mrf.mxu0
        %v889 = vpop.f32.mrf.mxu0
        %v890 = vpop.f32.mrf.mxu0
        %891 = vdwg.mxu0
        %v893 = vrot.slane %v887, 6
        %v894 = vrot.slane %v887, 7
        %v897 = vadd.f32 %v500, %v893
        %v898 = vadd.f32 %v503, %v894
        %v899 = vadd.f32 %v897, %v643
        %v900 = vadd.f32 %v898, %v643
        %v901 = vxor.u32 %v899, 2147483648
        %v902 = vxor.u32 %v900, 2147483648
        %v903 = vmul.f32 %v901, 1.442695
        %v904 = vpow.pop %v903
        %v905 = vmul.f32 %v902, 1.442695
        %v906 = vpow.pop %v905
        %v907 = vadd.f32 %v904, 1.0
        %v908 = vadd.f32 %v906, 1.0
        %v909 = vrcp.pop %v907
        %v910 = vmul.f32 1.0, %v909
        %v911 = vrcp.pop %v908
        %v912 = vmul.f32 1.0, %v911
        %v913 = vadd.f32 %v887, %v643
        %v915 = vrot.slane %v913, 6
        %v916 = vrot.slane %v913, 7
        %917 = vrot.lane.b32.xlu0 %v915, 64
        %v918 = vpop.permute.xlu0 %917
        %919 = vrot.lane.b32.xlu0 %v916, 64
        %v920 = vpop.permute.xlu0 %919
        %v923 = vmul.f32 %v910, %v918
        %v924 = vmul.f32 %v912, %v920
        %927 = vrot.lane.b32.xlu0 %v923, 64
        %v928 = vpop.permute.xlu0 %927
        %929 = vrot.lane.b32.xlu0 %v924, 64
        %v930 = vpop.permute.xlu0 %929
        %v933 = vadd.f32 %v500, %v928
        %v934 = vadd.f32 %v503, %v930
        %v935 = vtanh.pop %v933
        %v936 = vtanh.pop %v934
        %v937 = vsub.f32 1.0, %v910
        %v938 = vsub.f32 1.0, %v912
        %941 = vrot.lane.b32.xlu0 %v935, 96
        %v942 = vpop.permute.xlu0 %941
        %943 = vrot.lane.b32.xlu0 %v936, 96
        %v944 = vpop.permute.xlu0 %943
        %v947 = vmul.f32 %v937, %v942
        %v948 = vmul.f32 %v938, %v944
        %v949 = vrot.slane %v825, 7
        %v950 = vrot.slane %v826, 7
        %v953 = vmul.f32 %v910, %v949
        %v954 = vmul.f32 %v912, %v950
        %v955 = vadd.f32 %v947, %v953
        %v956 = vadd.f32 %v948, %v954
        %959 = vrot.lane.b32.xlu0 %v955, 96
        %v960 = vpop.permute.xlu0 %959
        %961 = vrot.lane.b32.xlu0 %v956, 96
        %v962 = vpop.permute.xlu0 %961
        %vm965 = vcmask 256002
        %966 = vst.msk [vmem:[#allocation2] sm:$0x4] %vm965, %v960
        %967 = vst.msk [vmem:[#allocation2 + $0x8] sm:$0x4] %vm965, %v962
        %v968 = vpack.c.bf16 %v955, %v955
        %v969 = vpack.c.bf16 %v956, %v956
        %v972 = vunpack.c.l.b16 %v968
        %v973 = vunpack.c.l.b16 %v969
        %v974 = vrot.slane %v972, 2
        %v975 = vrot.slane %v973, 1
        %v976 = vsel %vm716, %v975, %v974
        %v977 = vpack.c.b16 %v976, %v976
        %978 = vrot.lane.b32.xlu0 %v977, 96
        %v979 = vpop.permute.xlu0 %978
        %v981 = vsel %vm461, %v979, 0
        %983 = vmatprep.subr.bf16.mxu0 0
        %984 = vmatpush1.bf16.msra.mxu0 0
        %985 = vmatprep.subr.bf16.mxu0 0
        %986 = vmatpush1.bf16.msra.mxu0 0
        %987 = vmatprep.subr.bf16.mxu0 0
        %988 = vmatpush1.bf16.msra.mxu0 0
        %989 = vmatprep.subr.bf16.mxu0 0
        %990 = vmatpush1.bf16.msra.mxu0 0
        %991 = vmatprep.subr.bf16.mxu0 0
        %992 = vmatpush1.bf16.msra.mxu0 0
        %993 = vmatprep.subr.bf16.mxu0 0
        %994 = vmatpush1.bf16.msra.mxu0 0
        %995 = vmatprep.subr.bf16.mxu0 0
        %996 = vmatpush1.bf16.msra.mxu0 %v587
        %997 = vmatprep.subr.bf16.mxu0 0
        %998 = vmatpush1.bf16.msra.mxu0 %v586
        %999 = vmatprep.subr.bf16.mxu0 0
        %1000 = vmatpush2.bf16.msra.mxu0 0
        %1001 = vmatprep.subr.bf16.mxu0 0
        %1002 = vmatpush2.bf16.msra.mxu0 0
        %1003 = vmatprep.subr.bf16.mxu0 0
        %1004 = vmatpush2.bf16.msra.mxu0 0
        %1005 = vmatprep.subr.bf16.mxu0 0
        %1006 = vmatpush2.bf16.msra.mxu0 0
        %1007 = vmatprep.subr.bf16.mxu0 0
        %1008 = vmatpush2.bf16.msra.mxu0 0
        %1009 = vmatprep.subr.bf16.mxu0 0
        %1010 = vmatpush2.bf16.msra.mxu0 0
        %1011 = vmatprep.subr.bf16.mxu0 0
        %1012 = vmatpush2.bf16.msra.mxu0 0
        %1013 = vmatprep.subr.bf16.mxu0 0
        %1014 = vmatpush2.bf16.msra.mxu0 0
        %1015 = vmatprep.mubr.bf16.mxu0 0
        %1016 = vmatmul.mubr.bf16.gmra.mxu0 %v981
        %v1017 = vpop.f32.mrf.mxu0
        %v1018 = vadd.f32 0.0, %v1017
        %v1019 = vpop.f32.mrf.mxu0
        %v1020 = vpop.f32.mrf.mxu0
        %v1021 = vpop.f32.mrf.mxu0
        %1022 = vdwg.mxu0
        %v1024 = vrot.slane %v1018, 5
        %v1025 = vrot.slane %v1018, 6
        %v1028 = vadd.f32 %v500, %v1024
        %v1029 = vadd.f32 %v503, %v1025
        %v1030 = vadd.f32 %v1028, %v643
        %v1031 = vadd.f32 %v1029, %v643
        %v1032 = vxor.u32 %v1030, 2147483648
        %v1033 = vxor.u32 %v1031, 2147483648
        %v1034 = vmul.f32 %v1032, 1.442695
        %v1035 = vpow.pop %v1034
        %v1036 = vmul.f32 %v1033, 1.442695
        %v1037 = vpow.pop %v1036
        %v1038 = vadd.f32 %v1035, 1.0
        %v1039 = vadd.f32 %v1037, 1.0
        %v1040 = vrcp.pop %v1038
        %v1041 = vmul.f32 1.0, %v1040
        %v1042 = vrcp.pop %v1039
        %v1043 = vmul.f32 1.0, %v1042
        %v1044 = vadd.f32 %v1018, %v643
        %v1046 = vrot.slane %v1044, 5
        %v1047 = vrot.slane %v1044, 6
        %1048 = vrot.lane.b32.xlu0 %v1046, 64
        %v1049 = vpop.permute.xlu0 %1048
        %1050 = vrot.lane.b32.xlu0 %v1047, 64
        %v1051 = vpop.permute.xlu0 %1050
        %v1054 = vmul.f32 %v1041, %v1049
        %v1055 = vmul.f32 %v1043, %v1051
        %1058 = vrot.lane.b32.xlu0 %v1054, 64
        %v1059 = vpop.permute.xlu0 %1058
        %1060 = vrot.lane.b32.xlu0 %v1055, 64
        %v1061 = vpop.permute.xlu0 %1060
        %v1064 = vadd.f32 %v500, %v1059
        %v1065 = vadd.f32 %v503, %v1061
        %v1066 = vtanh.pop %v1064
        %v1067 = vtanh.pop %v1065
        %v1068 = vsub.f32 1.0, %v1041
        %v1069 = vsub.f32 1.0, %v1043
        %1072 = vrot.lane.b32.xlu0 %v1066, 96
        %v1073 = vpop.permute.xlu0 %1072
        %1074 = vrot.lane.b32.xlu0 %v1067, 96
        %v1075 = vpop.permute.xlu0 %1074
        %v1078 = vmul.f32 %v1068, %v1073
        %v1079 = vmul.f32 %v1069, %v1075
        %v1080 = vrot.slane %v955, 7
        %v1081 = vrot.slane %v956, 7
        %v1084 = vmul.f32 %v1041, %v1080
        %v1085 = vmul.f32 %v1043, %v1081
        %v1086 = vadd.f32 %v1078, %v1084
        %v1087 = vadd.f32 %v1079, %v1085
        %1090 = vrot.lane.b32.xlu0 %v1086, 96
        %v1091 = vpop.permute.xlu0 %1090
        %1092 = vrot.lane.b32.xlu0 %v1087, 96
        %v1093 = vpop.permute.xlu0 %1092
        %vm1096 = vcmask 257027
        %1097 = vst.msk [vmem:[#allocation2] sm:$0x8] %vm1096, %v1091
        %1098 = vst.msk [vmem:[#allocation2 + $0x8] sm:$0x8] %vm1096, %v1093
        %v1099 = vpack.c.bf16 %v1086, %v1086
        %v1100 = vpack.c.bf16 %v1087, %v1087
        %v1103 = vunpack.c.l.b16 %v1099
        %v1104 = vunpack.c.l.b16 %v1100
        %v1105 = vrot.slane %v1103, 3
        %v1106 = vrot.slane %v1104, 2
        %v1107 = vsel %vm716, %v1106, %v1105
        %v1108 = vpack.c.b16 %v1107, %v1107
        %1109 = vrot.lane.b32.xlu0 %v1108, 96
        %v1110 = vpop.permute.xlu0 %1109
        %v1112 = vsel %vm461, %v1110, 0
        %1114 = vmatprep.subr.bf16.mxu0 0
        %1115 = vmatpush1.bf16.msra.mxu0 0
        %1116 = vmatprep.subr.bf16.mxu0 0
        %1117 = vmatpush1.bf16.msra.mxu0 0
        %1118 = vmatprep.subr.bf16.mxu0 0
        %1119 = vmatpush1.bf16.msra.mxu0 0
        %1120 = vmatprep.subr.bf16.mxu0 0
        %1121 = vmatpush1.bf16.msra.mxu0 0
        %1122 = vmatprep.subr.bf16.mxu0 0
        %1123 = vmatpush1.bf16.msra.mxu0 0
        %1124 = vmatprep.subr.bf16.mxu0 0
        %1125 = vmatpush1.bf16.msra.mxu0 0
        %1126 = vmatprep.subr.bf16.mxu0 0
        %1127 = vmatpush1.bf16.msra.mxu0 %v587
        %1128 = vmatprep.subr.bf16.mxu0 0
        %1129 = vmatpush1.bf16.msra.mxu0 %v586
        %1130 = vmatprep.subr.bf16.mxu0 0
        %1131 = vmatpush2.bf16.msra.mxu0 0
        %1132 = vmatprep.subr.bf16.mxu0 0
        %1133 = vmatpush2.bf16.msra.mxu0 0
        %1134 = vmatprep.subr.bf16.mxu0 0
        %1135 = vmatpush2.bf16.msra.mxu0 0
        %1136 = vmatprep.subr.bf16.mxu0 0
        %1137 = vmatpush2.bf16.msra.mxu0 0
        %1138 = vmatprep.subr.bf16.mxu0 0
        %1139 = vmatpush2.bf16.msra.mxu0 0
        %1140 = vmatprep.subr.bf16.mxu0 0
        %1141 = vmatpush2.bf16.msra.mxu0 0
        %1142 = vmatprep.subr.bf16.mxu0 0
        %1143 = vmatpush2.bf16.msra.mxu0 0
        %1144 = vmatprep.subr.bf16.mxu0 0
        %1145 = vmatpush2.bf16.msra.mxu0 0
        %1146 = vmatprep.mubr.bf16.mxu0 0
        %1147 = vmatmul.mubr.bf16.gmra.mxu0 %v1112
        %v1148 = vpop.f32.mrf.mxu0
        %v1149 = vadd.f32 0.0, %v1148
        %v1150 = vpop.f32.mrf.mxu0
        %v1151 = vpop.f32.mrf.mxu0
        %v1152 = vpop.f32.mrf.mxu0
        %1153 = vdwg.mxu0
        %v1155 = vrot.slane %v1149, 4
        %v1156 = vrot.slane %v1149, 5
        %v1159 = vadd.f32 %v500, %v1155
        %v1160 = vadd.f32 %v503, %v1156
        %v1161 = vadd.f32 %v1159, %v643
        %v1162 = vadd.f32 %v1160, %v643
        %v1163 = vxor.u32 %v1161, 2147483648
        %v1164 = vxor.u32 %v1162, 2147483648
        %v1165 = vmul.f32 %v1163, 1.442695
        %v1166 = vpow.pop %v1165
        %v1167 = vmul.f32 %v1164, 1.442695
        %v1168 = vpow.pop %v1167
        %v1169 = vadd.f32 %v1166, 1.0
        %v1170 = vadd.f32 %v1168, 1.0
        %v1171 = vrcp.pop %v1169
        %v1172 = vmul.f32 1.0, %v1171
        %v1173 = vrcp.pop %v1170
        %v1174 = vmul.f32 1.0, %v1173
        %v1175 = vadd.f32 %v1149, %v643
        %v1177 = vrot.slane %v1175, 4
        %v1178 = vrot.slane %v1175, 5
        %1179 = vrot.lane.b32.xlu0 %v1177, 64
        %v1180 = vpop.permute.xlu0 %1179
        %1181 = vrot.lane.b32.xlu0 %v1178, 64
        %v1182 = vpop.permute.xlu0 %1181
        %v1185 = vmul.f32 %v1172, %v1180
        %v1186 = vmul.f32 %v1174, %v1182
        %1189 = vrot.lane.b32.xlu0 %v1185, 64
        %v1190 = vpop.permute.xlu0 %1189
        %1191 = vrot.lane.b32.xlu0 %v1186, 64
        %v1192 = vpop.permute.xlu0 %1191
        %v1195 = vadd.f32 %v500, %v1190
        %v1196 = vadd.f32 %v503, %v1192
        %v1197 = vtanh.pop %v1195
        %v1198 = vtanh.pop %v1196
        %v1199 = vsub.f32 1.0, %v1172
        %v1200 = vsub.f32 1.0, %v1174
        %1203 = vrot.lane.b32.xlu0 %v1197, 96
        %v1204 = vpop.permute.xlu0 %1203
        %1205 = vrot.lane.b32.xlu0 %v1198, 96
        %v1206 = vpop.permute.xlu0 %1205
        %v1209 = vmul.f32 %v1199, %v1204
        %v1210 = vmul.f32 %v1200, %v1206
        %v1211 = vrot.slane %v1086, 7
        %v1212 = vrot.slane %v1087, 7
        %v1215 = vmul.f32 %v1172, %v1211
        %v1216 = vmul.f32 %v1174, %v1212
        %v1217 = vadd.f32 %v1209, %v1215
        %v1218 = vadd.f32 %v1210, %v1216
        %1221 = vrot.lane.b32.xlu0 %v1217, 96
        %v1222 = vpop.permute.xlu0 %1221
        %1223 = vrot.lane.b32.xlu0 %v1218, 96
        %v1224 = vpop.permute.xlu0 %1223
        %vm1227 = vcmask 258052
        %1228 = vst.msk [vmem:[#allocation2] sm:$0x10] %vm1227, %v1222
        %1229 = vst.msk [vmem:[#allocation2 + $0x8] sm:$0x10] %vm1227, %v1224
        %v1230 = vpack.c.bf16 %v1217, %v1217
        %v1231 = vpack.c.bf16 %v1218, %v1218
        %v1234 = vunpack.c.l.b16 %v1230
        %v1235 = vunpack.c.l.b16 %v1231
        %v1236 = vrot.slane %v1234, 4
        %v1237 = vrot.slane %v1235, 3
        %v1238 = vsel %vm716, %v1237, %v1236
        %v1239 = vpack.c.b16 %v1238, %v1238
        %1240 = vrot.lane.b32.xlu0 %v1239, 96
        %v1241 = vpop.permute.xlu0 %1240
        %v1243 = vsel %vm461, %v1241, 0
        %1245 = vmatprep.subr.bf16.mxu0 0
        %1246 = vmatpush1.bf16.msra.mxu0 0
        %1247 = vmatprep.subr.bf16.mxu0 0
        %1248 = vmatpush1.bf16.msra.mxu0 0
        %1249 = vmatprep.subr.bf16.mxu0 0
        %1250 = vmatpush1.bf16.msra.mxu0 0
        %1251 = vmatprep.subr.bf16.mxu0 0
        %1252 = vmatpush1.bf16.msra.mxu0 0
        %1253 = vmatprep.subr.bf16.mxu0 0
        %1254 = vmatpush1.bf16.msra.mxu0 0
        %1255 = vmatprep.subr.bf16.mxu0 0
        %1256 = vmatpush1.bf16.msra.mxu0 0
        %1257 = vmatprep.subr.bf16.mxu0 0
        %1258 = vmatpush1.bf16.msra.mxu0 %v587
        %1259 = vmatprep.subr.bf16.mxu0 0
        %1260 = vmatpush1.bf16.msra.mxu0 %v586
        %1261 = vmatprep.subr.bf16.mxu0 0
        %1262 = vmatpush2.bf16.msra.mxu0 0
        %1263 = vmatprep.subr.bf16.mxu0 0
        %1264 = vmatpush2.bf16.msra.mxu0 0
        %1265 = vmatprep.subr.bf16.mxu0 0
        %1266 = vmatpush2.bf16.msra.mxu0 0
        %1267 = vmatprep.subr.bf16.mxu0 0
        %1268 = vmatpush2.bf16.msra.mxu0 0
        %1269 = vmatprep.subr.bf16.mxu0 0
        %1270 = vmatpush2.bf16.msra.mxu0 0
        %1271 = vmatprep.subr.bf16.mxu0 0
        %1272 = vmatpush2.bf16.msra.mxu0 0
        %1273 = vmatprep.subr.bf16.mxu0 0
        %1274 = vmatpush2.bf16.msra.mxu0 0
        %1275 = vmatprep.subr.bf16.mxu0 0
        %1276 = vmatpush2.bf16.msra.mxu0 0
        %1277 = vmatprep.mubr.bf16.mxu0 0
        %1278 = vmatmul.mubr.bf16.gmra.mxu0 %v1243
        %v1279 = vpop.f32.mrf.mxu0
        %v1280 = vadd.f32 0.0, %v1279
        %v1281 = vpop.f32.mrf.mxu0
        %v1282 = vpop.f32.mrf.mxu0
        %v1283 = vpop.f32.mrf.mxu0
        %1284 = vdwg.mxu0
        %v1286 = vrot.slane %v1280, 3
        %v1287 = vrot.slane %v1280, 4
        %v1290 = vadd.f32 %v500, %v1286
        %v1291 = vadd.f32 %v503, %v1287
        %v1292 = vadd.f32 %v1290, %v643
        %v1293 = vadd.f32 %v1291, %v643
        %v1294 = vxor.u32 %v1292, 2147483648
        %v1295 = vxor.u32 %v1293, 2147483648
        %v1296 = vmul.f32 %v1294, 1.442695
        %v1297 = vpow.pop %v1296
        %v1298 = vmul.f32 %v1295, 1.442695
        %v1299 = vpow.pop %v1298
        %v1300 = vadd.f32 %v1297, 1.0
        %v1301 = vadd.f32 %v1299, 1.0
        %v1302 = vrcp.pop %v1300
        %v1303 = vmul.f32 1.0, %v1302
        %v1304 = vrcp.pop %v1301
        %v1305 = vmul.f32 1.0, %v1304
        %v1306 = vadd.f32 %v1280, %v643
        %v1308 = vrot.slane %v1306, 3
        %v1309 = vrot.slane %v1306, 4
        %1310 = vrot.lane.b32.xlu0 %v1308, 64
        %v1311 = vpop.permute.xlu0 %1310
        %1312 = vrot.lane.b32.xlu0 %v1309, 64
        %v1313 = vpop.permute.xlu0 %1312
        %v1316 = vmul.f32 %v1303, %v1311
        %v1317 = vmul.f32 %v1305, %v1313
        %1320 = vrot.lane.b32.xlu0 %v1316, 64
        %v1321 = vpop.permute.xlu0 %1320
        %1322 = vrot.lane.b32.xlu0 %v1317, 64
        %v1323 = vpop.permute.xlu0 %1322
        %v1326 = vadd.f32 %v500, %v1321
        %v1327 = vadd.f32 %v503, %v1323
        %v1328 = vtanh.pop %v1326
        %v1329 = vtanh.pop %v1327
        %v1330 = vsub.f32 1.0, %v1303
        %v1331 = vsub.f32 1.0, %v1305
        %1334 = vrot.lane.b32.xlu0 %v1328, 96
        %v1335 = vpop.permute.xlu0 %1334
        %1336 = vrot.lane.b32.xlu0 %v1329, 96
        %v1337 = vpop.permute.xlu0 %1336
        %v1340 = vmul.f32 %v1330, %v1335
        %v1341 = vmul.f32 %v1331, %v1337
        %v1342 = vrot.slane %v1217, 7
        %v1343 = vrot.slane %v1218, 7
        %v1346 = vmul.f32 %v1303, %v1342
        %v1347 = vmul.f32 %v1305, %v1343
        %v1348 = vadd.f32 %v1340, %v1346
        %v1349 = vadd.f32 %v1341, %v1347
        %1352 = vrot.lane.b32.xlu0 %v1348, 96
        %v1353 = vpop.permute.xlu0 %1352
        %1354 = vrot.lane.b32.xlu0 %v1349, 96
        %v1355 = vpop.permute.xlu0 %1354
        %vm1358 = vcmask 259077
        %1359 = vst.msk [vmem:[#allocation2] sm:$0x20] %vm1358, %v1353
        %1360 = vst.msk [vmem:[#allocation2 + $0x8] sm:$0x20] %vm1358, %v1355
        %v1361 = vpack.c.bf16 %v1348, %v1348
        %v1362 = vpack.c.bf16 %v1349, %v1349
        %v1365 = vunpack.c.l.b16 %v1361
        %v1366 = vunpack.c.l.b16 %v1362
        %v1367 = vrot.slane %v1365, 5
        %v1368 = vrot.slane %v1366, 4
        %v1369 = vsel %vm716, %v1368, %v1367
        %v1370 = vpack.c.b16 %v1369, %v1369
        %1371 = vrot.lane.b32.xlu0 %v1370, 96
        %v1372 = vpop.permute.xlu0 %1371
        %v1374 = vsel %vm461, %v1372, 0
        %1376 = vmatprep.subr.bf16.mxu0 0
        %1377 = vmatpush1.bf16.msra.mxu0 0
        %1378 = vmatprep.subr.bf16.mxu0 0
        %1379 = vmatpush1.bf16.msra.mxu0 0
        %1380 = vmatprep.subr.bf16.mxu0 0
        %1381 = vmatpush1.bf16.msra.mxu0 0
        %1382 = vmatprep.subr.bf16.mxu0 0
        %1383 = vmatpush1.bf16.msra.mxu0 0
        %1384 = vmatprep.subr.bf16.mxu0 0
        %1385 = vmatpush1.bf16.msra.mxu0 0
        %1386 = vmatprep.subr.bf16.mxu0 0
        %1387 = vmatpush1.bf16.msra.mxu0 0
        %1388 = vmatprep.subr.bf16.mxu0 0
        %1389 = vmatpush1.bf16.msra.mxu0 %v587
        %1390 = vmatprep.subr.bf16.mxu0 0
        %1391 = vmatpush1.bf16.msra.mxu0 %v586
        %1392 = vmatprep.subr.bf16.mxu0 0
        %1393 = vmatpush2.bf16.msra.mxu0 0
        %1394 = vmatprep.subr.bf16.mxu0 0
        %1395 = vmatpush2.bf16.msra.mxu0 0
        %1396 = vmatprep.subr.bf16.mxu0 0
        %1397 = vmatpush2.bf16.msra.mxu0 0
        %1398 = vmatprep.subr.bf16.mxu0 0
        %1399 = vmatpush2.bf16.msra.mxu0 0
        %1400 = vmatprep.subr.bf16.mxu0 0
        %1401 = vmatpush2.bf16.msra.mxu0 0
        %1402 = vmatprep.subr.bf16.mxu0 0
        %1403 = vmatpush2.bf16.msra.mxu0 0
        %1404 = vmatprep.subr.bf16.mxu0 0
        %1405 = vmatpush2.bf16.msra.mxu0 0
        %1406 = vmatprep.subr.bf16.mxu0 0
        %1407 = vmatpush2.bf16.msra.mxu0 0
        %1408 = vmatprep.mubr.bf16.mxu0 0
        %1409 = vmatmul.mubr.bf16.gmra.mxu0 %v1374
        %v1410 = vpop.f32.mrf.mxu0
        %v1411 = vadd.f32 0.0, %v1410
        %v1412 = vpop.f32.mrf.mxu0
        %v1413 = vpop.f32.mrf.mxu0
        %v1414 = vpop.f32.mrf.mxu0
        %1415 = vdwg.mxu0
        %v1417 = vrot.slane %v1411, 2
        %v1418 = vrot.slane %v1411, 3
        %v1421 = vadd.f32 %v500, %v1417
        %v1422 = vadd.f32 %v503, %v1418
        %v1423 = vadd.f32 %v1421, %v643
        %v1424 = vadd.f32 %v1422, %v643
        %v1425 = vxor.u32 %v1423, 2147483648
        %v1426 = vxor.u32 %v1424, 2147483648
        %v1427 = vmul.f32 %v1425, 1.442695
        %v1428 = vpow.pop %v1427
        %v1429 = vmul.f32 %v1426, 1.442695
        %v1430 = vpow.pop %v1429
        %v1431 = vadd.f32 %v1428, 1.0
        %v1432 = vadd.f32 %v1430, 1.0
        %v1433 = vrcp.pop %v1431
        %v1434 = vmul.f32 1.0, %v1433
        %v1435 = vrcp.pop %v1432
        %v1436 = vmul.f32 1.0, %v1435
        %v1437 = vadd.f32 %v1411, %v643
        %v1439 = vrot.slane %v1437, 2
        %v1440 = vrot.slane %v1437, 3
        %1441 = vrot.lane.b32.xlu0 %v1439, 64
        %v1442 = vpop.permute.xlu0 %1441
        %1443 = vrot.lane.b32.xlu0 %v1440, 64
        %v1444 = vpop.permute.xlu0 %1443
        %v1447 = vmul.f32 %v1434, %v1442
        %v1448 = vmul.f32 %v1436, %v1444
        %1451 = vrot.lane.b32.xlu0 %v1447, 64
        %v1452 = vpop.permute.xlu0 %1451
        %1453 = vrot.lane.b32.xlu0 %v1448, 64
        %v1454 = vpop.permute.xlu0 %1453
        %v1457 = vadd.f32 %v500, %v1452
        %v1458 = vadd.f32 %v503, %v1454
        %v1459 = vtanh.pop %v1457
        %v1460 = vtanh.pop %v1458
        %v1461 = vsub.f32 1.0, %v1434
        %v1462 = vsub.f32 1.0, %v1436
        %1465 = vrot.lane.b32.xlu0 %v1459, 96
        %v1466 = vpop.permute.xlu0 %1465
        %1467 = vrot.lane.b32.xlu0 %v1460, 96
        %v1468 = vpop.permute.xlu0 %1467
        %v1471 = vmul.f32 %v1461, %v1466
        %v1472 = vmul.f32 %v1462, %v1468
        %v1473 = vrot.slane %v1348, 7
        %v1474 = vrot.slane %v1349, 7
        %v1477 = vmul.f32 %v1434, %v1473
        %v1478 = vmul.f32 %v1436, %v1474
        %v1479 = vadd.f32 %v1471, %v1477
        %v1480 = vadd.f32 %v1472, %v1478
        %1483 = vrot.lane.b32.xlu0 %v1479, 96
        %v1484 = vpop.permute.xlu0 %1483
        %1485 = vrot.lane.b32.xlu0 %v1480, 96
        %v1486 = vpop.permute.xlu0 %1485
        %vm1489 = vcmask 260102
        %1490 = vst.msk [vmem:[#allocation2] sm:$0x40] %vm1489, %v1484
        %1491 = vst.msk [vmem:[#allocation2 + $0x8] sm:$0x40] %vm1489, %v1486
        %v1492 = vpack.c.bf16 %v1479, %v1479
        %v1493 = vpack.c.bf16 %v1480, %v1480
        %v1496 = vunpack.c.l.b16 %v1492
        %v1497 = vunpack.c.l.b16 %v1493
        %v1498 = vrot.slane %v1496, 6
        %v1499 = vrot.slane %v1497, 5
        %v1500 = vsel %vm716, %v1499, %v1498
        %v1501 = vpack.c.b16 %v1500, %v1500
        %1502 = vrot.lane.b32.xlu0 %v1501, 96
        %v1503 = vpop.permute.xlu0 %1502
        %v1505 = vsel %vm461, %v1503, 0
        %1507 = vmatprep.subr.bf16.mxu0 0
        %1508 = vmatpush1.bf16.msra.mxu0 0
        %1509 = vmatprep.subr.bf16.mxu0 0
        %1510 = vmatpush1.bf16.msra.mxu0 0
        %1511 = vmatprep.subr.bf16.mxu0 0
        %1512 = vmatpush1.bf16.msra.mxu0 0
        %1513 = vmatprep.subr.bf16.mxu0 0
        %1514 = vmatpush1.bf16.msra.mxu0 0
        %1515 = vmatprep.subr.bf16.mxu0 0
        %1516 = vmatpush1.bf16.msra.mxu0 0
        %1517 = vmatprep.subr.bf16.mxu0 0
        %1518 = vmatpush1.bf16.msra.mxu0 0
        %1519 = vmatprep.subr.bf16.mxu0 0
        %1520 = vmatpush1.bf16.msra.mxu0 %v587
        %1521 = vmatprep.subr.bf16.mxu0 0
        %1522 = vmatpush1.bf16.msra.mxu0 %v586
        %1523 = vmatprep.subr.bf16.mxu0 0
        %1524 = vmatpush2.bf16.msra.mxu0 0
        %1525 = vmatprep.subr.bf16.mxu0 0
        %1526 = vmatpush2.bf16.msra.mxu0 0
        %1527 = vmatprep.subr.bf16.mxu0 0
        %1528 = vmatpush2.bf16.msra.mxu0 0
        %1529 = vmatprep.subr.bf16.mxu0 0
        %1530 = vmatpush2.bf16.msra.mxu0 0
        %1531 = vmatprep.subr.bf16.mxu0 0
        %1532 = vmatpush2.bf16.msra.mxu0 0
        %1533 = vmatprep.subr.bf16.mxu0 0
        %1534 = vmatpush2.bf16.msra.mxu0 0
        %1535 = vmatprep.subr.bf16.mxu0 0
        %1536 = vmatpush2.bf16.msra.mxu0 0
        %1537 = vmatprep.subr.bf16.mxu0 0
        %1538 = vmatpush2.bf16.msra.mxu0 0
        %1539 = vmatprep.mubr.bf16.mxu0 0
        %1540 = vmatmul.mubr.bf16.gmra.mxu0 %v1505
        %v1541 = vpop.f32.mrf.mxu0
        %v1542 = vadd.f32 0.0, %v1541
        %v1543 = vpop.f32.mrf.mxu0
        %v1544 = vpop.f32.mrf.mxu0
        %v1545 = vpop.f32.mrf.mxu0
        %1546 = vdwg.mxu0
        %v1548 = vrot.slane %v1542, 1
        %v1549 = vrot.slane %v1542, 2
        %v1552 = vadd.f32 %v500, %v1548
        %v1553 = vadd.f32 %v503, %v1549
        %v1554 = vadd.f32 %v1552, %v643
        %v1555 = vadd.f32 %v1553, %v643
        %v1556 = vxor.u32 %v1554, 2147483648
        %v1557 = vxor.u32 %v1555, 2147483648
        %v1558 = vmul.f32 %v1556, 1.442695
        %v1559 = vpow.pop %v1558
        %v1560 = vmul.f32 %v1557, 1.442695
        %v1561 = vpow.pop %v1560
        %v1562 = vadd.f32 %v1559, 1.0
        %v1563 = vadd.f32 %v1561, 1.0
        %v1564 = vrcp.pop %v1562
        %v1565 = vmul.f32 1.0, %v1564
        %v1566 = vrcp.pop %v1563
        %v1567 = vmul.f32 1.0, %v1566
        %v1568 = vadd.f32 %v1542, %v643
        %v1570 = vrot.slane %v1568, 1
        %v1571 = vrot.slane %v1568, 2
        %1572 = vrot.lane.b32.xlu0 %v1570, 64
        %v1573 = vpop.permute.xlu0 %1572
        %1574 = vrot.lane.b32.xlu0 %v1571, 64
        %v1575 = vpop.permute.xlu0 %1574
        %v1578 = vmul.f32 %v1565, %v1573
        %v1579 = vmul.f32 %v1567, %v1575
        %1582 = vrot.lane.b32.xlu0 %v1578, 64
        %v1583 = vpop.permute.xlu0 %1582
        %1584 = vrot.lane.b32.xlu0 %v1579, 64
        %v1585 = vpop.permute.xlu0 %1584
        %v1588 = vadd.f32 %v500, %v1583
        %v1589 = vadd.f32 %v503, %v1585
        %v1590 = vtanh.pop %v1588
        %v1591 = vtanh.pop %v1589
        %v1592 = vsub.f32 1.0, %v1565
        %v1593 = vsub.f32 1.0, %v1567
        %1596 = vrot.lane.b32.xlu0 %v1590, 96
        %v1597 = vpop.permute.xlu0 %1596
        %1598 = vrot.lane.b32.xlu0 %v1591, 96
        %v1599 = vpop.permute.xlu0 %1598
        %v1602 = vmul.f32 %v1592, %v1597
        %v1603 = vmul.f32 %v1593, %v1599
        %v1604 = vrot.slane %v1479, 7
        %v1605 = vrot.slane %v1480, 7
        %v1608 = vmul.f32 %v1565, %v1604
        %v1609 = vmul.f32 %v1567, %v1605
        %v1610 = vadd.f32 %v1602, %v1608
        %v1611 = vadd.f32 %v1603, %v1609
        %1614 = vrot.lane.b32.xlu0 %v1610, 96
        %v1615 = vpop.permute.xlu0 %1614
        %1616 = vrot.lane.b32.xlu0 %v1611, 96
        %v1617 = vpop.permute.xlu0 %1616
        %vm1620 = vcmask 261127
        %1621 = vst.msk [vmem:[#allocation2] sm:$0x80] %vm1620, %v1615
        %1622 = vst.msk [vmem:[#allocation2 + $0x8] sm:$0x80] %vm1620, %v1617
        %v1623 = vpack.c.bf16 %v1610, %v1610
        %v1624 = vpack.c.bf16 %v1611, %v1611
        %v1627 = vunpack.c.l.b16 %v1623
        %v1628 = vunpack.c.l.b16 %v1624
        %v1629 = vrot.slane %v1627, 7
        %v1630 = vrot.slane %v1628, 6
        %v1631 = vsel %vm716, %v1630, %v1629
        %v1632 = vpack.c.b16 %v1631, %v1631
        %1633 = vrot.lane.b32.xlu0 %v1632, 96
        %v1634 = vpop.permute.xlu0 %1633
        %v1639 = vunpack.c.l.b16 %v428
        %v1640 = vunpack.c.l.b16 %v429
        %v1641 = vunpack.c.l.b16 %v430
        %v1642 = vunpack.c.l.b16 %v431
        %v1643 = vpack.c.b16 %v1640, %v1639
        %v1644 = vpack.c.b16 %v1642, %v1641
        %v1648 = vsel %vm461, %v1634, 0
        %1650 = vmatprep.subr.bf16.mxu0 0
        %1651 = vmatpush1.bf16.msra.mxu0 0
        %1652 = vmatprep.subr.bf16.mxu0 0
        %1653 = vmatpush1.bf16.msra.mxu0 0
        %1654 = vmatprep.subr.bf16.mxu0 0
        %1655 = vmatpush1.bf16.msra.mxu0 0
        %1656 = vmatprep.subr.bf16.mxu0 0
        %1657 = vmatpush1.bf16.msra.mxu0 0
        %1658 = vmatprep.subr.bf16.mxu0 0
        %1659 = vmatpush1.bf16.msra.mxu0 0
        %1660 = vmatprep.subr.bf16.mxu0 0
        %1661 = vmatpush1.bf16.msra.mxu0 0
        %1662 = vmatprep.subr.bf16.mxu0 0
        %1663 = vmatpush1.bf16.msra.mxu0 %v1644
        %1664 = vmatprep.subr.bf16.mxu0 0
        %1665 = vmatpush1.bf16.msra.mxu0 %v1643
        %1666 = vmatprep.subr.bf16.mxu0 0
        %1667 = vmatpush2.bf16.msra.mxu0 0
        %1668 = vmatprep.subr.bf16.mxu0 0
        %1669 = vmatpush2.bf16.msra.mxu0 0
        %1670 = vmatprep.subr.bf16.mxu0 0
        %1671 = vmatpush2.bf16.msra.mxu0 0
        %1672 = vmatprep.subr.bf16.mxu0 0
        %1673 = vmatpush2.bf16.msra.mxu0 0
        %1674 = vmatprep.subr.bf16.mxu0 0
        %1675 = vmatpush2.bf16.msra.mxu0 0
        %1676 = vmatprep.subr.bf16.mxu0 0
        %1677 = vmatpush2.bf16.msra.mxu0 0
        %1678 = vmatprep.subr.bf16.mxu0 0
        %1679 = vmatpush2.bf16.msra.mxu0 0
        %1680 = vmatprep.subr.bf16.mxu0 0
        %1681 = vmatpush2.bf16.msra.mxu0 0
        %1682 = vmatprep.mubr.bf16.mxu0 0
        %1683 = vmatmul.mubr.bf16.gmra.mxu0 %v1648
        %v1684 = vpop.f32.mrf.mxu0
        %v1685 = vadd.f32 0.0, %v1684
        %v1686 = vpop.f32.mrf.mxu0
        %v1687 = vpop.f32.mrf.mxu0
        %v1688 = vpop.f32.mrf.mxu0
        %1689 = vdwg.mxu0
        %v1691 = vrot.slane %v1685, 1
        %v1694 = vadd.f32 %v572, %v1685
        %v1695 = vadd.f32 %v575, %v1691
        %v1697 = vlaneseq
        %v1698 = vshrl.u32 %v1697, 7
        %v1699 = vsub.s32 0, %v1698
        %v1700 = vrot.slane %v434, %v1699
        %v1702 = vadd.f32 %v1694, %v1700
        %v1703 = vadd.f32 %v1695, %v1700
        %v1704 = vxor.u32 %v1702, 2147483648
        %v1705 = vxor.u32 %v1703, 2147483648
        %v1706 = vmul.f32 %v1704, 1.442695
        %v1707 = vpow.pop %v1706
        %v1708 = vmul.f32 %v1705, 1.442695
        %v1709 = vpow.pop %v1708
        %v1710 = vadd.f32 %v1707, 1.0
        %v1711 = vadd.f32 %v1709, 1.0
        %v1712 = vrcp.pop %v1710
        %v1713 = vmul.f32 1.0, %v1712
        %v1714 = vrcp.pop %v1711
        %v1715 = vmul.f32 1.0, %v1714
        %v1716 = vadd.f32 %v1685, %v1700
        %v1718 = vrot.slane %v1716, 1
        %1719 = vrot.lane.b32.xlu0 %v1716, 64
        %v1720 = vpop.permute.xlu0 %1719
        %1721 = vrot.lane.b32.xlu0 %v1718, 64
        %v1722 = vpop.permute.xlu0 %1721
        %v1725 = vmul.f32 %v1713, %v1720
        %v1726 = vmul.f32 %v1715, %v1722
        %1729 = vrot.lane.b32.xlu0 %v1725, 64
        %v1730 = vpop.permute.xlu0 %1729
        %1731 = vrot.lane.b32.xlu0 %v1726, 64
        %v1732 = vpop.permute.xlu0 %1731
        %v1735 = vadd.f32 %v572, %v1730
        %v1736 = vadd.f32 %v575, %v1732
        %v1737 = vtanh.pop %v1735
        %v1738 = vtanh.pop %v1736
        %v1739 = vsub.f32 1.0, %v1713
        %v1740 = vsub.f32 1.0, %v1715
        %1743 = vrot.lane.b32.xlu0 %v1737, 96
        %v1744 = vpop.permute.xlu0 %1743
        %1745 = vrot.lane.b32.xlu0 %v1738, 96
        %v1746 = vpop.permute.xlu0 %1745
        %v1749 = vmul.f32 %v1739, %v1744
        %v1750 = vmul.f32 %v1740, %v1746
        %v1751 = vrot.slane %v1610, 7
        %v1752 = vrot.slane %v1611, 7
        %v1755 = vmul.f32 %v1713, %v1751
        %v1756 = vmul.f32 %v1715, %v1752
        %v1757 = vadd.f32 %v1749, %v1755
        %v1758 = vadd.f32 %v1750, %v1756
        %1761 = vrot.lane.b32.xlu0 %v1757, 96
        %v1762 = vpop.permute.xlu0 %1761
        %1763 = vrot.lane.b32.xlu0 %v1758, 96
        %v1764 = vpop.permute.xlu0 %1763
        %1767 = vst.msk [vmem:[#allocation3] sm:$0x1] %vm706, %v1762
        %1768 = vst.msk [vmem:[#allocation3 + $0x8] sm:$0x1] %vm706, %v1764
        %v1769 = vpack.c.bf16 %v1757, %v1757
        %v1770 = vpack.c.bf16 %v1758, %v1758
        %v1773 = vunpack.c.l.b16 %v1769
        %v1774 = vunpack.c.l.b16 %v1770
        %v1775 = vrot.slane %v1774, 7
        %v1776 = vsel %vm716, %v1775, %v1773
        %v1777 = vpack.c.b16 %v1776, %v1776
        %1778 = vrot.lane.b32.xlu0 %v1777, 96
        %v1779 = vpop.permute.xlu0 %1778
        %v1781 = vsel %vm461, %v1779, 0
        %1783 = vmatprep.subr.bf16.mxu0 0
        %1784 = vmatpush1.bf16.msra.mxu0 0
        %1785 = vmatprep.subr.bf16.mxu0 0
        %1786 = vmatpush1.bf16.msra.mxu0 0
        %1787 = vmatprep.subr.bf16.mxu0 0
        %1788 = vmatpush1.bf16.msra.mxu0 0
        %1789 = vmatprep.subr.bf16.mxu0 0
        %1790 = vmatpush1.bf16.msra.mxu0 0
        %1791 = vmatprep.subr.bf16.mxu0 0
        %1792 = vmatpush1.bf16.msra.mxu0 0
        %1793 = vmatprep.subr.bf16.mxu0 0
        %1794 = vmatpush1.bf16.msra.mxu0 0
        %1795 = vmatprep.subr.bf16.mxu0 0
        %1796 = vmatpush1.bf16.msra.mxu0 %v1644
        %1797 = vmatprep.subr.bf16.mxu0 0
        %1798 = vmatpush1.bf16.msra.mxu0 %v1643
        %1799 = vmatprep.subr.bf16.mxu0 0
        %1800 = vmatpush2.bf16.msra.mxu0 0
        %1801 = vmatprep.subr.bf16.mxu0 0
        %1802 = vmatpush2.bf16.msra.mxu0 0
        %1803 = vmatprep.subr.bf16.mxu0 0
        %1804 = vmatpush2.bf16.msra.mxu0 0
        %1805 = vmatprep.subr.bf16.mxu0 0
        %1806 = vmatpush2.bf16.msra.mxu0 0
        %1807 = vmatprep.subr.bf16.mxu0 0
        %1808 = vmatpush2.bf16.msra.mxu0 0
        %1809 = vmatprep.subr.bf16.mxu0 0
        %1810 = vmatpush2.bf16.msra.mxu0 0
        %1811 = vmatprep.subr.bf16.mxu0 0
        %1812 = vmatpush2.bf16.msra.mxu0 0
        %1813 = vmatprep.subr.bf16.mxu0 0
        %1814 = vmatpush2.bf16.msra.mxu0 0
        %1815 = vmatprep.mubr.bf16.mxu0 0
        %1816 = vmatmul.mubr.bf16.gmra.mxu0 %v1781
        %v1817 = vpop.f32.mrf.mxu0
        %v1818 = vadd.f32 0.0, %v1817
        %v1819 = vpop.f32.mrf.mxu0
        %v1820 = vpop.f32.mrf.mxu0
        %v1821 = vpop.f32.mrf.mxu0
        %1822 = vdwg.mxu0
        %v1824 = vrot.slane %v1818, 7
        %v1827 = vadd.f32 %v572, %v1824
        %v1828 = vadd.f32 %v575, %v1818
        %v1829 = vadd.f32 %v1827, %v1700
        %v1830 = vadd.f32 %v1828, %v1700
        %v1831 = vxor.u32 %v1829, 2147483648
        %v1832 = vxor.u32 %v1830, 2147483648
        %v1833 = vmul.f32 %v1831, 1.442695
        %v1834 = vpow.pop %v1833
        %v1835 = vmul.f32 %v1832, 1.442695
        %v1836 = vpow.pop %v1835
        %v1837 = vadd.f32 %v1834, 1.0
        %v1838 = vadd.f32 %v1836, 1.0
        %v1839 = vrcp.pop %v1837
        %v1840 = vmul.f32 1.0, %v1839
        %v1841 = vrcp.pop %v1838
        %v1842 = vmul.f32 1.0, %v1841
        %v1843 = vadd.f32 %v1818, %v1700
        %v1845 = vrot.slane %v1843, 7
        %1846 = vrot.lane.b32.xlu0 %v1845, 64
        %v1847 = vpop.permute.xlu0 %1846
        %1848 = vrot.lane.b32.xlu0 %v1843, 64
        %v1849 = vpop.permute.xlu0 %1848
        %v1852 = vmul.f32 %v1840, %v1847
        %v1853 = vmul.f32 %v1842, %v1849
        %1856 = vrot.lane.b32.xlu0 %v1852, 64
        %v1857 = vpop.permute.xlu0 %1856
        %1858 = vrot.lane.b32.xlu0 %v1853, 64
        %v1859 = vpop.permute.xlu0 %1858
        %v1862 = vadd.f32 %v572, %v1857
        %v1863 = vadd.f32 %v575, %v1859
        %v1864 = vtanh.pop %v1862
        %v1865 = vtanh.pop %v1863
        %v1866 = vsub.f32 1.0, %v1840
        %v1867 = vsub.f32 1.0, %v1842
        %1870 = vrot.lane.b32.xlu0 %v1864, 96
        %v1871 = vpop.permute.xlu0 %1870
        %1872 = vrot.lane.b32.xlu0 %v1865, 96
        %v1873 = vpop.permute.xlu0 %1872
        %v1876 = vmul.f32 %v1866, %v1871
        %v1877 = vmul.f32 %v1867, %v1873
        %v1878 = vrot.slane %v1757, 7
        %v1879 = vrot.slane %v1758, 7
        %v1882 = vmul.f32 %v1840, %v1878
        %v1883 = vmul.f32 %v1842, %v1879
        %v1884 = vadd.f32 %v1876, %v1882
        %v1885 = vadd.f32 %v1877, %v1883
        %1888 = vrot.lane.b32.xlu0 %v1884, 96
        %v1889 = vpop.permute.xlu0 %1888
        %1890 = vrot.lane.b32.xlu0 %v1885, 96
        %v1891 = vpop.permute.xlu0 %1890
        %1894 = vst.msk [vmem:[#allocation3] sm:$0x2] %vm835, %v1889
        %1895 = vst.msk [vmem:[#allocation3 + $0x8] sm:$0x2] %vm835, %v1891
        %v1896 = vpack.c.bf16 %v1884, %v1884
        %v1897 = vpack.c.bf16 %v1885, %v1885
        %v1900 = vunpack.c.l.b16 %v1896
        %v1901 = vunpack.c.l.b16 %v1897
        %v1902 = vrot.slane %v1900, 1
        %v1903 = vsel %vm716, %v1901, %v1902
        %v1904 = vpack.c.b16 %v1903, %v1903
        %1905 = vrot.lane.b32.xlu0 %v1904, 96
        %v1906 = vpop.permute.xlu0 %1905
        %v1908 = vsel %vm461, %v1906, 0
        %1910 = vmatprep.subr.bf16.mxu0 0
        %1911 = vmatpush1.bf16.msra.mxu0 0
        %1912 = vmatprep.subr.bf16.mxu0 0
        %1913 = vmatpush1.bf16.msra.mxu0 0
        %1914 = vmatprep.subr.bf16.mxu0 0
        %1915 = vmatpush1.bf16.msra.mxu0 0
        %1916 = vmatprep.subr.bf16.mxu0 0
        %1917 = vmatpush1.bf16.msra.mxu0 0
        %1918 = vmatprep.subr.bf16.mxu0 0
        %1919 = vmatpush1.bf16.msra.mxu0 0
        %1920 = vmatprep.subr.bf16.mxu0 0
        %1921 = vmatpush1.bf16.msra.mxu0 0
        %1922 = vmatprep.subr.bf16.mxu0 0
        %1923 = vmatpush1.bf16.msra.mxu0 %v1644
        %1924 = vmatprep.subr.bf16.mxu0 0
        %1925 = vmatpush1.bf16.msra.mxu0 %v1643
        %1926 = vmatprep.subr.bf16.mxu0 0
        %1927 = vmatpush2.bf16.msra.mxu0 0
        %1928 = vmatprep.subr.bf16.mxu0 0
        %1929 = vmatpush2.bf16.msra.mxu0 0
        %1930 = vmatprep.subr.bf16.mxu0 0
        %1931 = vmatpush2.bf16.msra.mxu0 0
        %1932 = vmatprep.subr.bf16.mxu0 0
        %1933 = vmatpush2.bf16.msra.mxu0 0
        %1934 = vmatprep.subr.bf16.mxu0 0
        %1935 = vmatpush2.bf16.msra.mxu0 0
        %1936 = vmatprep.subr.bf16.mxu0 0
        %1937 = vmatpush2.bf16.msra.mxu0 0
        %1938 = vmatprep.subr.bf16.mxu0 0
        %1939 = vmatpush2.bf16.msra.mxu0 0
        %1940 = vmatprep.subr.bf16.mxu0 0
        %1941 = vmatpush2.bf16.msra.mxu0 0
        %1942 = vmatprep.mubr.bf16.mxu0 0
        %1943 = vmatmul.mubr.bf16.gmra.mxu0 %v1908
        %v1944 = vpop.f32.mrf.mxu0
        %v1945 = vadd.f32 0.0, %v1944
        %v1946 = vpop.f32.mrf.mxu0
        %v1947 = vpop.f32.mrf.mxu0
        %v1948 = vpop.f32.mrf.mxu0
        %1949 = vdwg.mxu0
        %v1951 = vrot.slane %v1945, 6
        %v1952 = vrot.slane %v1945, 7
        %v1955 = vadd.f32 %v572, %v1951
        %v1956 = vadd.f32 %v575, %v1952
        %v1957 = vadd.f32 %v1955, %v1700
        %v1958 = vadd.f32 %v1956, %v1700
        %v1959 = vxor.u32 %v1957, 2147483648
        %v1960 = vxor.u32 %v1958, 2147483648
        %v1961 = vmul.f32 %v1959, 1.442695
        %v1962 = vpow.pop %v1961
        %v1963 = vmul.f32 %v1960, 1.442695
        %v1964 = vpow.pop %v1963
        %v1965 = vadd.f32 %v1962, 1.0
        %v1966 = vadd.f32 %v1964, 1.0
        %v1967 = vrcp.pop %v1965
        %v1968 = vmul.f32 1.0, %v1967
        %v1969 = vrcp.pop %v1966
        %v1970 = vmul.f32 1.0, %v1969
        %v1971 = vadd.f32 %v1945, %v1700
        %v1973 = vrot.slane %v1971, 6
        %v1974 = vrot.slane %v1971, 7
        %1975 = vrot.lane.b32.xlu0 %v1973, 64
        %v1976 = vpop.permute.xlu0 %1975
        %1977 = vrot.lane.b32.xlu0 %v1974, 64
        %v1978 = vpop.permute.xlu0 %1977
        %v1981 = vmul.f32 %v1968, %v1976
        %v1982 = vmul.f32 %v1970, %v1978
        %1985 = vrot.lane.b32.xlu0 %v1981, 64
        %v1986 = vpop.permute.xlu0 %1985
        %1987 = vrot.lane.b32.xlu0 %v1982, 64
        %v1988 = vpop.permute.xlu0 %1987
        %v1991 = vadd.f32 %v572, %v1986
        %v1992 = vadd.f32 %v575, %v1988
        %v1993 = vtanh.pop %v1991
        %v1994 = vtanh.pop %v1992
        %v1995 = vsub.f32 1.0, %v1968
        %v1996 = vsub.f32 1.0, %v1970
        %1999 = vrot.lane.b32.xlu0 %v1993, 96
        %v2000 = vpop.permute.xlu0 %1999
        %2001 = vrot.lane.b32.xlu0 %v1994, 96
        %v2002 = vpop.permute.xlu0 %2001
        %v2005 = vmul.f32 %v1995, %v2000
        %v2006 = vmul.f32 %v1996, %v2002
        %v2007 = vrot.slane %v1884, 7
        %v2008 = vrot.slane %v1885, 7
        %v2011 = vmul.f32 %v1968, %v2007
        %v2012 = vmul.f32 %v1970, %v2008
        %v2013 = vadd.f32 %v2005, %v2011
        %v2014 = vadd.f32 %v2006, %v2012
        %2017 = vrot.lane.b32.xlu0 %v2013, 96
        %v2018 = vpop.permute.xlu0 %2017
        %2019 = vrot.lane.b32.xlu0 %v2014, 96
        %v2020 = vpop.permute.xlu0 %2019
        %2023 = vst.msk [vmem:[#allocation3] sm:$0x4] %vm965, %v2018
        %2024 = vst.msk [vmem:[#allocation3 + $0x8] sm:$0x4] %vm965, %v2020
        %v2025 = vpack.c.bf16 %v2013, %v2013
        %v2026 = vpack.c.bf16 %v2014, %v2014
        %v2029 = vunpack.c.l.b16 %v2025
        %v2030 = vunpack.c.l.b16 %v2026
        %v2031 = vrot.slane %v2029, 2
        %v2032 = vrot.slane %v2030, 1
        %v2033 = vsel %vm716, %v2032, %v2031
        %v2034 = vpack.c.b16 %v2033, %v2033
        %2035 = vrot.lane.b32.xlu0 %v2034, 96
        %v2036 = vpop.permute.xlu0 %2035
        %v2038 = vsel %vm461, %v2036, 0
        %2040 = vmatprep.subr.bf16.mxu0 0
        %2041 = vmatpush1.bf16.msra.mxu0 0
        %2042 = vmatprep.subr.bf16.mxu0 0
        %2043 = vmatpush1.bf16.msra.mxu0 0
        %2044 = vmatprep.subr.bf16.mxu0 0
        %2045 = vmatpush1.bf16.msra.mxu0 0
        %2046 = vmatprep.subr.bf16.mxu0 0
        %2047 = vmatpush1.bf16.msra.mxu0 0
        %2048 = vmatprep.subr.bf16.mxu0 0
        %2049 = vmatpush1.bf16.msra.mxu0 0
        %2050 = vmatprep.subr.bf16.mxu0 0
        %2051 = vmatpush1.bf16.msra.mxu0 0
        %2052 = vmatprep.subr.bf16.mxu0 0
        %2053 = vmatpush1.bf16.msra.mxu0 %v1644
        %2054 = vmatprep.subr.bf16.mxu0 0
        %2055 = vmatpush1.bf16.msra.mxu0 %v1643
        %2056 = vmatprep.subr.bf16.mxu0 0
        %2057 = vmatpush2.bf16.msra.mxu0 0
        %2058 = vmatprep.subr.bf16.mxu0 0
        %2059 = vmatpush2.bf16.msra.mxu0 0
        %2060 = vmatprep.subr.bf16.mxu0 0
        %2061 = vmatpush2.bf16.msra.mxu0 0
        %2062 = vmatprep.subr.bf16.mxu0 0
        %2063 = vmatpush2.bf16.msra.mxu0 0
        %2064 = vmatprep.subr.bf16.mxu0 0
        %2065 = vmatpush2.bf16.msra.mxu0 0
        %2066 = vmatprep.subr.bf16.mxu0 0
        %2067 = vmatpush2.bf16.msra.mxu0 0
        %2068 = vmatprep.subr.bf16.mxu0 0
        %2069 = vmatpush2.bf16.msra.mxu0 0
        %2070 = vmatprep.subr.bf16.mxu0 0
        %2071 = vmatpush2.bf16.msra.mxu0 0
        %2072 = vmatprep.mubr.bf16.mxu0 0
        %2073 = vmatmul.mubr.bf16.gmra.mxu0 %v2038
        %v2074 = vpop.f32.mrf.mxu0
        %v2075 = vadd.f32 0.0, %v2074
        %v2076 = vpop.f32.mrf.mxu0
        %v2077 = vpop.f32.mrf.mxu0
        %v2078 = vpop.f32.mrf.mxu0
        %2079 = vdwg.mxu0
        %v2081 = vrot.slane %v2075, 5
        %v2082 = vrot.slane %v2075, 6
        %v2085 = vadd.f32 %v572, %v2081
        %v2086 = vadd.f32 %v575, %v2082
        %v2087 = vadd.f32 %v2085, %v1700
        %v2088 = vadd.f32 %v2086, %v1700
        %v2089 = vxor.u32 %v2087, 2147483648
        %v2090 = vxor.u32 %v2088, 2147483648
        %v2091 = vmul.f32 %v2089, 1.442695
        %v2092 = vpow.pop %v2091
        %v2093 = vmul.f32 %v2090, 1.442695
        %v2094 = vpow.pop %v2093
        %v2095 = vadd.f32 %v2092, 1.0
        %v2096 = vadd.f32 %v2094, 1.0
        %v2097 = vrcp.pop %v2095
        %v2098 = vmul.f32 1.0, %v2097
        %v2099 = vrcp.pop %v2096
        %v2100 = vmul.f32 1.0, %v2099
        %v2101 = vadd.f32 %v2075, %v1700
        %v2103 = vrot.slane %v2101, 5
        %v2104 = vrot.slane %v2101, 6
        %2105 = vrot.lane.b32.xlu0 %v2103, 64
        %v2106 = vpop.permute.xlu0 %2105
        %2107 = vrot.lane.b32.xlu0 %v2104, 64
        %v2108 = vpop.permute.xlu0 %2107
        %v2111 = vmul.f32 %v2098, %v2106
        %v2112 = vmul.f32 %v2100, %v2108
        %2115 = vrot.lane.b32.xlu0 %v2111, 64
        %v2116 = vpop.permute.xlu0 %2115
        %2117 = vrot.lane.b32.xlu0 %v2112, 64
        %v2118 = vpop.permute.xlu0 %2117
        %v2121 = vadd.f32 %v572, %v2116
        %v2122 = vadd.f32 %v575, %v2118
        %v2123 = vtanh.pop %v2121
        %v2124 = vtanh.pop %v2122
        %v2125 = vsub.f32 1.0, %v2098
        %v2126 = vsub.f32 1.0, %v2100
        %2129 = vrot.lane.b32.xlu0 %v2123, 96
        %v2130 = vpop.permute.xlu0 %2129
        %2131 = vrot.lane.b32.xlu0 %v2124, 96
        %v2132 = vpop.permute.xlu0 %2131
        %v2135 = vmul.f32 %v2125, %v2130
        %v2136 = vmul.f32 %v2126, %v2132
        %v2137 = vrot.slane %v2013, 7
        %v2138 = vrot.slane %v2014, 7
        %v2141 = vmul.f32 %v2098, %v2137
        %v2142 = vmul.f32 %v2100, %v2138
        %v2143 = vadd.f32 %v2135, %v2141
        %v2144 = vadd.f32 %v2136, %v2142
        %2147 = vrot.lane.b32.xlu0 %v2143, 96
        %v2148 = vpop.permute.xlu0 %2147
        %2149 = vrot.lane.b32.xlu0 %v2144, 96
        %v2150 = vpop.permute.xlu0 %2149
        %2153 = vst.msk [vmem:[#allocation3] sm:$0x8] %vm1096, %v2148
        %2154 = vst.msk [vmem:[#allocation3 + $0x8] sm:$0x8] %vm1096, %v2150
        %v2155 = vpack.c.bf16 %v2143, %v2143
        %v2156 = vpack.c.bf16 %v2144, %v2144
        %v2159 = vunpack.c.l.b16 %v2155
        %v2160 = vunpack.c.l.b16 %v2156
        %v2161 = vrot.slane %v2159, 3
        %v2162 = vrot.slane %v2160, 2
        %v2163 = vsel %vm716, %v2162, %v2161
        %v2164 = vpack.c.b16 %v2163, %v2163
        %2165 = vrot.lane.b32.xlu0 %v2164, 96
        %v2166 = vpop.permute.xlu0 %2165
        %v2168 = vsel %vm461, %v2166, 0
        %2170 = vmatprep.subr.bf16.mxu0 0
        %2171 = vmatpush1.bf16.msra.mxu0 0
        %2172 = vmatprep.subr.bf16.mxu0 0
        %2173 = vmatpush1.bf16.msra.mxu0 0
        %2174 = vmatprep.subr.bf16.mxu0 0
        %2175 = vmatpush1.bf16.msra.mxu0 0
        %2176 = vmatprep.subr.bf16.mxu0 0
        %2177 = vmatpush1.bf16.msra.mxu0 0
        %2178 = vmatprep.subr.bf16.mxu0 0
        %2179 = vmatpush1.bf16.msra.mxu0 0
        %2180 = vmatprep.subr.bf16.mxu0 0
        %2181 = vmatpush1.bf16.msra.mxu0 0
        %2182 = vmatprep.subr.bf16.mxu0 0
        %2183 = vmatpush1.bf16.msra.mxu0 %v1644
        %2184 = vmatprep.subr.bf16.mxu0 0
        %2185 = vmatpush1.bf16.msra.mxu0 %v1643
        %2186 = vmatprep.subr.bf16.mxu0 0
        %2187 = vmatpush2.bf16.msra.mxu0 0
        %2188 = vmatprep.subr.bf16.mxu0 0
        %2189 = vmatpush2.bf16.msra.mxu0 0
        %2190 = vmatprep.subr.bf16.mxu0 0
        %2191 = vmatpush2.bf16.msra.mxu0 0
        %2192 = vmatprep.subr.bf16.mxu0 0
        %2193 = vmatpush2.bf16.msra.mxu0 0
        %2194 = vmatprep.subr.bf16.mxu0 0
        %2195 = vmatpush2.bf16.msra.mxu0 0
        %2196 = vmatprep.subr.bf16.mxu0 0
        %2197 = vmatpush2.bf16.msra.mxu0 0
        %2198 = vmatprep.subr.bf16.mxu0 0
        %2199 = vmatpush2.bf16.msra.mxu0 0
        %2200 = vmatprep.subr.bf16.mxu0 0
        %2201 = vmatpush2.bf16.msra.mxu0 0
        %2202 = vmatprep.mubr.bf16.mxu0 0
        %2203 = vmatmul.mubr.bf16.gmra.mxu0 %v2168
        %v2204 = vpop.f32.mrf.mxu0
        %v2205 = vadd.f32 0.0, %v2204
        %v2206 = vpop.f32.mrf.mxu0
        %v2207 = vpop.f32.mrf.mxu0
        %v2208 = vpop.f32.mrf.mxu0
        %2209 = vdwg.mxu0
        %v2211 = vrot.slane %v2205, 4
        %v2212 = vrot.slane %v2205, 5
        %v2215 = vadd.f32 %v572, %v2211
        %v2216 = vadd.f32 %v575, %v2212
        %v2217 = vadd.f32 %v2215, %v1700
        %v2218 = vadd.f32 %v2216, %v1700
        %v2219 = vxor.u32 %v2217, 2147483648
        %v2220 = vxor.u32 %v2218, 2147483648
        %v2221 = vmul.f32 %v2219, 1.442695
        %v2222 = vpow.pop %v2221
        %v2223 = vmul.f32 %v2220, 1.442695
        %v2224 = vpow.pop %v2223
        %v2225 = vadd.f32 %v2222, 1.0
        %v2226 = vadd.f32 %v2224, 1.0
        %v2227 = vrcp.pop %v2225
        %v2228 = vmul.f32 1.0, %v2227
        %v2229 = vrcp.pop %v2226
        %v2230 = vmul.f32 1.0, %v2229
        %v2231 = vadd.f32 %v2205, %v1700
        %v2233 = vrot.slane %v2231, 4
        %v2234 = vrot.slane %v2231, 5
        %2235 = vrot.lane.b32.xlu0 %v2233, 64
        %v2236 = vpop.permute.xlu0 %2235
        %2237 = vrot.lane.b32.xlu0 %v2234, 64
        %v2238 = vpop.permute.xlu0 %2237
        %v2241 = vmul.f32 %v2228, %v2236
        %v2242 = vmul.f32 %v2230, %v2238
        %2245 = vrot.lane.b32.xlu0 %v2241, 64
        %v2246 = vpop.permute.xlu0 %2245
        %2247 = vrot.lane.b32.xlu0 %v2242, 64
        %v2248 = vpop.permute.xlu0 %2247
        %v2251 = vadd.f32 %v572, %v2246
        %v2252 = vadd.f32 %v575, %v2248
        %v2253 = vtanh.pop %v2251
        %v2254 = vtanh.pop %v2252
        %v2255 = vsub.f32 1.0, %v2228
        %v2256 = vsub.f32 1.0, %v2230
        %2259 = vrot.lane.b32.xlu0 %v2253, 96
        %v2260 = vpop.permute.xlu0 %2259
        %2261 = vrot.lane.b32.xlu0 %v2254, 96
        %v2262 = vpop.permute.xlu0 %2261
        %v2265 = vmul.f32 %v2255, %v2260
        %v2266 = vmul.f32 %v2256, %v2262
        %v2267 = vrot.slane %v2143, 7
        %v2268 = vrot.slane %v2144, 7
        %v2271 = vmul.f32 %v2228, %v2267
        %v2272 = vmul.f32 %v2230, %v2268
        %v2273 = vadd.f32 %v2265, %v2271
        %v2274 = vadd.f32 %v2266, %v2272
        %2277 = vrot.lane.b32.xlu0 %v2273, 96
        %v2278 = vpop.permute.xlu0 %2277
        %2279 = vrot.lane.b32.xlu0 %v2274, 96
        %v2280 = vpop.permute.xlu0 %2279
        %2283 = vst.msk [vmem:[#allocation3] sm:$0x10] %vm1227, %v2278
        %2284 = vst.msk [vmem:[#allocation3 + $0x8] sm:$0x10] %vm1227, %v2280
        %v2285 = vpack.c.bf16 %v2273, %v2273
        %v2286 = vpack.c.bf16 %v2274, %v2274
        %v2289 = vunpack.c.l.b16 %v2285
        %v2290 = vunpack.c.l.b16 %v2286
        %v2291 = vrot.slane %v2289, 4
        %v2292 = vrot.slane %v2290, 3
        %v2293 = vsel %vm716, %v2292, %v2291
        %v2294 = vpack.c.b16 %v2293, %v2293
        %2295 = vrot.lane.b32.xlu0 %v2294, 96
        %v2296 = vpop.permute.xlu0 %2295
        %v2298 = vsel %vm461, %v2296, 0
        %2300 = vmatprep.subr.bf16.mxu0 0
        %2301 = vmatpush1.bf16.msra.mxu0 0
        %2302 = vmatprep.subr.bf16.mxu0 0
        %2303 = vmatpush1.bf16.msra.mxu0 0
        %2304 = vmatprep.subr.bf16.mxu0 0
        %2305 = vmatpush1.bf16.msra.mxu0 0
        %2306 = vmatprep.subr.bf16.mxu0 0
        %2307 = vmatpush1.bf16.msra.mxu0 0
        %2308 = vmatprep.subr.bf16.mxu0 0
        %2309 = vmatpush1.bf16.msra.mxu0 0
        %2310 = vmatprep.subr.bf16.mxu0 0
        %2311 = vmatpush1.bf16.msra.mxu0 0
        %2312 = vmatprep.subr.bf16.mxu0 0
        %2313 = vmatpush1.bf16.msra.mxu0 %v1644
        %2314 = vmatprep.subr.bf16.mxu0 0
        %2315 = vmatpush1.bf16.msra.mxu0 %v1643
        %2316 = vmatprep.subr.bf16.mxu0 0
        %2317 = vmatpush2.bf16.msra.mxu0 0
        %2318 = vmatprep.subr.bf16.mxu0 0
        %2319 = vmatpush2.bf16.msra.mxu0 0
        %2320 = vmatprep.subr.bf16.mxu0 0
        %2321 = vmatpush2.bf16.msra.mxu0 0
        %2322 = vmatprep.subr.bf16.mxu0 0
        %2323 = vmatpush2.bf16.msra.mxu0 0
        %2324 = vmatprep.subr.bf16.mxu0 0
        %2325 = vmatpush2.bf16.msra.mxu0 0
        %2326 = vmatprep.subr.bf16.mxu0 0
        %2327 = vmatpush2.bf16.msra.mxu0 0
        %2328 = vmatprep.subr.bf16.mxu0 0
        %2329 = vmatpush2.bf16.msra.mxu0 0
        %2330 = vmatprep.subr.bf16.mxu0 0
        %2331 = vmatpush2.bf16.msra.mxu0 0
        %2332 = vmatprep.mubr.bf16.mxu0 0
        %2333 = vmatmul.mubr.bf16.gmra.mxu0 %v2298
        %v2334 = vpop.f32.mrf.mxu0
        %v2335 = vadd.f32 0.0, %v2334
        %v2336 = vpop.f32.mrf.mxu0
        %v2337 = vpop.f32.mrf.mxu0
        %v2338 = vpop.f32.mrf.mxu0
        %2339 = vdwg.mxu0
        %v2341 = vrot.slane %v2335, 3
        %v2342 = vrot.slane %v2335, 4
        %v2345 = vadd.f32 %v572, %v2341
        %v2346 = vadd.f32 %v575, %v2342
        %v2347 = vadd.f32 %v2345, %v1700
        %v2348 = vadd.f32 %v2346, %v1700
        %v2349 = vxor.u32 %v2347, 2147483648
        %v2350 = vxor.u32 %v2348, 2147483648
        %v2351 = vmul.f32 %v2349, 1.442695
        %v2352 = vpow.pop %v2351
        %v2353 = vmul.f32 %v2350, 1.442695
        %v2354 = vpow.pop %v2353
        %v2355 = vadd.f32 %v2352, 1.0
        %v2356 = vadd.f32 %v2354, 1.0
        %v2357 = vrcp.pop %v2355
        %v2358 = vmul.f32 1.0, %v2357
        %v2359 = vrcp.pop %v2356
        %v2360 = vmul.f32 1.0, %v2359
        %v2361 = vadd.f32 %v2335, %v1700
        %v2363 = vrot.slane %v2361, 3
        %v2364 = vrot.slane %v2361, 4
        %2365 = vrot.lane.b32.xlu0 %v2363, 64
        %v2366 = vpop.permute.xlu0 %2365
        %2367 = vrot.lane.b32.xlu0 %v2364, 64
        %v2368 = vpop.permute.xlu0 %2367
        %v2371 = vmul.f32 %v2358, %v2366
        %v2372 = vmul.f32 %v2360, %v2368
        %2375 = vrot.lane.b32.xlu0 %v2371, 64
        %v2376 = vpop.permute.xlu0 %2375
        %2377 = vrot.lane.b32.xlu0 %v2372, 64
        %v2378 = vpop.permute.xlu0 %2377
        %v2381 = vadd.f32 %v572, %v2376
        %v2382 = vadd.f32 %v575, %v2378
        %v2383 = vtanh.pop %v2381
        %v2384 = vtanh.pop %v2382
        %v2385 = vsub.f32 1.0, %v2358
        %v2386 = vsub.f32 1.0, %v2360
        %2389 = vrot.lane.b32.xlu0 %v2383, 96
        %v2390 = vpop.permute.xlu0 %2389
        %2391 = vrot.lane.b32.xlu0 %v2384, 96
        %v2392 = vpop.permute.xlu0 %2391
        %v2395 = vmul.f32 %v2385, %v2390
        %v2396 = vmul.f32 %v2386, %v2392
        %v2397 = vrot.slane %v2273, 7
        %v2398 = vrot.slane %v2274, 7
        %v2401 = vmul.f32 %v2358, %v2397
        %v2402 = vmul.f32 %v2360, %v2398
        %v2403 = vadd.f32 %v2395, %v2401
        %v2404 = vadd.f32 %v2396, %v2402
        %2407 = vrot.lane.b32.xlu0 %v2403, 96
        %v2408 = vpop.permute.xlu0 %2407
        %2409 = vrot.lane.b32.xlu0 %v2404, 96
        %v2410 = vpop.permute.xlu0 %2409
        %2413 = vst.msk [vmem:[#allocation3] sm:$0x20] %vm1358, %v2408
        %2414 = vst.msk [vmem:[#allocation3 + $0x8] sm:$0x20] %vm1358, %v2410
        %v2415 = vpack.c.bf16 %v2403, %v2403
        %v2416 = vpack.c.bf16 %v2404, %v2404
        %v2419 = vunpack.c.l.b16 %v2415
        %v2420 = vunpack.c.l.b16 %v2416
        %v2421 = vrot.slane %v2419, 5
        %v2422 = vrot.slane %v2420, 4
        %v2423 = vsel %vm716, %v2422, %v2421
        %v2424 = vpack.c.b16 %v2423, %v2423
        %2425 = vrot.lane.b32.xlu0 %v2424, 96
        %v2426 = vpop.permute.xlu0 %2425
        %v2428 = vsel %vm461, %v2426, 0
        %2430 = vmatprep.subr.bf16.mxu0 0
        %2431 = vmatpush1.bf16.msra.mxu0 0
        %2432 = vmatprep.subr.bf16.mxu0 0
        %2433 = vmatpush1.bf16.msra.mxu0 0
        %2434 = vmatprep.subr.bf16.mxu0 0
        %2435 = vmatpush1.bf16.msra.mxu0 0
        %2436 = vmatprep.subr.bf16.mxu0 0
        %2437 = vmatpush1.bf16.msra.mxu0 0
        %2438 = vmatprep.subr.bf16.mxu0 0
        %2439 = vmatpush1.bf16.msra.mxu0 0
        %2440 = vmatprep.subr.bf16.mxu0 0
        %2441 = vmatpush1.bf16.msra.mxu0 0
        %2442 = vmatprep.subr.bf16.mxu0 0
        %2443 = vmatpush1.bf16.msra.mxu0 %v1644
        %2444 = vmatprep.subr.bf16.mxu0 0
        %2445 = vmatpush1.bf16.msra.mxu0 %v1643
        %2446 = vmatprep.subr.bf16.mxu0 0
        %2447 = vmatpush2.bf16.msra.mxu0 0
        %2448 = vmatprep.subr.bf16.mxu0 0
        %2449 = vmatpush2.bf16.msra.mxu0 0
        %2450 = vmatprep.subr.bf16.mxu0 0
        %2451 = vmatpush2.bf16.msra.mxu0 0
        %2452 = vmatprep.subr.bf16.mxu0 0
        %2453 = vmatpush2.bf16.msra.mxu0 0
        %2454 = vmatprep.subr.bf16.mxu0 0
        %2455 = vmatpush2.bf16.msra.mxu0 0
        %2456 = vmatprep.subr.bf16.mxu0 0
        %2457 = vmatpush2.bf16.msra.mxu0 0
        %2458 = vmatprep.subr.bf16.mxu0 0
        %2459 = vmatpush2.bf16.msra.mxu0 0
        %2460 = vmatprep.subr.bf16.mxu0 0
        %2461 = vmatpush2.bf16.msra.mxu0 0
        %2462 = vmatprep.mubr.bf16.mxu0 0
        %2463 = vmatmul.mubr.bf16.gmra.mxu0 %v2428
        %v2464 = vpop.f32.mrf.mxu0
        %v2465 = vadd.f32 0.0, %v2464
        %v2466 = vpop.f32.mrf.mxu0
        %v2467 = vpop.f32.mrf.mxu0
        %v2468 = vpop.f32.mrf.mxu0
        %2469 = vdwg.mxu0
        %v2471 = vrot.slane %v2465, 2
        %v2472 = vrot.slane %v2465, 3
        %v2475 = vadd.f32 %v572, %v2471
        %v2476 = vadd.f32 %v575, %v2472
        %v2477 = vadd.f32 %v2475, %v1700
        %v2478 = vadd.f32 %v2476, %v1700
        %v2479 = vxor.u32 %v2477, 2147483648
        %v2480 = vxor.u32 %v2478, 2147483648
        %v2481 = vmul.f32 %v2479, 1.442695
        %v2482 = vpow.pop %v2481
        %v2483 = vmul.f32 %v2480, 1.442695
        %v2484 = vpow.pop %v2483
        %v2485 = vadd.f32 %v2482, 1.0
        %v2486 = vadd.f32 %v2484, 1.0
        %v2487 = vrcp.pop %v2485
        %v2488 = vmul.f32 1.0, %v2487
        %v2489 = vrcp.pop %v2486
        %v2490 = vmul.f32 1.0, %v2489
        %v2491 = vadd.f32 %v2465, %v1700
        %v2493 = vrot.slane %v2491, 2
        %v2494 = vrot.slane %v2491, 3
        %2495 = vrot.lane.b32.xlu0 %v2493, 64
        %v2496 = vpop.permute.xlu0 %2495
        %2497 = vrot.lane.b32.xlu0 %v2494, 64
        %v2498 = vpop.permute.xlu0 %2497
        %v2501 = vmul.f32 %v2488, %v2496
        %v2502 = vmul.f32 %v2490, %v2498
        %2505 = vrot.lane.b32.xlu0 %v2501, 64
        %v2506 = vpop.permute.xlu0 %2505
        %2507 = vrot.lane.b32.xlu0 %v2502, 64
        %v2508 = vpop.permute.xlu0 %2507
        %v2511 = vadd.f32 %v572, %v2506
        %v2512 = vadd.f32 %v575, %v2508
        %v2513 = vtanh.pop %v2511
        %v2514 = vtanh.pop %v2512
        %v2515 = vsub.f32 1.0, %v2488
        %v2516 = vsub.f32 1.0, %v2490
        %2519 = vrot.lane.b32.xlu0 %v2513, 96
        %v2520 = vpop.permute.xlu0 %2519
        %2521 = vrot.lane.b32.xlu0 %v2514, 96
        %v2522 = vpop.permute.xlu0 %2521
        %v2525 = vmul.f32 %v2515, %v2520
        %v2526 = vmul.f32 %v2516, %v2522
        %v2527 = vrot.slane %v2403, 7
        %v2528 = vrot.slane %v2404, 7
        %v2531 = vmul.f32 %v2488, %v2527
        %v2532 = vmul.f32 %v2490, %v2528
        %v2533 = vadd.f32 %v2525, %v2531
        %v2534 = vadd.f32 %v2526, %v2532
        %2537 = vrot.lane.b32.xlu0 %v2533, 96
        %v2538 = vpop.permute.xlu0 %2537
        %2539 = vrot.lane.b32.xlu0 %v2534, 96
        %v2540 = vpop.permute.xlu0 %2539
        %2543 = vst.msk [vmem:[#allocation3] sm:$0x40] %vm1489, %v2538
        %2544 = vst.msk [vmem:[#allocation3 + $0x8] sm:$0x40] %vm1489, %v2540
        %v2545 = vpack.c.bf16 %v2533, %v2533
        %v2546 = vpack.c.bf16 %v2534, %v2534
        %v2549 = vunpack.c.l.b16 %v2545
        %v2550 = vunpack.c.l.b16 %v2546
        %v2551 = vrot.slane %v2549, 6
        %v2552 = vrot.slane %v2550, 5
        %v2553 = vsel %vm716, %v2552, %v2551
        %v2554 = vpack.c.b16 %v2553, %v2553
        %2555 = vrot.lane.b32.xlu0 %v2554, 96
        %v2556 = vpop.permute.xlu0 %2555
        %v2558 = vsel %vm461, %v2556, 0
        %2560 = vmatprep.subr.bf16.mxu0 0
        %2561 = vmatpush1.bf16.msra.mxu0 0
        %2562 = vmatprep.subr.bf16.mxu0 0
        %2563 = vmatpush1.bf16.msra.mxu0 0
        %2564 = vmatprep.subr.bf16.mxu0 0
        %2565 = vmatpush1.bf16.msra.mxu0 0
        %2566 = vmatprep.subr.bf16.mxu0 0
        %2567 = vmatpush1.bf16.msra.mxu0 0
        %2568 = vmatprep.subr.bf16.mxu0 0
        %2569 = vmatpush1.bf16.msra.mxu0 0
        %2570 = vmatprep.subr.bf16.mxu0 0
        %2571 = vmatpush1.bf16.msra.mxu0 0
        %2572 = vmatprep.subr.bf16.mxu0 0
        %2573 = vmatpush1.bf16.msra.mxu0 %v1644
        %2574 = vmatprep.subr.bf16.mxu0 0
        %2575 = vmatpush1.bf16.msra.mxu0 %v1643
        %2576 = vmatprep.subr.bf16.mxu0 0
        %2577 = vmatpush2.bf16.msra.mxu0 0
        %2578 = vmatprep.subr.bf16.mxu0 0
        %2579 = vmatpush2.bf16.msra.mxu0 0
        %2580 = vmatprep.subr.bf16.mxu0 0
        %2581 = vmatpush2.bf16.msra.mxu0 0
        %2582 = vmatprep.subr.bf16.mxu0 0
        %2583 = vmatpush2.bf16.msra.mxu0 0
        %2584 = vmatprep.subr.bf16.mxu0 0
        %2585 = vmatpush2.bf16.msra.mxu0 0
        %2586 = vmatprep.subr.bf16.mxu0 0
        %2587 = vmatpush2.bf16.msra.mxu0 0
        %2588 = vmatprep.subr.bf16.mxu0 0
        %2589 = vmatpush2.bf16.msra.mxu0 0
        %2590 = vmatprep.subr.bf16.mxu0 0
        %2591 = vmatpush2.bf16.msra.mxu0 0
        %2592 = vmatprep.mubr.bf16.mxu0 0
        %2593 = vmatmul.mubr.bf16.gmra.mxu0 %v2558
        %v2594 = vpop.f32.mrf.mxu0
        %v2595 = vadd.f32 0.0, %v2594
        %v2596 = vpop.f32.mrf.mxu0
        %v2597 = vpop.f32.mrf.mxu0
        %v2598 = vpop.f32.mrf.mxu0
        %2599 = vdwg.mxu0
        %v2601 = vrot.slane %v2595, 1
        %v2602 = vrot.slane %v2595, 2
        %v2605 = vadd.f32 %v572, %v2601
        %v2606 = vadd.f32 %v575, %v2602
        %v2607 = vadd.f32 %v2605, %v1700
        %v2608 = vadd.f32 %v2606, %v1700
        %v2609 = vxor.u32 %v2607, 2147483648
        %v2610 = vxor.u32 %v2608, 2147483648
        %v2611 = vmul.f32 %v2609, 1.442695
        %v2612 = vpow.pop %v2611
        %v2613 = vmul.f32 %v2610, 1.442695
        %v2614 = vpow.pop %v2613
        %v2615 = vadd.f32 %v2612, 1.0
        %v2616 = vadd.f32 %v2614, 1.0
        %v2617 = vrcp.pop %v2615
        %v2618 = vmul.f32 1.0, %v2617
        %v2619 = vrcp.pop %v2616
        %v2620 = vmul.f32 1.0, %v2619
        %v2621 = vadd.f32 %v2595, %v1700
        %v2623 = vrot.slane %v2621, 1
        %v2624 = vrot.slane %v2621, 2
        %2625 = vrot.lane.b32.xlu0 %v2623, 64
        %v2626 = vpop.permute.xlu0 %2625
        %2627 = vrot.lane.b32.xlu0 %v2624, 64
        %v2628 = vpop.permute.xlu0 %2627
        %v2631 = vmul.f32 %v2618, %v2626
        %v2632 = vmul.f32 %v2620, %v2628
        %2635 = vrot.lane.b32.xlu0 %v2631, 64
        %v2636 = vpop.permute.xlu0 %2635
        %2637 = vrot.lane.b32.xlu0 %v2632, 64
        %v2638 = vpop.permute.xlu0 %2637
        %v2641 = vadd.f32 %v572, %v2636
        %v2642 = vadd.f32 %v575, %v2638
        %v2643 = vtanh.pop %v2641
        %v2644 = vtanh.pop %v2642
        %v2645 = vsub.f32 1.0, %v2618
        %v2646 = vsub.f32 1.0, %v2620
        %2649 = vrot.lane.b32.xlu0 %v2643, 96
        %v2650 = vpop.permute.xlu0 %2649
        %2651 = vrot.lane.b32.xlu0 %v2644, 96
        %v2652 = vpop.permute.xlu0 %2651
        %v2655 = vmul.f32 %v2645, %v2650
        %v2656 = vmul.f32 %v2646, %v2652
        %v2657 = vrot.slane %v2533, 7
        %v2658 = vrot.slane %v2534, 7
        %v2661 = vmul.f32 %v2618, %v2657
        %v2662 = vmul.f32 %v2620, %v2658
        %v2663 = vadd.f32 %v2655, %v2661
        %v2664 = vadd.f32 %v2656, %v2662
        %2667 = vrot.lane.b32.xlu0 %v2663, 96
        %v2668 = vpop.permute.xlu0 %2667
        %2669 = vrot.lane.b32.xlu0 %v2664, 96
        %v2670 = vpop.permute.xlu0 %2669
        %2673 = vst.msk [vmem:[#allocation3] sm:$0x80] %vm1620, %v2668
        %2674 = vst.msk [vmem:[#allocation3 + $0x8] sm:$0x80] %vm1620, %v2670
        %v2675 = vld [vmem:[#allocation2] sm:$0xff]
        %v2676 = vld [vmem:[#allocation2 + $0x8] sm:$0xff]
        %v2677 = vpack.c.bf16 %v2675, %v2675
        %v2678 = vpack.c.bf16 %v2676, %v2676
        %v2679 = vld [vmem:[#allocation3] sm:$0xff]
        %v2680 = vld [vmem:[#allocation3 + $0x8] sm:$0xff]
        %v2681 = vpack.c.bf16 %v2679, %v2679
        %v2682 = vpack.c.bf16 %v2680, %v2680
        %v2683 = vpack.c.bf16 %v2676, %v2675
        %v2684 = vld [vmem:[%s6] sm:$0xf]
        %v2685 = vld [vmem:[%s6 + $0x4] sm:$0xf]
        %v2686 = vld [vmem:[%s6 + $0x8] sm:$0xf]
        %v2687 = vld [vmem:[%s6 + $0xc] sm:$0xf]
        %v2688 = vld [vmem:[%s7] sm:$0x1]
        %v2690 = vlaneseq
        %v2691 = vshrl.u32 %v2690, 7
        %v2692 = vsub.s32 0, %v2691
        %v2693 = vrot.slane %v2688, %v2692
        %v2699 = vunpack.c.l.b16 %v2684
        %v2700 = vunpack.c.l.b16 %v2685
        %v2701 = vunpack.c.l.b16 %v2686
        %v2702 = vunpack.c.l.b16 %v2687
        %v2703 = vpack.c.b16 %v2700, %v2699
        %v2704 = vpack.c.b16 %v2702, %v2701
        %v2708 = vsel %vm461, %v2683, 0
        %2710 = vmatprep.subr.bf16.mxu0 0
        %2711 = vmatpush1.bf16.msra.mxu0 0
        %2712 = vmatprep.subr.bf16.mxu0 0
        %2713 = vmatpush1.bf16.msra.mxu0 0
        %2714 = vmatprep.subr.bf16.mxu0 0
        %2715 = vmatpush1.bf16.msra.mxu0 0
        %2716 = vmatprep.subr.bf16.mxu0 0
        %2717 = vmatpush1.bf16.msra.mxu0 0
        %2718 = vmatprep.subr.bf16.mxu0 0
        %2719 = vmatpush1.bf16.msra.mxu0 0
        %2720 = vmatprep.subr.bf16.mxu0 0
        %2721 = vmatpush1.bf16.msra.mxu0 0
        %2722 = vmatprep.subr.bf16.mxu0 0
        %2723 = vmatpush1.bf16.msra.mxu0 %v2704
        %2724 = vmatprep.subr.bf16.mxu0 0
        %2725 = vmatpush1.bf16.msra.mxu0 %v2703
        %2726 = vmatprep.subr.bf16.mxu0 0
        %2727 = vmatpush2.bf16.msra.mxu0 0
        %2728 = vmatprep.subr.bf16.mxu0 0
        %2729 = vmatpush2.bf16.msra.mxu0 0
        %2730 = vmatprep.subr.bf16.mxu0 0
        %2731 = vmatpush2.bf16.msra.mxu0 0
        %2732 = vmatprep.subr.bf16.mxu0 0
        %2733 = vmatpush2.bf16.msra.mxu0 0
        %2734 = vmatprep.subr.bf16.mxu0 0
        %2735 = vmatpush2.bf16.msra.mxu0 0
        %2736 = vmatprep.subr.bf16.mxu0 0
        %2737 = vmatpush2.bf16.msra.mxu0 0
        %2738 = vmatprep.subr.bf16.mxu0 0
        %2739 = vmatpush2.bf16.msra.mxu0 0
        %2740 = vmatprep.subr.bf16.mxu0 0
        %2741 = vmatpush2.bf16.msra.mxu0 0
        %2742 = vmatprep.mubr.bf16.mxu0 0
        %2743 = vmatmul.mubr.bf16.gmra.mxu0 %v2708
        %v2744 = vpop.f32.mrf.mxu0
        %v2745 = vadd.f32 %v2693, %v2744
        %v2746 = vpop.f32.mrf.mxu0
        %v2747 = vpop.f32.mrf.mxu0
        %v2748 = vadd.f32 %v2693, %v2747
        %v2749 = vpop.f32.mrf.mxu0
        %2750 = vdwg.mxu0
        %v2751 = vpack.c.bf16 %v2745, %v2745
        %v2752 = vpack.c.bf16 %v2748, %v2748
        %v2754 = vsel %vm461, %v2681, 0
        %v2757 = vsel %vm461, %v2751, 0
        %2759 = vmatprep.subr.bf16.mxu0 0
        %2760 = vmatpush1.bf16.xpose.msra.mxu0 0
        %2761 = vmatprep.subr.bf16.mxu0 0
        %2762 = vmatpush1.bf16.xpose.msra.mxu0 0
        %2763 = vmatprep.subr.bf16.mxu0 0
        %2764 = vmatpush1.bf16.xpose.msra.mxu0 0
        %2765 = vmatprep.subr.bf16.mxu0 0
        %2766 = vmatpush1.bf16.xpose.msra.mxu0 0
        %2767 = vmatprep.subr.bf16.mxu0 0
        %2768 = vmatpush1.bf16.xpose.msra.mxu0 0
        %2769 = vmatprep.subr.bf16.mxu0 0
        %2770 = vmatpush1.bf16.xpose.msra.mxu0 0
        %2771 = vmatprep.subr.bf16.mxu0 0
        %2772 = vmatpush1.bf16.xpose.msra.mxu0 0
        %2773 = vmatprep.subr.bf16.mxu0 0
        %2774 = vmatpush1.bf16.xpose.msra.mxu0 %v2757
        %2775 = vmatprep.subr.bf16.mxu0 0
        %2776 = vmatpush2.bf16.xpose.msra.mxu0 0
        %2777 = vmatprep.subr.bf16.mxu0 0
        %2778 = vmatpush2.bf16.xpose.msra.mxu0 0
        %2779 = vmatprep.subr.bf16.mxu0 0
        %2780 = vmatpush2.bf16.xpose.msra.mxu0 0
        %2781 = vmatprep.subr.bf16.mxu0 0
        %2782 = vmatpush2.bf16.xpose.msra.mxu0 0
        %2783 = vmatprep.subr.bf16.mxu0 0
        %2784 = vmatpush2.bf16.xpose.msra.mxu0 0
        %2785 = vmatprep.subr.bf16.mxu0 0
        %2786 = vmatpush2.bf16.xpose.msra.mxu0 0
        %2787 = vmatprep.subr.bf16.mxu0 0
        %2788 = vmatpush2.bf16.xpose.msra.mxu0 0
        %2789 = vmatprep.subr.bf16.mxu0 0
        %2790 = vmatpush2.bf16.xpose.msra.mxu0 0
        %2791 = vmatprep.mubr.bf16.mxu0 0
        %2792 = vmatmul.mubr.bf16.gmra.mxu0 %v2754
        %v2793 = vpop.f32.mrf.mxu0
        %v2794 = vadd.f32 0.0, %v2793
        %v2795 = vpop.f32.mrf.mxu0
        %v2796 = vpop.f32.mrf.mxu0
        %v2797 = vpop.f32.mrf.mxu0
        %2798 = vdwg.mxu0
        %v2800 = vsel %vm461, %v2682, 0
        %v2803 = vsel %vm461, %v2752, 0
        %2805 = vmatprep.subr.bf16.mxu0 0
        %2806 = vmatpush1.bf16.xpose.msra.mxu0 0
        %2807 = vmatprep.subr.bf16.mxu0 0
        %2808 = vmatpush1.bf16.xpose.msra.mxu0 0
        %2809 = vmatprep.subr.bf16.mxu0 0
        %2810 = vmatpush1.bf16.xpose.msra.mxu0 0
        %2811 = vmatprep.subr.bf16.mxu0 0
        %2812 = vmatpush1.bf16.xpose.msra.mxu0 0
        %2813 = vmatprep.subr.bf16.mxu0 0
        %2814 = vmatpush1.bf16.xpose.msra.mxu0 0
        %2815 = vmatprep.subr.bf16.mxu0 0
        %2816 = vmatpush1.bf16.xpose.msra.mxu0 0
        %2817 = vmatprep.subr.bf16.mxu0 0
        %2818 = vmatpush1.bf16.xpose.msra.mxu0 0
        %2819 = vmatprep.subr.bf16.mxu0 0
        %2820 = vmatpush1.bf16.xpose.msra.mxu0 %v2803
        %2821 = vmatprep.subr.bf16.mxu0 0
        %2822 = vmatpush2.bf16.xpose.msra.mxu0 0
        %2823 = vmatprep.subr.bf16.mxu0 0
        %2824 = vmatpush2.bf16.xpose.msra.mxu0 0
        %2825 = vmatprep.subr.bf16.mxu0 0
        %2826 = vmatpush2.bf16.xpose.msra.mxu0 0
        %2827 = vmatprep.subr.bf16.mxu0 0
        %2828 = vmatpush2.bf16.xpose.msra.mxu0 0
        %2829 = vmatprep.subr.bf16.mxu0 0
        %2830 = vmatpush2.bf16.xpose.msra.mxu0 0
        %2831 = vmatprep.subr.bf16.mxu0 0
        %2832 = vmatpush2.bf16.xpose.msra.mxu0 0
        %2833 = vmatprep.subr.bf16.mxu0 0
        %2834 = vmatpush2.bf16.xpose.msra.mxu0 0
        %2835 = vmatprep.subr.bf16.mxu0 0
        %2836 = vmatpush2.bf16.xpose.msra.mxu0 0
        %2837 = vmatprep.mubr.bf16.mxu0 0
        %2838 = vmatmul.mubr.bf16.gmra.mxu0 %v2800
        %v2839 = vpop.f32.mrf.mxu0
        %v2840 = vadd.f32 0.0, %v2839
        %v2841 = vpop.f32.mrf.mxu0
        %v2842 = vpop.f32.mrf.mxu0
        %v2843 = vpop.f32.mrf.mxu0
        %2844 = vdwg.mxu0
        %vm2845 = vcmask 64512
        %v2846 = vsel %vm2845, %v2794, -inf
        %2847 = vmax.xlane.f32.xlu0 %v2846
        %v2848 = vpop.xlane.xlu0 %2847
        %v2849 = vsel %vm2845, %v2840, -inf
        %2850 = vmax.xlane.f32.xlu0 %v2849
        %v2851 = vpop.xlane.xlu0 %2850
        %v2852 = vsub.f32 %v2794, %v2848
        %v2853 = vsub.f32 %v2840, %v2851
        %v2854 = vmul.f32 %v2852, 1.442695
        %v2855 = vpow.pop %v2854
        %v2856 = vmul.f32 %v2853, 1.442695
        %v2857 = vpow.pop %v2856
        %v2858 = vsel %vm2845, %v2855, 0.0
        %2859 = vadd.xlane.f32.xlu0 %v2858
        %v2860 = vpop.xlane.xlu0 %2859
        %v2861 = vsel %vm2845, %v2857, 0.0
        %2862 = vadd.xlane.f32.xlu0 %v2861
        %v2863 = vpop.xlane.xlu0 %2862
        %v2864 = vrcp.pop %v2860
        %v2865 = vmul.f32 %v2855, %v2864
        %v2866 = vrcp.pop %v2863
        %v2867 = vmul.f32 %v2857, %v2866
        %v2868 = vpack.c.bf16 %v2865, %v2865
        %v2869 = vpack.c.bf16 %v2867, %v2867
        %v2871 = vsel %vm2845, %v2868, 0
        %vm2873 = vcmask 1043456
        %v2875 = vsel %vm2873, %v2677, 0
        %2877 = vmatprep.subr.bf16.mxu0 0
        %2878 = vmatpush1.bf16.msra.mxu0 0
        %2879 = vmatprep.subr.bf16.mxu0 0
        %2880 = vmatpush1.bf16.msra.mxu0 0
        %2881 = vmatprep.subr.bf16.mxu0 0
        %2882 = vmatpush1.bf16.msra.mxu0 0
        %2883 = vmatprep.subr.bf16.mxu0 0
        %2884 = vmatpush1.bf16.msra.mxu0 0
        %2885 = vmatprep.subr.bf16.mxu0 0
        %2886 = vmatpush1.bf16.msra.mxu0 0
        %2887 = vmatprep.subr.bf16.mxu0 0
        %2888 = vmatpush1.bf16.msra.mxu0 0
        %2889 = vmatprep.subr.bf16.mxu0 0
        %2890 = vmatpush1.bf16.msra.mxu0 0
        %2891 = vmatprep.subr.bf16.mxu0 0
        %2892 = vmatpush1.bf16.msra.mxu0 %v2875
        %2893 = vmatprep.subr.bf16.mxu0 0
        %2894 = vmatpush2.bf16.msra.mxu0 0
        %2895 = vmatprep.subr.bf16.mxu0 0
        %2896 = vmatpush2.bf16.msra.mxu0 0
        %2897 = vmatprep.subr.bf16.mxu0 0
        %2898 = vmatpush2.bf16.msra.mxu0 0
        %2899 = vmatprep.subr.bf16.mxu0 0
        %2900 = vmatpush2.bf16.msra.mxu0 0
        %2901 = vmatprep.subr.bf16.mxu0 0
        %2902 = vmatpush2.bf16.msra.mxu0 0
        %2903 = vmatprep.subr.bf16.mxu0 0
        %2904 = vmatpush2.bf16.msra.mxu0 0
        %2905 = vmatprep.subr.bf16.mxu0 0
        %2906 = vmatpush2.bf16.msra.mxu0 0
        %2907 = vmatprep.subr.bf16.mxu0 0
        %2908 = vmatpush2.bf16.msra.mxu0 0
        %2909 = vmatprep.mubr.bf16.mxu0 0
        %2910 = vmatmul.mubr.bf16.gmra.mxu0 %v2871
        %v2911 = vpop.f32.mrf.mxu0
        %v2912 = vadd.f32 0.0, %v2911
        %v2913 = vpop.f32.mrf.mxu0
        %v2914 = vpop.f32.mrf.mxu0
        %v2915 = vpop.f32.mrf.mxu0
        %2916 = vdwg.mxu0
        %v2918 = vsel %vm2845, %v2869, 0
        %v2921 = vsel %vm2873, %v2678, 0
        %2923 = vmatprep.subr.bf16.mxu0 0
        %2924 = vmatpush1.bf16.msra.mxu0 0
        %2925 = vmatprep.subr.bf16.mxu0 0
        %2926 = vmatpush1.bf16.msra.mxu0 0
        %2927 = vmatprep.subr.bf16.mxu0 0
        %2928 = vmatpush1.bf16.msra.mxu0 0
        %2929 = vmatprep.subr.bf16.mxu0 0
        %2930 = vmatpush1.bf16.msra.mxu0 0
        %2931 = vmatprep.subr.bf16.mxu0 0
        %2932 = vmatpush1.bf16.msra.mxu0 0
        %2933 = vmatprep.subr.bf16.mxu0 0
        %2934 = vmatpush1.bf16.msra.mxu0 0
        %2935 = vmatprep.subr.bf16.mxu0 0
        %2936 = vmatpush1.bf16.msra.mxu0 0
        %2937 = vmatprep.subr.bf16.mxu0 0
        %2938 = vmatpush1.bf16.msra.mxu0 %v2921
        %2939 = vmatprep.subr.bf16.mxu0 0
        %2940 = vmatpush2.bf16.msra.mxu0 0
        %2941 = vmatprep.subr.bf16.mxu0 0
        %2942 = vmatpush2.bf16.msra.mxu0 0
        %2943 = vmatprep.subr.bf16.mxu0 0
        %2944 = vmatpush2.bf16.msra.mxu0 0
        %2945 = vmatprep.subr.bf16.mxu0 0
        %2946 = vmatpush2.bf16.msra.mxu0 0
        %2947 = vmatprep.subr.bf16.mxu0 0
        %2948 = vmatpush2.bf16.msra.mxu0 0
        %2949 = vmatprep.subr.bf16.mxu0 0
        %2950 = vmatpush2.bf16.msra.mxu0 0
        %2951 = vmatprep.subr.bf16.mxu0 0
        %2952 = vmatpush2.bf16.msra.mxu0 0
        %2953 = vmatprep.subr.bf16.mxu0 0
        %2954 = vmatpush2.bf16.msra.mxu0 0
        %2955 = vmatprep.mubr.bf16.mxu0 0
        %2956 = vmatmul.mubr.bf16.gmra.mxu0 %v2918
        %v2957 = vpop.f32.mrf.mxu0
        %v2958 = vadd.f32 0.0, %v2957
        %v2959 = vpop.f32.mrf.mxu0
        %v2960 = vpop.f32.mrf.mxu0
        %v2961 = vpop.f32.mrf.mxu0
        %2962 = vdwg.mxu0
        %2963 = vst [vmem:[%s407] sm:$0xff] 0.0
        %2964 = vst [vmem:[%s407 + $0x8] sm:$0xff] 0.0
        %2965 = vst.msk [vmem:[%s407] sm:$0xff] %vm2845, %v2865
        %2966 = vst.msk [vmem:[%s407 + $0x8] sm:$0xff] %vm2845, %v2867
        %v2967 = vpack.c.bf16 %v2680, %v2679
        %v2968 = vld [vmem:[%s8] sm:$0xff]
        %v2969 = vld [vmem:[%s8 + $0x8] sm:$0xff]
        %v2970 = vld [vmem:[%s8 + $0x10] sm:$0xff]
        %v2971 = vld [vmem:[%s8 + $0x18] sm:$0xff]
        %v2972 = vpack.c.bf16 %v2958, %v2912
        %s2973 = scalar_lea.vmem %s8, 32
        %v2974 = vld [vmem:[%s2973] sm:$0xff]
        %v2975 = vld [vmem:[%s2973 + $0x8] sm:$0xff]
        %v2976 = vld [vmem:[%s2973 + $0x10] sm:$0xff]
        %v2977 = vld [vmem:[%s2973 + $0x18] sm:$0xff]
        %v2982 = vunpack.c.l.b16 %v2974
        %v2983 = vunpack.c.h.b16 %v2974
        %v2984 = vunpack.c.l.b16 %v2975
        %v2985 = vunpack.c.h.b16 %v2975
        %v2986 = vunpack.c.l.b16 %v2976
        %v2987 = vunpack.c.h.b16 %v2976
        %v2988 = vunpack.c.l.b16 %v2977
        %v2989 = vunpack.c.h.b16 %v2977
        %v2990 = vpack.c.b16 %v2984, %v2982
        %v2991 = vpack.c.b16 %v2985, %v2983
        %v2992 = vpack.c.b16 %v2988, %v2986
        %v2993 = vpack.c.b16 %v2989, %v2987
        %v2999 = vsel %vm461, %v2972, 0
        %3001 = vmatprep.subr.bf16.mxu0 0
        %3002 = vmatpush1.bf16.msra.mxu0 0
        %3003 = vmatprep.subr.bf16.mxu0 0
        %3004 = vmatpush1.bf16.msra.mxu0 0
        %3005 = vmatprep.subr.bf16.mxu0 0
        %3006 = vmatpush1.bf16.msra.mxu0 0
        %3007 = vmatprep.subr.bf16.mxu0 0
        %3008 = vmatpush1.bf16.msra.mxu0 0
        %3009 = vmatprep.subr.bf16.mxu0 0
        %3010 = vmatpush1.bf16.msra.mxu0 0
        %3011 = vmatprep.subr.bf16.mxu0 0
        %3012 = vmatpush1.bf16.msra.mxu0 0
        %3013 = vmatprep.subr.bf16.mxu0 %v2993
        %3014 = vmatpush1.bf16.msra.mxu0 %v2992
        %3015 = vmatprep.subr.bf16.mxu0 %v2991
        %3016 = vmatpush1.bf16.msra.mxu0 %v2990
        %3017 = vmatprep.subr.bf16.mxu0 0
        %3018 = vmatpush2.bf16.msra.mxu0 0
        %3019 = vmatprep.subr.bf16.mxu0 0
        %3020 = vmatpush2.bf16.msra.mxu0 0
        %3021 = vmatprep.subr.bf16.mxu0 0
        %3022 = vmatpush2.bf16.msra.mxu0 0
        %3023 = vmatprep.subr.bf16.mxu0 0
        %3024 = vmatpush2.bf16.msra.mxu0 0
        %3025 = vmatprep.subr.bf16.mxu0 0
        %3026 = vmatpush2.bf16.msra.mxu0 0
        %3027 = vmatprep.subr.bf16.mxu0 0
        %3028 = vmatpush2.bf16.msra.mxu0 0
        %3029 = vmatprep.subr.bf16.mxu0 0
        %3030 = vmatpush2.bf16.msra.mxu0 0
        %3031 = vmatprep.subr.bf16.mxu0 0
        %3032 = vmatpush2.bf16.msra.mxu0 0
        %3033 = vmatprep.mubr.bf16.mxu0 0
        %3034 = vmatmul.mubr.bf16.gmra.mxu0 %v2999
        %v3035 = vpop.f32.mrf.mxu0
        %v3036 = vadd.f32 0.0, %v3035
        %v3037 = vpop.f32.mrf.mxu0
        %v3038 = vadd.f32 0.0, %v3037
        %v3039 = vpop.f32.mrf.mxu0
        %v3040 = vadd.f32 0.0, %v3039
        %v3041 = vpop.f32.mrf.mxu0
        %v3042 = vadd.f32 0.0, %v3041
        %3043 = vdwg.mxu0
        %v3048 = vunpack.c.l.b16 %v2968
        %v3049 = vunpack.c.h.b16 %v2968
        %v3050 = vunpack.c.l.b16 %v2969
        %v3051 = vunpack.c.h.b16 %v2969
        %v3052 = vunpack.c.l.b16 %v2970
        %v3053 = vunpack.c.h.b16 %v2970
        %v3054 = vunpack.c.l.b16 %v2971
        %v3055 = vunpack.c.h.b16 %v2971
        %v3056 = vpack.c.b16 %v3050, %v3048
        %v3057 = vpack.c.b16 %v3051, %v3049
        %v3058 = vpack.c.b16 %v3054, %v3052
        %v3059 = vpack.c.b16 %v3055, %v3053
        %v3065 = vsel %vm461, %v2967, 0
        %3067 = vmatprep.subr.bf16.mxu0 0
        %3068 = vmatpush1.bf16.msra.mxu0 0
        %3069 = vmatprep.subr.bf16.mxu0 0
        %3070 = vmatpush1.bf16.msra.mxu0 0
        %3071 = vmatprep.subr.bf16.mxu0 0
        %3072 = vmatpush1.bf16.msra.mxu0 0
        %3073 = vmatprep.subr.bf16.mxu0 0
        %3074 = vmatpush1.bf16.msra.mxu0 0
        %3075 = vmatprep.subr.bf16.mxu0 0
        %3076 = vmatpush1.bf16.msra.mxu0 0
        %3077 = vmatprep.subr.bf16.mxu0 0
        %3078 = vmatpush1.bf16.msra.mxu0 0
        %3079 = vmatprep.subr.bf16.mxu0 %v3059
        %3080 = vmatpush1.bf16.msra.mxu0 %v3058
        %3081 = vmatprep.subr.bf16.mxu0 %v3057
        %3082 = vmatpush1.bf16.msra.mxu0 %v3056
        %3083 = vmatprep.subr.bf16.mxu0 0
        %3084 = vmatpush2.bf16.msra.mxu0 0
        %3085 = vmatprep.subr.bf16.mxu0 0
        %3086 = vmatpush2.bf16.msra.mxu0 0
        %3087 = vmatprep.subr.bf16.mxu0 0
        %3088 = vmatpush2.bf16.msra.mxu0 0
        %3089 = vmatprep.subr.bf16.mxu0 0
        %3090 = vmatpush2.bf16.msra.mxu0 0
        %3091 = vmatprep.subr.bf16.mxu0 0
        %3092 = vmatpush2.bf16.msra.mxu0 0
        %3093 = vmatprep.subr.bf16.mxu0 0
        %3094 = vmatpush2.bf16.msra.mxu0 0
        %3095 = vmatprep.subr.bf16.mxu0 0
        %3096 = vmatpush2.bf16.msra.mxu0 0
        %3097 = vmatprep.subr.bf16.mxu0 0
        %3098 = vmatpush2.bf16.msra.mxu0 0
        %3099 = vmatprep.mubr.bf16.mxu0 0
        %3100 = vmatmul.mubr.bf16.gmra.mxu0 %v3065
        %v3101 = vpop.f32.mrf.mxu0
        %v3102 = vadd.f32 %v3036, %v3101
        %v3103 = vpop.f32.mrf.mxu0
        %v3104 = vadd.f32 %v3038, %v3103
        %v3105 = vpop.f32.mrf.mxu0
        %v3106 = vadd.f32 %v3040, %v3105
        %v3107 = vpop.f32.mrf.mxu0
        %v3108 = vadd.f32 %v3042, %v3107
        %3109 = vdwg.mxu0
        %v3110 = vld [vmem:[%s9] sm:$0x3]
        %v3112 = vlaneseq
        %v3113 = vshrl.u32 %v3112, 7
        %v3114 = vsub.s32 0, %v3113
        %v3115 = vrot.slane %v3110, %v3114
        %v3116 = vlaneseq
        %v3117 = vshrl.u32 %v3116, 7
        %v3118 = vsub.s32 1, %v3117
        %v3119 = vrot.slane %v3110, %v3118
        %v3122 = vadd.f32 %v3102, %v3115
        %v3123 = vadd.f32 %v3104, %v3119
        %v3124 = vadd.f32 %v3106, %v3115
        %v3125 = vadd.f32 %v3108, %v3119
        %3126 = vst [vmem:[%s400] sm:$0xff] %v3122
        %3127 = vst [vmem:[%s400 + $0x8] sm:$0xff] %v3123
        %3128 = vst [vmem:[%s400 + $0x10] sm:$0xff] %v3124
        %3129 = vst [vmem:[%s400 + $0x18] sm:$0xff] %v3125
        %s3130 = sand.u32 %s257, 1
        %s3131 = scalar_lea.sflag [#allocation5], %s3130
        %s3132 = sand.u32 %s257, 1
        %s3133 = smul.addr %s3132, 32
        %s3134 = scalar_lea.vmem [#allocation4], %s3133
        %s3135 = sand.u32 %s283, 1
        %s3136 = scalar_lea.sflag [#allocation7], %s3135
        %s3137 = sand.u32 %s283, 1
        %s3138 = smul.addr %s3137, 16
        %s3139 = scalar_lea.vmem [#allocation6], %s3138
        // Predicated region
        $region61: #{seq2seq_attn_forward.1} parent=59 // pred_check
          %p3140 = pneg %p267
        $region62: #{seq2seq_attn_forward.1} parent=59 // pred_check_branch
          %3142 = sbr.rel (%p3140) target = $region64
        $region63: #{seq2seq_attn_forward.1} parent=59 // pred_region
          %s3143 = smul.u32 2, %s29
          %s3145 = ssub.s32 512, 512
          %3146 = vsyncadd %s3131, %s3145
          %s3147 = smul.addr %s3143, 2
          %s3148 = smul.addr %s3147, 128
          %s3149 = scalar_lea.hbm %s10, %s3148
          %s3150 = sshll.u32 %s3134, 4
          %s3151 = int_to_ptr.vmem [resolvable:$true] %s3150
          %3156 = dma.vmem_to_hbm [thread:$0]  %s3151, 512, %s3149, %s3131, 256, 256, 16
        $region64: #{seq2seq_attn_forward.1} parent=59 // pred_fallthru
          _
        // Predicated region
        $region65: #{seq2seq_attn_forward.1} parent=59 // pred_check
          %p3157 = pneg %p293
        $region66: #{seq2seq_attn_forward.1} parent=59 // pred_check_branch
          %3159 = sbr.rel (%p3157) target = $region68
        $region67: #{seq2seq_attn_forward.1} parent=59 // pred_region
          %s3160 = smul.u32 2, %s29
          %s3162 = ssub.s32 256, 256
          %3163 = vsyncadd %s3136, %s3162
          %s3164 = smul.addr %s3160, 128
          %s3165 = scalar_lea.hbm %s11, %s3164
          %s3166 = sshll.u32 %s3139, 4
          %s3167 = int_to_ptr.vmem [resolvable:$true] %s3166
          %3172 = dma.vmem_to_hbm [thread:$0]  %s3167, 256, %s3165, %s3136, 128, 128, 8
        $region68: #{seq2seq_attn_forward.1} parent=59 // pred_fallthru
          _
      $region60: #{seq2seq_attn_forward.1} parent=5 // pred_fallthru
        _
      %p3173 = scmp.le.s32.totalorder 2, %s24
      // Predicated region
      $region69: #{seq2seq_attn_forward.1} parent=5 // pred_check
        %p3174 = pneg %p3173
      $region70: #{seq2seq_attn_forward.1} parent=5 // pred_check_branch
        %3176 = sbr.rel (%p3174) target = $region72
      $region71: #{seq2seq_attn_forward.1} parent=5 // pred_region
        %s3177 = ssub.s32 %s24, 2
        // Predicated region
        $region73: #{seq2seq_attn_forward.1} parent=71 // pred_check
          %p3178 = pneg %p273
        $region74: #{seq2seq_attn_forward.1} parent=71 // pred_check_branch
          %3180 = sbr.rel (%p3178) target = $region76
        $region75: #{seq2seq_attn_forward.1} parent=71 // pred_region
          %s3181 = sand.u32 %s258, 1
          %s3182 = scalar_lea.sflag [#allocation5], %s3181
          %s3183 = sand.u32 %s258, 1
          %s3184 = smul.addr %s3183, 32
          %s3185 = scalar_lea.vmem [#allocation4], %s3184
          %3186 = dma.done %s3182, 512
        $region76: #{seq2seq_attn_forward.1} parent=71 // pred_fallthru
          _
        // Predicated region
        $region77: #{seq2seq_attn_forward.1} parent=71 // pred_check
          %p3187 = pneg %p299
        $region78: #{seq2seq_attn_forward.1} parent=71 // pred_check_branch
          %3189 = sbr.rel (%p3187) target = $region80
        $region79: #{seq2seq_attn_forward.1} parent=71 // pred_region
          %s3190 = sand.u32 %s284, 1
          %s3191 = scalar_lea.sflag [#allocation7], %s3190
          %s3192 = sand.u32 %s284, 1
          %s3193 = smul.addr %s3192, 16
          %s3194 = scalar_lea.vmem [#allocation6], %s3193
          %3195 = dma.done %s3191, 256
        $region80: #{seq2seq_attn_forward.1} parent=71 // pred_fallthru
          _
      $region72: #{seq2seq_attn_forward.1} parent=5 // pred_fallthru
        _
    $region6: #{seq2seq_attn_forward.1} parent=1 // loop_footer
      %s28 = sadd.s32 1, %s24
    $region7: #{seq2seq_attn_forward.1} parent=1 // loop_footer_branch
      %23 = sbr.rel target = $region3
    $region8: #{seq2seq_attn_forward.1} parent=1 // loop_exit
      _
    %3196 = vsyncpa [#allocation5], 1
    %s3197 = scalar_lea.sflag [#allocation5], 1
    %3198 = vsyncpa %s3197, 1
    %3199 = vsyncpa [#allocation7], 1
    %s3200 = scalar_lea.sflag [#allocation7], 1
    %3201 = vsyncpa %s3200, 1

</llo_original>
